<compile_context>
chip_gen: v7x
topology: tpu7x:2x2x1
jax: 0.10.0
libtpu: 0.0.40
codegen_flags: <defaults>
</compile_context>

<pallas_src>
import jax
import jax.numpy as jnp
from jax.experimental import pallas as pl
from jax.experimental.pallas import tpu as pltpu

# ----- scaled-down hyperparameters (PyTorch: seq=138, feat=35, out=35) -----
BATCH = 4
SEQ = 8          # time steps
FEAT = 32        # decoder token feature dim (dec_input_shape[-1])
LSTM_DIM = 128   # lstm_dim
CODE_DIM = 32    # codelayer_dim
OUT_DIM = 32     # output_dims
BN_EPS = 1e-5


# --------------------------------------------------------------------------
# Single fused kernel: latent->state, LSTM, BN, Dense + LogSoftmax.
# Gate layout is the native PyTorch [i, f, g, o].
# --------------------------------------------------------------------------
def fused_kernel(z_ref, x_ref, whc_ref, bhc_ref, ghc_ref, behc_ref,
                 wih_ref, whh_ref, blstm_ref, wdec_ref, bdec_ref,
                 out_ref, gin_scr, y_scr):
    B = z_ref.shape[0]
    H = whc_ref.shape[1] // 2
    TB = x_ref.shape[0]
    T = TB // B
    f32 = jnp.float32
    bf16 = jnp.bfloat16

    # ---- 1. latent -> (h0, c0): one fused Linear + BN(batch stats) + ReLU
    #         over the concatenated 2H channels, then split at a 128-aligned
    #         lane boundary.
    hc = jnp.dot(z_ref[...].astype(bf16), whc_ref[...],
                 preferred_element_type=f32)
    hc = hc + bhc_ref[...]
    mu = jnp.mean(hc, axis=0, keepdims=True)
    var = jnp.mean((hc - mu) ** 2, axis=0, keepdims=True)
    hc = (hc - mu) * jax.lax.rsqrt(var + BN_EPS)
    hc = jnp.maximum(hc * ghc_ref[...] + behc_ref[...], 0.0)
    h = hc[:, :H]
    c = hc[:, H:]

    # ---- 2. hoisted input projection: one (T*B,F)x(F,4H) MXU matmul (+ LSTM
    #         bias), written straight to VMEM scratch so it does not occupy
    #         vregs across the unrolled recurrence.
    gin_scr[...] = jnp.dot(x_ref[...].astype(bf16), wih_ref[...],
                           preferred_element_type=f32) + blstm_ref[...]

    # ---- 3. LSTM recurrence, fully unrolled.  Only h @ W_hh + elementwise
    #         gate math remains on the serial critical path.  W_hh is loaded
    #         from its VMEM ref per step (bf16, half the previous footprint).
    for t in range(T):
        g = gin_scr[t * B:(t + 1) * B, :] + jnp.dot(
            h.astype(bf16), whh_ref[...], preferred_element_type=f32)
        ifg = jax.nn.sigmoid(g[:, :2 * H])        # i | f   (contiguous lanes)
        i_g = ifg[:, :H]
        f_g = ifg[:, H:]
        g_g = jnp.tanh(g[:, 2 * H:3 * H])         # g pops before o
        o_g = jax.nn.sigmoid(g[:, 3 * H:])
        c = f_g * c + i_g * g_g
        h = o_g * jnp.tanh(c)
        y_scr[t * B:(t + 1) * B, :] = h           # time-major hidden sequence

    # ---- 4. BatchNorm over (batch x time) per channel; BN affine is folded
    #         into the Dense weight/bias (done in prepare_params); LogSoftmax.
    y = y_scr[...]                                # (T*B, H)
    mu = jnp.mean(y, axis=0, keepdims=True)
    var = jnp.mean((y - mu) ** 2, axis=0, keepdims=True)
    yn = (y - mu) * jax.lax.rsqrt(var + BN_EPS)
    logits = jnp.dot(yn.astype(bf16), wdec_ref[...],
                     preferred_element_type=f32)
    logits = logits + bdec_ref[...]
    m = jnp.max(logits, axis=-1, keepdims=True)
    s = logits - m
    lp = s - jnp.log(jnp.sum(jnp.exp(s), axis=-1, keepdims=True))  # (T*B, O)

    # ---- 5. single lane-dense store of the time-major output slab
    out_ref[...] = lp


# --------------------------------------------------------------------------
# One-time parameter preparation (outside the hot path):
#   * concat the h/c latent blocks along the output channel,
#   * fold BN_Decoder gamma/beta into the Dense weight/bias,
#   * cast all matmul weights to bf16 (f32 accumulation in-kernel).
# --------------------------------------------------------------------------
def prepare_params(params):
    bf16 = jnp.bfloat16
    # fold: (yn*gamma + beta) @ W + b  ==  yn @ (gamma.T * W) + (beta @ W + b)
    w_dec_folded = params["w_dec_t"] * params["gamma_dec"].T          # (H, O)
    b_dec_folded = params["beta_dec"] @ params["w_dec_t"] + params["b_dec"]
    return {
        "whc": jnp.concatenate([params["wh"], params["wc"]], axis=1).astype(bf16),
        "bhc": jnp.concatenate([params["bh"], params["bc"]], axis=1),
        "ghc": jnp.concatenate([params["gamma_h"], params["gamma_c"]], axis=1),
        "behc": jnp.concatenate([params["beta_h"], params["beta_c"]], axis=1),
        "wih": params["wih_t"].astype(bf16),      # PyTorch gate order i|f|g|o
        "whh": params["whh_t"].astype(bf16),
        "blstm": params["b_lstm"],
        "wdec": w_dec_folded.astype(bf16),
        "bdec": b_dec_folded,
    }


# --------------------------------------------------------------------------
# Full model wrapper (Build_model_not_mols.forward) — single pallas_call,
# no grid.  The only wrapper-side data movement is a tiny layout transpose
# of x into time-major and of the time-major output back to batch-major.
# --------------------------------------------------------------------------
@jax.jit
def build_model_not_mols_forward(prep, latent_input, decoder_inputs):
    B, T, F = decoder_inputs.shape
    H = prep["whh"].shape[0]
    O = prep["wdec"].shape[1]

    x_tm = jnp.transpose(decoder_inputs, (1, 0, 2)).reshape(T * B, F)

    vmem = pl.BlockSpec(memory_space=pltpu.MemorySpace.VMEM)

    out = pl.pallas_call(
        fused_kernel,
        out_shape=jax.ShapeDtypeStruct((T * B, O), jnp.float32),
        in_specs=[vmem] * 11,
        out_specs=vmem,
        scratch_shapes=[
            pltpu.VMEM((T * B, 4 * H), jnp.float32),   # gin (input projection)
            pltpu.VMEM((T * B, H), jnp.float32),       # time-major hidden seq
        ],
    )(latent_input, x_tm, prep["whc"], prep["bhc"], prep["ghc"], prep["behc"],
      prep["wih"], prep["whh"], prep["blstm"], prep["wdec"], prep["bdec"])

    return jnp.transpose(out.reshape(T, B, O), (1, 0, 2))   # (B, T, O)


# --------------------------------------------------------------------------
# Pure-JAX reference (PyTorch gate order / un-fused f32 params) for checks.
# --------------------------------------------------------------------------
def reference_forward(params, z, x):
    H = LSTM_DIM

    def lin_bn_relu(z, w, b, g, be):
        y = z @ w + b
        mean = y.mean(0, keepdims=True)
        var = ((y - mean) ** 2).mean(0, keepdims=True)
        yn = (y - mean) / jnp.sqrt(var + BN_EPS)
        return jnp.maximum(yn * g + be, 0.0)

    h0 = lin_bn_relu(z, params["wh"], params["bh"],
                     params["gamma_h"], params["beta_h"])
    c0 = lin_bn_relu(z, params["wc"], params["bc"],
                     params["gamma_c"], params["beta_c"])

    def step(carry, x_t):
        h, c = carry
        gates = x_t @ params["wih_t"] + h @ params["whh_t"] + params["b_lstm"]
        i = jax.nn.sigmoid(gates[:, :H])
        f = jax.nn.sigmoid(gates[:, H:2 * H])
        g = jnp.tanh(gates[:, 2 * H:3 * H])
        o = jax.nn.sigmoid(gates[:, 3 * H:])
        c = f * c + i * g
        h = o * jnp.tanh(c)
        return (h, c), h

    x_tbf = jnp.transpose(x, (1, 0, 2))
    _, ys = jax.lax.scan(step, (h0, c0), x_tbf)          # (T, B, H)

    mean = ys.mean(axis=(0, 1), keepdims=True)
    var = ((ys - mean) ** 2).mean(axis=(0, 1), keepdims=True)
    yn = (ys - mean) / jnp.sqrt(var + BN_EPS)
    yn = yn * params["gamma_dec"] + params["beta_dec"]   # (1,H) broadcast
    logits = yn @ params["w_dec_t"] + params["b_dec"]
    out = jax.nn.log_softmax(logits, axis=-1)
    return jnp.transpose(out, (1, 0, 2))                 # (B, T, O)


# --------------------------------------------------------------------------
def init_params(key):
    ks = jax.random.split(key, 15)
    s = 0.1
    return {
        # h_layer_block: Linear(CODE_DIM, LSTM_DIM) + BN(LSTM_DIM)
        "wh": s * jax.random.normal(ks[0], (CODE_DIM, LSTM_DIM), jnp.float32),
        "bh": s * jax.random.normal(ks[1], (1, LSTM_DIM), jnp.float32),
        "gamma_h": 1.0 + s * jax.random.normal(ks[2], (1, LSTM_DIM), jnp.float32),
        "beta_h": s * jax.random.normal(ks[3], (1, LSTM_DIM), jnp.float32),
        # c_layer_block
        "wc": s * jax.random.normal(ks[4], (CODE_DIM, LSTM_DIM), jnp.float32),
        "bc": s * jax.random.normal(ks[5], (1, LSTM_DIM), jnp.float32),
        "gamma_c": 1.0 + s * jax.random.normal(ks[6], (1, LSTM_DIM), jnp.float32),
        "beta_c": s * jax.random.normal(ks[7], (1, LSTM_DIM), jnp.float32),
        # decoder_lstm_1: weights stored transposed, PyTorch gate order i|f|g|o;
        # bias_ih + bias_hh folded into one (1, 4H) bias.
        "wih_t": s * jax.random.normal(ks[8], (FEAT, 4 * LSTM_DIM), jnp.float32),
        "whh_t": s * jax.random.normal(ks[9], (LSTM_DIM, 4 * LSTM_DIM), jnp.float32),
        "b_lstm": s * jax.random.normal(ks[10], (1, 4 * LSTM_DIM), jnp.float32),
        # BN_Decoder_1
        "gamma_dec": 1.0 + s * jax.random.normal(ks[11], (1, LSTM_DIM), jnp.float32),
        "beta_dec": s * jax.random.normal(ks[12], (1, LSTM_DIM), jnp.float32),
        # Dense_Decoder_1: Linear(LSTM_DIM, OUT_DIM)
        "w_dec_t": s * jax.random.normal(ks[13], (LSTM_DIM, OUT_DIM), jnp.float32),
        "b_dec": s * jax.random.normal(ks[14], (1, OUT_DIM), jnp.float32),
    }


if __name__ == "__main__":
    key = jax.random.PRNGKey(0)
    k_param, k_z, k_x = jax.random.split(key, 3)
    params = init_params(k_param)
    prep = prepare_params(params)

    latent_input = jax.random.normal(k_z, (BATCH, CODE_DIM), jnp.float32)
    decoder_inputs = jax.random.normal(k_x, (BATCH, SEQ, FEAT), jnp.float32)

    out = build_model_not_mols_forward(prep, latent_input, decoder_inputs)
    out = jax.block_until_ready(out)

    assert out.shape == (BATCH, SEQ, OUT_DIM), out.shape
    assert bool(jnp.all(jnp.isfinite(out)))

    # self-check against a pure-JAX f32 reference (tolerance absorbs the bf16
    # matmul operands used inside the kernel)
    ref = jax.block_until_ready(
        reference_forward(params, latent_input, decoder_inputs))
    max_err = float(jnp.max(jnp.abs(out - ref)))
    assert bool(jnp.allclose(out, ref, atol=5e-2, rtol=5e-2)), max_err

    print("KERNEL_OK")
</pallas_src>

<mosaic_0001>
module attributes {stable_mosaic.version = 11 : i64} {
  func.func @fused_kernel(%arg0: memref<4x32xf32, #tpu.memory_space<vmem>>, %arg1: memref<32x32xf32, #tpu.memory_space<vmem>>, %arg2: memref<32x256xbf16, #tpu.memory_space<vmem>>, %arg3: memref<1x256xf32, #tpu.memory_space<vmem>>, %arg4: memref<1x256xf32, #tpu.memory_space<vmem>>, %arg5: memref<1x256xf32, #tpu.memory_space<vmem>>, %arg6: memref<32x512xbf16, #tpu.memory_space<vmem>>, %arg7: memref<128x512xbf16, #tpu.memory_space<vmem>>, %arg8: memref<1x512xf32, #tpu.memory_space<vmem>>, %arg9: memref<128x32xbf16, #tpu.memory_space<vmem>>, %arg10: memref<1x32xf32, #tpu.memory_space<vmem>>, %arg11: memref<32x32xf32, #tpu.memory_space<vmem>>, %arg12: memref<32x512xf32, #tpu.memory_space<vmem>>, %arg13: memref<32x128xf32, #tpu.memory_space<vmem>>) attributes {dimension_semantics = [], scalar_prefetch = 0 : i64, scratch_operands = 2 : i64, tpu.core_type = #tpu.core_type<tc>} {
    %c0 = arith.constant 0 : index
    %c0_0 = arith.constant 0 : index
    %0 = vector.load %arg0[%c0, %c0_0] : memref<4x32xf32, #tpu.memory_space<vmem>>, vector<4x32xf32>
    %1 = arith.truncf %0 : vector<4x32xf32> to vector<4x32xbf16>
    %c0_1 = arith.constant 0 : index
    %c0_2 = arith.constant 0 : index
    %2 = vector.load %arg2[%c0_1, %c0_2] : memref<32x256xbf16, #tpu.memory_space<vmem>>, vector<32x256xbf16>
    %cst = arith.constant dense<0.000000e+00> : vector<4x256xf32>
    %3 = tpu.matmul %1, %2, %cst {dimension_numbers = #tpu.dot_dimension_numbers<[1], [0], [0], [1], [0, 0, 1, 1], [], []>} : vector<4x32xbf16>, vector<32x256xbf16>, vector<4x256xf32> -> vector<4x256xf32>
    %c0_3 = arith.constant 0 : index
    %c0_4 = arith.constant 0 : index
    %4 = vector.load %arg3[%c0_3, %c0_4] : memref<1x256xf32, #tpu.memory_space<vmem>>, vector<1x256xf32>
    %5 = vector.broadcast %4 : vector<1x256xf32> to vector<4x256xf32>
    %6 = arith.addf %3, %5 : vector<4x256xf32>
    %cst_5 = arith.constant dense<0.000000e+00> : vector<256xf32>
    %7 = vector.multi_reduction <add>, %6, %cst_5 [0] : vector<4x256xf32> to vector<256xf32>
    %8 = vector.shape_cast %7 : vector<256xf32> to vector<1x256xf32>
    %cst_6 = arith.constant 4.000000e+00 : f32
    %9 = vector.broadcast %cst_6 : f32 to vector<1x256xf32>
    %10 = arith.divf %8, %9 : vector<1x256xf32>
    %11 = vector.broadcast %10 : vector<1x256xf32> to vector<4x256xf32>
    %12 = arith.subf %6, %11 : vector<4x256xf32>
    %13 = arith.mulf %12, %12 : vector<4x256xf32>
    %cst_7 = arith.constant dense<0.000000e+00> : vector<256xf32>
    %14 = vector.multi_reduction <add>, %13, %cst_7 [0] : vector<4x256xf32> to vector<256xf32>
    %15 = vector.shape_cast %14 : vector<256xf32> to vector<1x256xf32>
    %cst_8 = arith.constant 4.000000e+00 : f32
    %16 = vector.broadcast %cst_8 : f32 to vector<1x256xf32>
    %17 = arith.divf %15, %16 : vector<1x256xf32>
    %18 = vector.broadcast %10 : vector<1x256xf32> to vector<4x256xf32>
    %19 = arith.subf %6, %18 : vector<4x256xf32>
    %cst_9 = arith.constant 9.99999974E-6 : f32
    %20 = vector.broadcast %cst_9 : f32 to vector<1x256xf32>
    %21 = arith.addf %17, %20 : vector<1x256xf32>
    %22 = math.rsqrt %21 : vector<1x256xf32>
    %23 = vector.broadcast %22 : vector<1x256xf32> to vector<4x256xf32>
    %24 = arith.mulf %19, %23 : vector<4x256xf32>
    %c0_10 = arith.constant 0 : index
    %c0_11 = arith.constant 0 : index
    %25 = vector.load %arg4[%c0_10, %c0_11] : memref<1x256xf32, #tpu.memory_space<vmem>>, vector<1x256xf32>
    %26 = vector.broadcast %25 : vector<1x256xf32> to vector<4x256xf32>
    %27 = arith.mulf %24, %26 : vector<4x256xf32>
    %c0_12 = arith.constant 0 : index
    %c0_13 = arith.constant 0 : index
    %28 = vector.load %arg5[%c0_12, %c0_13] : memref<1x256xf32, #tpu.memory_space<vmem>>, vector<1x256xf32>
    %29 = vector.broadcast %28 : vector<1x256xf32> to vector<4x256xf32>
    %30 = arith.addf %27, %29 : vector<4x256xf32>
    %cst_14 = arith.constant 0.000000e+00 : f32
    %31 = vector.broadcast %cst_14 : f32 to vector<4x256xf32>
    %32 = arith.maximumf %30, %31 : vector<4x256xf32>
    %33 = vector.extract_strided_slice %32 {offsets = [0, 0], sizes = [4, 128], strides = [1, 1]} : vector<4x256xf32> to vector<4x128xf32>
    %34 = vector.extract_strided_slice %32 {offsets = [0, 128], sizes = [4, 128], strides = [1, 1]} : vector<4x256xf32> to vector<4x128xf32>
    %c0_15 = arith.constant 0 : index
    %c0_16 = arith.constant 0 : index
    %35 = vector.load %arg1[%c0_15, %c0_16] : memref<32x32xf32, #tpu.memory_space<vmem>>, vector<32x32xf32>
    %36 = arith.truncf %35 : vector<32x32xf32> to vector<32x32xbf16>
    %c0_17 = arith.constant 0 : index
    %c0_18 = arith.constant 0 : index
    %37 = vector.load %arg6[%c0_17, %c0_18] : memref<32x512xbf16, #tpu.memory_space<vmem>>, vector<32x512xbf16>
    %cst_19 = arith.constant dense<0.000000e+00> : vector<32x512xf32>
    %38 = tpu.matmul %36, %37, %cst_19 {dimension_numbers = #tpu.dot_dimension_numbers<[1], [0], [0], [1], [0, 0, 1, 1], [], []>} : vector<32x32xbf16>, vector<32x512xbf16>, vector<32x512xf32> -> vector<32x512xf32>
    %c0_20 = arith.constant 0 : index
    %c0_21 = arith.constant 0 : index
    %39 = vector.load %arg8[%c0_20, %c0_21] : memref<1x512xf32, #tpu.memory_space<vmem>>, vector<1x512xf32>
    %40 = vector.broadcast %39 : vector<1x512xf32> to vector<32x512xf32>
    %41 = arith.addf %38, %40 : vector<32x512xf32>
    %c0_22 = arith.constant 0 : index
    %c0_23 = arith.constant 0 : index
    %42 = vector.load %arg12[%c0_22, %c0_23] : memref<32x512xf32, #tpu.memory_space<vmem>>, vector<32x512xf32>
    tpu.vector_store %arg12[%c0_22, %c0_23], %41 {strides = array<i32>} : memref<32x512xf32, #tpu.memory_space<vmem>>, vector<32x512xf32>,
    %c0_24 = arith.constant 0 : index
    %c0_25 = arith.constant 0 : index
    %43 = vector.load %arg12[%c0_24, %c0_25] : memref<32x512xf32, #tpu.memory_space<vmem>>, vector<4x512xf32>
    %44 = arith.truncf %33 : vector<4x128xf32> to vector<4x128xbf16>
    %c0_26 = arith.constant 0 : index
    %c0_27 = arith.constant 0 : index
    %45 = vector.load %arg7[%c0_26, %c0_27] : memref<128x512xbf16, #tpu.memory_space<vmem>>, vector<128x512xbf16>
    %cst_28 = arith.constant dense<0.000000e+00> : vector<4x512xf32>
    %46 = tpu.matmul %44, %45, %cst_28 {dimension_numbers = #tpu.dot_dimension_numbers<[1], [0], [0], [1], [0, 0, 1, 1], [], []>} : vector<4x128xbf16>, vector<128x512xbf16>, vector<4x512xf32> -> vector<4x512xf32>
    %47 = arith.addf %43, %46 : vector<4x512xf32>
    %48 = vector.extract_strided_slice %47 {offsets = [0, 0], sizes = [4, 256], strides = [1, 1]} : vector<4x512xf32> to vector<4x256xf32>
    %49 = arith.negf %48 : vector<4x256xf32>
    %50 = math.exp %49 : vector<4x256xf32>
    %cst_29 = arith.constant 1.000000e+00 : f32
    %51 = vector.broadcast %cst_29 : f32 to vector<4x256xf32>
    %52 = arith.addf %51, %50 : vector<4x256xf32>
    %53 = arith.divf %51, %52 : vector<4x256xf32>
    %54 = vector.extract_strided_slice %53 {offsets = [0, 0], sizes = [4, 128], strides = [1, 1]} : vector<4x256xf32> to vector<4x128xf32>
    %55 = vector.extract_strided_slice %53 {offsets = [0, 128], sizes = [4, 128], strides = [1, 1]} : vector<4x256xf32> to vector<4x128xf32>
    %56 = vector.extract_strided_slice %47 {offsets = [0, 256], sizes = [4, 128], strides = [1, 1]} : vector<4x512xf32> to vector<4x128xf32>
    %57 = math.tanh %56 : vector<4x128xf32>
    %58 = vector.extract_strided_slice %47 {offsets = [0, 384], sizes = [4, 128], strides = [1, 1]} : vector<4x512xf32> to vector<4x128xf32>
    %59 = arith.negf %58 : vector<4x128xf32>
    %60 = math.exp %59 : vector<4x128xf32>
    %cst_30 = arith.constant 1.000000e+00 : f32
    %61 = vector.broadcast %cst_30 : f32 to vector<4x128xf32>
    %62 = arith.addf %61, %60 : vector<4x128xf32>
    %63 = arith.divf %61, %62 : vector<4x128xf32>
    %64 = arith.mulf %55, %34 : vector<4x128xf32>
    %65 = arith.mulf %54, %57 : vector<4x128xf32>
    %66 = arith.addf %64, %65 : vector<4x128xf32>
    %67 = math.tanh %66 : vector<4x128xf32>
    %68 = arith.mulf %63, %67 : vector<4x128xf32>
    %c0_31 = arith.constant 0 : index
    %c0_32 = arith.constant 0 : index
    %69 = vector.load %arg13[%c0_31, %c0_32] : memref<32x128xf32, #tpu.memory_space<vmem>>, vector<4x128xf32>
    tpu.vector_store %arg13[%c0_31, %c0_32], %68 {strides = array<i32>} : memref<32x128xf32, #tpu.memory_space<vmem>>, vector<4x128xf32>,
    %c4 = arith.constant 4 : index
    %c0_33 = arith.constant 0 : index
    %70 = vector.load %arg12[%c4, %c0_33] : memref<32x512xf32, #tpu.memory_space<vmem>>, vector<4x512xf32>
    %71 = arith.truncf %68 : vector<4x128xf32> to vector<4x128xbf16>
    %c0_34 = arith.constant 0 : index
    %c0_35 = arith.constant 0 : index
    %72 = vector.load %arg7[%c0_34, %c0_35] : memref<128x512xbf16, #tpu.memory_space<vmem>>, vector<128x512xbf16>
    %cst_36 = arith.constant dense<0.000000e+00> : vector<4x512xf32>
    %73 = tpu.matmul %71, %72, %cst_36 {dimension_numbers = #tpu.dot_dimension_numbers<[1], [0], [0], [1], [0, 0, 1, 1], [], []>} : vector<4x128xbf16>, vector<128x512xbf16>, vector<4x512xf32> -> vector<4x512xf32>
    %74 = arith.addf %70, %73 : vector<4x512xf32>
    %75 = vector.extract_strided_slice %74 {offsets = [0, 0], sizes = [4, 256], strides = [1, 1]} : vector<4x512xf32> to vector<4x256xf32>
    %76 = arith.negf %75 : vector<4x256xf32>
    %77 = math.exp %76 : vector<4x256xf32>
    %cst_37 = arith.constant 1.000000e+00 : f32
    %78 = vector.broadcast %cst_37 : f32 to vector<4x256xf32>
    %79 = arith.addf %78, %77 : vector<4x256xf32>
    %80 = arith.divf %78, %79 : vector<4x256xf32>
    %81 = vector.extract_strided_slice %80 {offsets = [0, 0], sizes = [4, 128], strides = [1, 1]} : vector<4x256xf32> to vector<4x128xf32>
    %82 = vector.extract_strided_slice %80 {offsets = [0, 128], sizes = [4, 128], strides = [1, 1]} : vector<4x256xf32> to vector<4x128xf32>
    %83 = vector.extract_strided_slice %74 {offsets = [0, 256], sizes = [4, 128], strides = [1, 1]} : vector<4x512xf32> to vector<4x128xf32>
    %84 = math.tanh %83 : vector<4x128xf32>
    %85 = vector.extract_strided_slice %74 {offsets = [0, 384], sizes = [4, 128], strides = [1, 1]} : vector<4x512xf32> to vector<4x128xf32>
    %86 = arith.negf %85 : vector<4x128xf32>
    %87 = math.exp %86 : vector<4x128xf32>
    %cst_38 = arith.constant 1.000000e+00 : f32
    %88 = vector.broadcast %cst_38 : f32 to vector<4x128xf32>
    %89 = arith.addf %88, %87 : vector<4x128xf32>
    %90 = arith.divf %88, %89 : vector<4x128xf32>
    %91 = arith.mulf %82, %66 : vector<4x128xf32>
    %92 = arith.mulf %81, %84 : vector<4x128xf32>
    %93 = arith.addf %91, %92 : vector<4x128xf32>
    %94 = math.tanh %93 : vector<4x128xf32>
    %95 = arith.mulf %90, %94 : vector<4x128xf32>
    %c4_39 = arith.constant 4 : index
    %c0_40 = arith.constant 0 : index
    %96 = vector.load %arg13[%c4_39, %c0_40] : memref<32x128xf32, #tpu.memory_space<vmem>>, vector<4x128xf32>
    tpu.vector_store %arg13[%c4_39, %c0_40], %95 {strides = array<i32>} : memref<32x128xf32, #tpu.memory_space<vmem>>, vector<4x128xf32>,
    %c8 = arith.constant 8 : index
    %c0_41 = arith.constant 0 : index
    %97 = vector.load %arg12[%c8, %c0_41] : memref<32x512xf32, #tpu.memory_space<vmem>>, vector<4x512xf32>
    %98 = arith.truncf %95 : vector<4x128xf32> to vector<4x128xbf16>
    %c0_42 = arith.constant 0 : index
    %c0_43 = arith.constant 0 : index
    %99 = vector.load %arg7[%c0_42, %c0_43] : memref<128x512xbf16, #tpu.memory_space<vmem>>, vector<128x512xbf16>
    %cst_44 = arith.constant dense<0.000000e+00> : vector<4x512xf32>
    %100 = tpu.matmul %98, %99, %cst_44 {dimension_numbers = #tpu.dot_dimension_numbers<[1], [0], [0], [1], [0, 0, 1, 1], [], []>} : vector<4x128xbf16>, vector<128x512xbf16>, vector<4x512xf32> -> vector<4x512xf32>
    %101 = arith.addf %97, %100 : vector<4x512xf32>
    %102 = vector.extract_strided_slice %101 {offsets = [0, 0], sizes = [4, 256], strides = [1, 1]} : vector<4x512xf32> to vector<4x256xf32>
    %103 = arith.negf %102 : vector<4x256xf32>
    %104 = math.exp %103 : vector<4x256xf32>
    %cst_45 = arith.constant 1.000000e+00 : f32
    %105 = vector.broadcast %cst_45 : f32 to vector<4x256xf32>
    %106 = arith.addf %105, %104 : vector<4x256xf32>
    %107 = arith.divf %105, %106 : vector<4x256xf32>
    %108 = vector.extract_strided_slice %107 {offsets = [0, 0], sizes = [4, 128], strides = [1, 1]} : vector<4x256xf32> to vector<4x128xf32>
    %109 = vector.extract_strided_slice %107 {offsets = [0, 128], sizes = [4, 128], strides = [1, 1]} : vector<4x256xf32> to vector<4x128xf32>
    %110 = vector.extract_strided_slice %101 {offsets = [0, 256], sizes = [4, 128], strides = [1, 1]} : vector<4x512xf32> to vector<4x128xf32>
    %111 = math.tanh %110 : vector<4x128xf32>
    %112 = vector.extract_strided_slice %101 {offsets = [0, 384], sizes = [4, 128], strides = [1, 1]} : vector<4x512xf32> to vector<4x128xf32>
    %113 = arith.negf %112 : vector<4x128xf32>
    %114 = math.exp %113 : vector<4x128xf32>
    %cst_46 = arith.constant 1.000000e+00 : f32
    %115 = vector.broadcast %cst_46 : f32 to vector<4x128xf32>
    %116 = arith.addf %115, %114 : vector<4x128xf32>
    %117 = arith.divf %115, %116 : vector<4x128xf32>
    %118 = arith.mulf %109, %93 : vector<4x128xf32>
    %119 = arith.mulf %108, %111 : vector<4x128xf32>
    %120 = arith.addf %118, %119 : vector<4x128xf32>
    %121 = math.tanh %120 : vector<4x128xf32>
    %122 = arith.mulf %117, %121 : vector<4x128xf32>
    %c8_47 = arith.constant 8 : index
    %c0_48 = arith.constant 0 : index
    %123 = vector.load %arg13[%c8_47, %c0_48] : memref<32x128xf32, #tpu.memory_space<vmem>>, vector<4x128xf32>
    tpu.vector_store %arg13[%c8_47, %c0_48], %122 {strides = array<i32>} : memref<32x128xf32, #tpu.memory_space<vmem>>, vector<4x128xf32>,
    %c12 = arith.constant 12 : index
    %c0_49 = arith.constant 0 : index
    %124 = vector.load %arg12[%c12, %c0_49] : memref<32x512xf32, #tpu.memory_space<vmem>>, vector<4x512xf32>
    %125 = arith.truncf %122 : vector<4x128xf32> to vector<4x128xbf16>
    %c0_50 = arith.constant 0 : index
    %c0_51 = arith.constant 0 : index
    %126 = vector.load %arg7[%c0_50, %c0_51] : memref<128x512xbf16, #tpu.memory_space<vmem>>, vector<128x512xbf16>
    %cst_52 = arith.constant dense<0.000000e+00> : vector<4x512xf32>
    %127 = tpu.matmul %125, %126, %cst_52 {dimension_numbers = #tpu.dot_dimension_numbers<[1], [0], [0], [1], [0, 0, 1, 1], [], []>} : vector<4x128xbf16>, vector<128x512xbf16>, vector<4x512xf32> -> vector<4x512xf32>
    %128 = arith.addf %124, %127 : vector<4x512xf32>
    %129 = vector.extract_strided_slice %128 {offsets = [0, 0], sizes = [4, 256], strides = [1, 1]} : vector<4x512xf32> to vector<4x256xf32>
    %130 = arith.negf %129 : vector<4x256xf32>
    %131 = math.exp %130 : vector<4x256xf32>
    %cst_53 = arith.constant 1.000000e+00 : f32
    %132 = vector.broadcast %cst_53 : f32 to vector<4x256xf32>
    %133 = arith.addf %132, %131 : vector<4x256xf32>
    %134 = arith.divf %132, %133 : vector<4x256xf32>
    %135 = vector.extract_strided_slice %134 {offsets = [0, 0], sizes = [4, 128], strides = [1, 1]} : vector<4x256xf32> to vector<4x128xf32>
    %136 = vector.extract_strided_slice %134 {offsets = [0, 128], sizes = [4, 128], strides = [1, 1]} : vector<4x256xf32> to vector<4x128xf32>
    %137 = vector.extract_strided_slice %128 {offsets = [0, 256], sizes = [4, 128], strides = [1, 1]} : vector<4x512xf32> to vector<4x128xf32>
    %138 = math.tanh %137 : vector<4x128xf32>
    %139 = vector.extract_strided_slice %128 {offsets = [0, 384], sizes = [4, 128], strides = [1, 1]} : vector<4x512xf32> to vector<4x128xf32>
    %140 = arith.negf %139 : vector<4x128xf32>
    %141 = math.exp %140 : vector<4x128xf32>
    %cst_54 = arith.constant 1.000000e+00 : f32
    %142 = vector.broadcast %cst_54 : f32 to vector<4x128xf32>
    %143 = arith.addf %142, %141 : vector<4x128xf32>
    %144 = arith.divf %142, %143 : vector<4x128xf32>
    %145 = arith.mulf %136, %120 : vector<4x128xf32>
    %146 = arith.mulf %135, %138 : vector<4x128xf32>
    %147 = arith.addf %145, %146 : vector<4x128xf32>
    %148 = math.tanh %147 : vector<4x128xf32>
    %149 = arith.mulf %144, %148 : vector<4x128xf32>
    %c12_55 = arith.constant 12 : index
    %c0_56 = arith.constant 0 : index
    %150 = vector.load %arg13[%c12_55, %c0_56] : memref<32x128xf32, #tpu.memory_space<vmem>>, vector<4x128xf32>
    tpu.vector_store %arg13[%c12_55, %c0_56], %149 {strides = array<i32>} : memref<32x128xf32, #tpu.memory_space<vmem>>, vector<4x128xf32>,
    %c16 = arith.constant 16 : index
    %c0_57 = arith.constant 0 : index
    %151 = vector.load %arg12[%c16, %c0_57] : memref<32x512xf32, #tpu.memory_space<vmem>>, vector<4x512xf32>
    %152 = arith.truncf %149 : vector<4x128xf32> to vector<4x128xbf16>
    %c0_58 = arith.constant 0 : index
    %c0_59 = arith.constant 0 : index
    %153 = vector.load %arg7[%c0_58, %c0_59] : memref<128x512xbf16, #tpu.memory_space<vmem>>, vector<128x512xbf16>
    %cst_60 = arith.constant dense<0.000000e+00> : vector<4x512xf32>
    %154 = tpu.matmul %152, %153, %cst_60 {dimension_numbers = #tpu.dot_dimension_numbers<[1], [0], [0], [1], [0, 0, 1, 1], [], []>} : vector<4x128xbf16>, vector<128x512xbf16>, vector<4x512xf32> -> vector<4x512xf32>
    %155 = arith.addf %151, %154 : vector<4x512xf32>
    %156 = vector.extract_strided_slice %155 {offsets = [0, 0], sizes = [4, 256], strides = [1, 1]} : vector<4x512xf32> to vector<4x256xf32>
    %157 = arith.negf %156 : vector<4x256xf32>
    %158 = math.exp %157 : vector<4x256xf32>
    %cst_61 = arith.constant 1.000000e+00 : f32
    %159 = vector.broadcast %cst_61 : f32 to vector<4x256xf32>
    %160 = arith.addf %159, %158 : vector<4x256xf32>
    %161 = arith.divf %159, %160 : vector<4x256xf32>
    %162 = vector.extract_strided_slice %161 {offsets = [0, 0], sizes = [4, 128], strides = [1, 1]} : vector<4x256xf32> to vector<4x128xf32>
    %163 = vector.extract_strided_slice %161 {offsets = [0, 128], sizes = [4, 128], strides = [1, 1]} : vector<4x256xf32> to vector<4x128xf32>
    %164 = vector.extract_strided_slice %155 {offsets = [0, 256], sizes = [4, 128], strides = [1, 1]} : vector<4x512xf32> to vector<4x128xf32>
    %165 = math.tanh %164 : vector<4x128xf32>
    %166 = vector.extract_strided_slice %155 {offsets = [0, 384], sizes = [4, 128], strides = [1, 1]} : vector<4x512xf32> to vector<4x128xf32>
    %167 = arith.negf %166 : vector<4x128xf32>
    %168 = math.exp %167 : vector<4x128xf32>
    %cst_62 = arith.constant 1.000000e+00 : f32
    %169 = vector.broadcast %cst_62 : f32 to vector<4x128xf32>
    %170 = arith.addf %169, %168 : vector<4x128xf32>
    %171 = arith.divf %169, %170 : vector<4x128xf32>
    %172 = arith.mulf %163, %147 : vector<4x128xf32>
    %173 = arith.mulf %162, %165 : vector<4x128xf32>
    %174 = arith.addf %172, %173 : vector<4x128xf32>
    %175 = math.tanh %174 : vector<4x128xf32>
    %176 = arith.mulf %171, %175 : vector<4x128xf32>
    %c16_63 = arith.constant 16 : index
    %c0_64 = arith.constant 0 : index
    %177 = vector.load %arg13[%c16_63, %c0_64] : memref<32x128xf32, #tpu.memory_space<vmem>>, vector<4x128xf32>
    tpu.vector_store %arg13[%c16_63, %c0_64], %176 {strides = array<i32>} : memref<32x128xf32, #tpu.memory_space<vmem>>, vector<4x128xf32>,
    %c20 = arith.constant 20 : index
    %c0_65 = arith.constant 0 : index
    %178 = vector.load %arg12[%c20, %c0_65] : memref<32x512xf32, #tpu.memory_space<vmem>>, vector<4x512xf32>
    %179 = arith.truncf %176 : vector<4x128xf32> to vector<4x128xbf16>
    %c0_66 = arith.constant 0 : index
    %c0_67 = arith.constant 0 : index
    %180 = vector.load %arg7[%c0_66, %c0_67] : memref<128x512xbf16, #tpu.memory_space<vmem>>, vector<128x512xbf16>
    %cst_68 = arith.constant dense<0.000000e+00> : vector<4x512xf32>
    %181 = tpu.matmul %179, %180, %cst_68 {dimension_numbers = #tpu.dot_dimension_numbers<[1], [0], [0], [1], [0, 0, 1, 1], [], []>} : vector<4x128xbf16>, vector<128x512xbf16>, vector<4x512xf32> -> vector<4x512xf32>
    %182 = arith.addf %178, %181 : vector<4x512xf32>
    %183 = vector.extract_strided_slice %182 {offsets = [0, 0], sizes = [4, 256], strides = [1, 1]} : vector<4x512xf32> to vector<4x256xf32>
    %184 = arith.negf %183 : vector<4x256xf32>
    %185 = math.exp %184 : vector<4x256xf32>
    %cst_69 = arith.constant 1.000000e+00 : f32
    %186 = vector.broadcast %cst_69 : f32 to vector<4x256xf32>
    %187 = arith.addf %186, %185 : vector<4x256xf32>
    %188 = arith.divf %186, %187 : vector<4x256xf32>
    %189 = vector.extract_strided_slice %188 {offsets = [0, 0], sizes = [4, 128], strides = [1, 1]} : vector<4x256xf32> to vector<4x128xf32>
    %190 = vector.extract_strided_slice %188 {offsets = [0, 128], sizes = [4, 128], strides = [1, 1]} : vector<4x256xf32> to vector<4x128xf32>
    %191 = vector.extract_strided_slice %182 {offsets = [0, 256], sizes = [4, 128], strides = [1, 1]} : vector<4x512xf32> to vector<4x128xf32>
    %192 = math.tanh %191 : vector<4x128xf32>
    %193 = vector.extract_strided_slice %182 {offsets = [0, 384], sizes = [4, 128], strides = [1, 1]} : vector<4x512xf32> to vector<4x128xf32>
    %194 = arith.negf %193 : vector<4x128xf32>
    %195 = math.exp %194 : vector<4x128xf32>
    %cst_70 = arith.constant 1.000000e+00 : f32
    %196 = vector.broadcast %cst_70 : f32 to vector<4x128xf32>
    %197 = arith.addf %196, %195 : vector<4x128xf32>
    %198 = arith.divf %196, %197 : vector<4x128xf32>
    %199 = arith.mulf %190, %174 : vector<4x128xf32>
    %200 = arith.mulf %189, %192 : vector<4x128xf32>
    %201 = arith.addf %199, %200 : vector<4x128xf32>
    %202 = math.tanh %201 : vector<4x128xf32>
    %203 = arith.mulf %198, %202 : vector<4x128xf32>
    %c20_71 = arith.constant 20 : index
    %c0_72 = arith.constant 0 : index
    %204 = vector.load %arg13[%c20_71, %c0_72] : memref<32x128xf32, #tpu.memory_space<vmem>>, vector<4x128xf32>
    tpu.vector_store %arg13[%c20_71, %c0_72], %203 {strides = array<i32>} : memref<32x128xf32, #tpu.memory_space<vmem>>, vector<4x128xf32>,
    %c24 = arith.constant 24 : index
    %c0_73 = arith.constant 0 : index
    %205 = vector.load %arg12[%c24, %c0_73] : memref<32x512xf32, #tpu.memory_space<vmem>>, vector<4x512xf32>
    %206 = arith.truncf %203 : vector<4x128xf32> to vector<4x128xbf16>
    %c0_74 = arith.constant 0 : index
    %c0_75 = arith.constant 0 : index
    %207 = vector.load %arg7[%c0_74, %c0_75] : memref<128x512xbf16, #tpu.memory_space<vmem>>, vector<128x512xbf16>
    %cst_76 = arith.constant dense<0.000000e+00> : vector<4x512xf32>
    %208 = tpu.matmul %206, %207, %cst_76 {dimension_numbers = #tpu.dot_dimension_numbers<[1], [0], [0], [1], [0, 0, 1, 1], [], []>} : vector<4x128xbf16>, vector<128x512xbf16>, vector<4x512xf32> -> vector<4x512xf32>
    %209 = arith.addf %205, %208 : vector<4x512xf32>
    %210 = vector.extract_strided_slice %209 {offsets = [0, 0], sizes = [4, 256], strides = [1, 1]} : vector<4x512xf32> to vector<4x256xf32>
    %211 = arith.negf %210 : vector<4x256xf32>
    %212 = math.exp %211 : vector<4x256xf32>
    %cst_77 = arith.constant 1.000000e+00 : f32
    %213 = vector.broadcast %cst_77 : f32 to vector<4x256xf32>
    %214 = arith.addf %213, %212 : vector<4x256xf32>
    %215 = arith.divf %213, %214 : vector<4x256xf32>
    %216 = vector.extract_strided_slice %215 {offsets = [0, 0], sizes = [4, 128], strides = [1, 1]} : vector<4x256xf32> to vector<4x128xf32>
    %217 = vector.extract_strided_slice %215 {offsets = [0, 128], sizes = [4, 128], strides = [1, 1]} : vector<4x256xf32> to vector<4x128xf32>
    %218 = vector.extract_strided_slice %209 {offsets = [0, 256], sizes = [4, 128], strides = [1, 1]} : vector<4x512xf32> to vector<4x128xf32>
    %219 = math.tanh %218 : vector<4x128xf32>
    %220 = vector.extract_strided_slice %209 {offsets = [0, 384], sizes = [4, 128], strides = [1, 1]} : vector<4x512xf32> to vector<4x128xf32>
    %221 = arith.negf %220 : vector<4x128xf32>
    %222 = math.exp %221 : vector<4x128xf32>
    %cst_78 = arith.constant 1.000000e+00 : f32
    %223 = vector.broadcast %cst_78 : f32 to vector<4x128xf32>
    %224 = arith.addf %223, %222 : vector<4x128xf32>
    %225 = arith.divf %223, %224 : vector<4x128xf32>
    %226 = arith.mulf %217, %201 : vector<4x128xf32>
    %227 = arith.mulf %216, %219 : vector<4x128xf32>
    %228 = arith.addf %226, %227 : vector<4x128xf32>
    %229 = math.tanh %228 : vector<4x128xf32>
    %230 = arith.mulf %225, %229 : vector<4x128xf32>
    %c24_79 = arith.constant 24 : index
    %c0_80 = arith.constant 0 : index
    %231 = vector.load %arg13[%c24_79, %c0_80] : memref<32x128xf32, #tpu.memory_space<vmem>>, vector<4x128xf32>
    tpu.vector_store %arg13[%c24_79, %c0_80], %230 {strides = array<i32>} : memref<32x128xf32, #tpu.memory_space<vmem>>, vector<4x128xf32>,
    %c28 = arith.constant 28 : index
    %c0_81 = arith.constant 0 : index
    %232 = vector.load %arg12[%c28, %c0_81] : memref<32x512xf32, #tpu.memory_space<vmem>>, vector<4x512xf32>
    %233 = arith.truncf %230 : vector<4x128xf32> to vector<4x128xbf16>
    %c0_82 = arith.constant 0 : index
    %c0_83 = arith.constant 0 : index
    %234 = vector.load %arg7[%c0_82, %c0_83] : memref<128x512xbf16, #tpu.memory_space<vmem>>, vector<128x512xbf16>
    %cst_84 = arith.constant dense<0.000000e+00> : vector<4x512xf32>
    %235 = tpu.matmul %233, %234, %cst_84 {dimension_numbers = #tpu.dot_dimension_numbers<[1], [0], [0], [1], [0, 0, 1, 1], [], []>} : vector<4x128xbf16>, vector<128x512xbf16>, vector<4x512xf32> -> vector<4x512xf32>
    %236 = arith.addf %232, %235 : vector<4x512xf32>
    %237 = vector.extract_strided_slice %236 {offsets = [0, 0], sizes = [4, 256], strides = [1, 1]} : vector<4x512xf32> to vector<4x256xf32>
    %238 = arith.negf %237 : vector<4x256xf32>
    %239 = math.exp %238 : vector<4x256xf32>
    %cst_85 = arith.constant 1.000000e+00 : f32
    %240 = vector.broadcast %cst_85 : f32 to vector<4x256xf32>
    %241 = arith.addf %240, %239 : vector<4x256xf32>
    %242 = arith.divf %240, %241 : vector<4x256xf32>
    %243 = vector.extract_strided_slice %242 {offsets = [0, 0], sizes = [4, 128], strides = [1, 1]} : vector<4x256xf32> to vector<4x128xf32>
    %244 = vector.extract_strided_slice %242 {offsets = [0, 128], sizes = [4, 128], strides = [1, 1]} : vector<4x256xf32> to vector<4x128xf32>
    %245 = vector.extract_strided_slice %236 {offsets = [0, 256], sizes = [4, 128], strides = [1, 1]} : vector<4x512xf32> to vector<4x128xf32>
    %246 = math.tanh %245 : vector<4x128xf32>
    %247 = vector.extract_strided_slice %236 {offsets = [0, 384], sizes = [4, 128], strides = [1, 1]} : vector<4x512xf32> to vector<4x128xf32>
    %248 = arith.negf %247 : vector<4x128xf32>
    %249 = math.exp %248 : vector<4x128xf32>
    %cst_86 = arith.constant 1.000000e+00 : f32
    %250 = vector.broadcast %cst_86 : f32 to vector<4x128xf32>
    %251 = arith.addf %250, %249 : vector<4x128xf32>
    %252 = arith.divf %250, %251 : vector<4x128xf32>
    %253 = arith.mulf %244, %228 : vector<4x128xf32>
    %254 = arith.mulf %243, %246 : vector<4x128xf32>
    %255 = arith.addf %253, %254 : vector<4x128xf32>
    %256 = math.tanh %255 : vector<4x128xf32>
    %257 = arith.mulf %252, %256 : vector<4x128xf32>
    %c28_87 = arith.constant 28 : index
    %c0_88 = arith.constant 0 : index
    %258 = vector.load %arg13[%c28_87, %c0_88] : memref<32x128xf32, #tpu.memory_space<vmem>>, vector<4x128xf32>
    tpu.vector_store %arg13[%c28_87, %c0_88], %257 {strides = array<i32>} : memref<32x128xf32, #tpu.memory_space<vmem>>, vector<4x128xf32>,
    %c0_89 = arith.constant 0 : index
    %c0_90 = arith.constant 0 : index
    %259 = vector.load %arg13[%c0_89, %c0_90] : memref<32x128xf32, #tpu.memory_space<vmem>>, vector<32x128xf32>
    %cst_91 = arith.constant dense<0.000000e+00> : vector<128xf32>
    %260 = vector.multi_reduction <add>, %259, %cst_91 [0] : vector<32x128xf32> to vector<128xf32>
    %261 = vector.shape_cast %260 : vector<128xf32> to vector<1x128xf32>
    %cst_92 = arith.constant 3.200000e+01 : f32
    %262 = vector.broadcast %cst_92 : f32 to vector<1x128xf32>
    %263 = arith.divf %261, %262 : vector<1x128xf32>
    %264 = vector.broadcast %263 : vector<1x128xf32> to vector<32x128xf32>
    %265 = arith.subf %259, %264 : vector<32x128xf32>
    %266 = arith.mulf %265, %265 : vector<32x128xf32>
    %cst_93 = arith.constant dense<0.000000e+00> : vector<128xf32>
    %267 = vector.multi_reduction <add>, %266, %cst_93 [0] : vector<32x128xf32> to vector<128xf32>
    %268 = vector.shape_cast %267 : vector<128xf32> to vector<1x128xf32>
    %cst_94 = arith.constant 3.200000e+01 : f32
    %269 = vector.broadcast %cst_94 : f32 to vector<1x128xf32>
    %270 = arith.divf %268, %269 : vector<1x128xf32>
    %271 = vector.broadcast %263 : vector<1x128xf32> to vector<32x128xf32>
    %272 = arith.subf %259, %271 : vector<32x128xf32>
    %cst_95 = arith.constant 9.99999974E-6 : f32
    %273 = vector.broadcast %cst_95 : f32 to vector<1x128xf32>
    %274 = arith.addf %270, %273 : vector<1x128xf32>
    %275 = math.rsqrt %274 : vector<1x128xf32>
    %276 = vector.broadcast %275 : vector<1x128xf32> to vector<32x128xf32>
    %277 = arith.mulf %272, %276 : vector<32x128xf32>
    %278 = arith.truncf %277 : vector<32x128xf32> to vector<32x128xbf16>
    %c0_96 = arith.constant 0 : index
    %c0_97 = arith.constant 0 : index
    %279 = vector.load %arg9[%c0_96, %c0_97] : memref<128x32xbf16, #tpu.memory_space<vmem>>, vector<128x32xbf16>
    %cst_98 = arith.constant dense<0.000000e+00> : vector<32x32xf32>
    %280 = tpu.matmul %278, %279, %cst_98 {dimension_numbers = #tpu.dot_dimension_numbers<[1], [0], [0], [1], [0, 0, 1, 1], [], []>} : vector<32x128xbf16>, vector<128x32xbf16>, vector<32x32xf32> -> vector<32x32xf32>
    %c0_99 = arith.constant 0 : index
    %c0_100 = arith.constant 0 : index
    %281 = vector.load %arg10[%c0_99, %c0_100] : memref<1x32xf32, #tpu.memory_space<vmem>>, vector<1x32xf32>
    %282 = vector.broadcast %281 : vector<1x32xf32> to vector<32x32xf32>
    %283 = arith.addf %280, %282 : vector<32x32xf32>
    %cst_101 = arith.constant dense<0xFF800000> : vector<32xf32>
    %284 = vector.multi_reduction <maximumf>, %283, %cst_101 [1] : vector<32x32xf32> to vector<32xf32>
    %285 = vector.shape_cast %284 : vector<32xf32> to vector<32x1xf32>
    %286 = vector.broadcast %285 : vector<32x1xf32> to vector<32x32xf32>
    %287 = arith.subf %283, %286 : vector<32x32xf32>
    %288 = math.exp %287 : vector<32x32xf32>
    %cst_102 = arith.constant dense<0.000000e+00> : vector<32xf32>
    %289 = vector.multi_reduction <add>, %288, %cst_102 [1] : vector<32x32xf32> to vector<32xf32>
    %290 = vector.shape_cast %289 : vector<32xf32> to vector<32x1xf32>
    %291 = math.log %290 : vector<32x1xf32>
    %292 = vector.broadcast %291 : vector<32x1xf32> to vector<32x32xf32>
    %293 = arith.subf %287, %292 : vector<32x32xf32>
    %c0_103 = arith.constant 0 : index
    %c0_104 = arith.constant 0 : index
    %294 = vector.load %arg11[%c0_103, %c0_104] : memref<32x32xf32, #tpu.memory_space<vmem>>, vector<32x32xf32>
    tpu.vector_store %arg11[%c0_103, %c0_104], %293 {strides = array<i32>} : memref<32x32xf32, #tpu.memory_space<vmem>>, vector<32x32xf32>,
    return
  }
}

</mosaic_0001>

<llo_original>
// kernel: build_model_not_mols_forward.1
$region0: #{build_model_not_mols_forward.1}
  #allocation0 [shape = 'u32[]', space=smem, size = 0x4, offset = 0x4, fixed_abs, tag = 'smem constant byte address 0x4 - core index']
  #allocation1 [shape = 'u32[144,128]{1,0:T(1,128)}', space=vmem, size = 0x12000, scoped, tag = 'internal scratch']
  #allocation2 [shape = 'f32[32,512]{1,0:T(8,128)}', space=vmem, size = 0x10000, scoped, tag = 'scratch operand']
  #allocation3 [shape = 'f32[32,128]{1,0:T(8,128)}', space=vmem, size = 0x4000, scoped, tag = 'scratch operand']
  %s0 = inlined_call_operand.vmem [shape: f32[4,32], index: 0, kind: input, shape index: {}]
  %s1 = inlined_call_operand.vmem [shape: f32[32,32], index: 1, kind: input, shape index: {}]
  %s2 = inlined_call_operand.vmem [shape: bf16[32,256], index: 2, kind: input, shape index: {}]
  %s3 = inlined_call_operand.vmem [shape: f32[1,256], index: 3, kind: input, shape index: {}]
  %s4 = inlined_call_operand.vmem [shape: f32[1,256], index: 4, kind: input, shape index: {}]
  %s5 = inlined_call_operand.vmem [shape: f32[1,256], index: 5, kind: input, shape index: {}]
  %s6 = inlined_call_operand.vmem [shape: bf16[32,512], index: 6, kind: input, shape index: {}]
  %s7 = inlined_call_operand.hbm [shape: bf16[128,512], index: 7, kind: input, shape index: {}]
  %s8 = inlined_call_operand.vmem [shape: f32[1,512], index: 8, kind: input, shape index: {}]
  %s9 = inlined_call_operand.vmem [shape: bf16[128,32], index: 9, kind: input, shape index: {}]
  %s10 = inlined_call_operand.vmem [shape: f32[1,32], index: 10, kind: input, shape index: {}]
  %s11 = inlined_call_operand.vmem [shape: f32[32,32], index: 11, kind: output, shape index: {}]
  %s12 = sld [smem:[#allocation0]]
  $region58: #{build_model_not_mols_forward.1} parent=0
    _
  %s14 = ssub.s32 1, %s12
  %s15 = scalar_select 0, %s14, %s12
  $region1: #{build_model_not_mols_forward.1} parent=0
    #allocation4 [shape = 'u8[131072]{0}', space=vmem, size = 0x20000, scoped, tag = 'input window, operand 7, single buffered']
    #allocation5 [shape = 's32[1]{0}', space=sflag, size = 0x4, scoped, tag = 'scoped memory for build_model_not_mols_forward.1']
    %16 = vsyncpa [#allocation5], 0
    // Predicated region
    $region2: #{build_model_not_mols_forward.1} parent=1 // pred_check
      _
    $region3: #{build_model_not_mols_forward.1} parent=1 // pred_check_branch
      %18 = sbr.rel (0) target = $region5
    $region4: #{build_model_not_mols_forward.1} parent=1 // pred_region
      _
    $region5: #{build_model_not_mols_forward.1} parent=1 // pred_fallthru
      _
    // Predicated region
    $region6: #{build_model_not_mols_forward.1} parent=1 // pred_check
      _
    $region7: #{build_model_not_mols_forward.1} parent=1 // pred_check_branch
      %20 = sbr.rel (0) target = $region9
    $region8: #{build_model_not_mols_forward.1} parent=1 // pred_region
      _
    $region9: #{build_model_not_mols_forward.1} parent=1 // pred_fallthru
      _
    // Predicated region
    $region10: #{build_model_not_mols_forward.1} parent=1 // pred_check
      _
    $region11: #{build_model_not_mols_forward.1} parent=1 // pred_check_branch
      %22 = sbr.rel (0) target = $region13
    $region12: #{build_model_not_mols_forward.1} parent=1 // pred_region
      _
    $region13: #{build_model_not_mols_forward.1} parent=1 // pred_fallthru
      _
    // Predicated region
    $region14: #{build_model_not_mols_forward.1} parent=1 // pred_check
      _
    $region15: #{build_model_not_mols_forward.1} parent=1 // pred_check_branch
      %24 = sbr.rel (0) target = $region17
    $region16: #{build_model_not_mols_forward.1} parent=1 // pred_region
      _
    $region17: #{build_model_not_mols_forward.1} parent=1 // pred_fallthru
      _
    // Predicated region
    $region18: #{build_model_not_mols_forward.1} parent=1 // pred_check
      _
    $region19: #{build_model_not_mols_forward.1} parent=1 // pred_check_branch
      %26 = sbr.rel (0) target = $region21
    $region20: #{build_model_not_mols_forward.1} parent=1 // pred_region
      _
    $region21: #{build_model_not_mols_forward.1} parent=1 // pred_fallthru
      _
    // Predicated region
    $region22: #{build_model_not_mols_forward.1} parent=1 // pred_check
      _
    $region23: #{build_model_not_mols_forward.1} parent=1 // pred_check_branch
      %28 = sbr.rel (0) target = $region25
    $region24: #{build_model_not_mols_forward.1} parent=1 // pred_region
      _
    $region25: #{build_model_not_mols_forward.1} parent=1 // pred_fallthru
      _
    // Predicated region
    $region26: #{build_model_not_mols_forward.1} parent=1 // pred_check
      _
    $region27: #{build_model_not_mols_forward.1} parent=1 // pred_check_branch
      %30 = sbr.rel (0) target = $region29
    $region28: #{build_model_not_mols_forward.1} parent=1 // pred_region
      _
    $region29: #{build_model_not_mols_forward.1} parent=1 // pred_fallthru
      _
    // Predicated region
    $region30: #{build_model_not_mols_forward.1} parent=1 // pred_check
      _
    $region31: #{build_model_not_mols_forward.1} parent=1 // pred_check_branch
      %32 = sbr.rel (0) target = $region33
    $region32: #{build_model_not_mols_forward.1} parent=1 // pred_region
      %s34 = ssub.s32 4096, 4096
      %35 = vsyncadd [#allocation5], %s34
      %s36 = sshll.u32 [#allocation4], 4
      %s37 = int_to_ptr.vmem [resolvable:$true] %s36
      %42 = dma.hbm_to_vmem [thread:$0]  %s7, 4096, %s37, [#allocation5], 256, 256, 16
    $region33: #{build_model_not_mols_forward.1} parent=1 // pred_fallthru
      _
    // Predicated region
    $region34: #{build_model_not_mols_forward.1} parent=1 // pred_check
      _
    $region35: #{build_model_not_mols_forward.1} parent=1 // pred_check_branch
      %44 = sbr.rel (0) target = $region37
    $region36: #{build_model_not_mols_forward.1} parent=1 // pred_region
      _
    $region37: #{build_model_not_mols_forward.1} parent=1 // pred_fallthru
      _
    // Predicated region
    $region38: #{build_model_not_mols_forward.1} parent=1 // pred_check
      _
    $region39: #{build_model_not_mols_forward.1} parent=1 // pred_check_branch
      %46 = sbr.rel (0) target = $region41
    $region40: #{build_model_not_mols_forward.1} parent=1 // pred_region
      _
    $region41: #{build_model_not_mols_forward.1} parent=1 // pred_fallthru
      _
    // Predicated region
    $region42: #{build_model_not_mols_forward.1} parent=1 // pred_check
      _
    $region43: #{build_model_not_mols_forward.1} parent=1 // pred_check_branch
      %48 = sbr.rel (0) target = $region45
    $region44: #{build_model_not_mols_forward.1} parent=1 // pred_region
      _
    $region45: #{build_model_not_mols_forward.1} parent=1 // pred_fallthru
      _
    // Predicated region
    $region46: #{build_model_not_mols_forward.1} parent=1 // pred_check
      _
    $region47: #{build_model_not_mols_forward.1} parent=1 // pred_check_branch
      %50 = sbr.rel (0) target = $region49
    $region48: #{build_model_not_mols_forward.1} parent=1 // pred_region
      %51 = dma.done [#allocation5], 4096
    $region49: #{build_model_not_mols_forward.1} parent=1 // pred_fallthru
      _
    %v53 = vld [vmem:[%s0] sm:$0xf]
    %v54 = vpack.c.bf16 %v53, %v53
    %v55 = vld [vmem:[%s2] sm:$0xff]
    %v56 = vld [vmem:[%s2 + $0x8] sm:$0xff]
    %v57 = vld [vmem:[%s2 + $0x10] sm:$0xff]
    %v58 = vld [vmem:[%s2 + $0x18] sm:$0xff]
    %v59 = vld [vmem:[%s3] sm:$0x3]
    %v61 = vlaneseq
    %v62 = vshrl.u32 %v61, 7
    %v63 = vsub.s32 0, %v62
    %v64 = vrot.slane %v59, %v63
    %v65 = vlaneseq
    %v66 = vshrl.u32 %v65, 7
    %v67 = vsub.s32 1, %v66
    %v68 = vrot.slane %v59, %v67
    %v75 = vunpack.c.l.b16 %v55
    %v76 = vunpack.c.h.b16 %v55
    %v77 = vunpack.c.l.b16 %v56
    %v78 = vunpack.c.h.b16 %v56
    %v79 = vunpack.c.l.b16 %v57
    %v80 = vunpack.c.h.b16 %v57
    %v81 = vunpack.c.l.b16 %v58
    %v82 = vunpack.c.h.b16 %v58
    %v83 = vpack.c.b16 %v77, %v75
    %v84 = vpack.c.b16 %v78, %v76
    %v85 = vpack.c.b16 %v81, %v79
    %v86 = vpack.c.b16 %v82, %v80
    %vm91 = vcmask 261120
    %v93 = vsel %vm91, %v54, 0
    %95 = vmatprep.subr.bf16.mxu0 %v84
    %96 = vmatpush1.bf16.msra.mxu0 %v83
    %97 = vmatprep.subr.bf16.mxu0 %v86
    %98 = vmatpush1.bf16.msra.mxu0 %v85
    %99 = vmatprep.subr.bf16.mxu0 0
    %100 = vmatpush1.bf16.msra.mxu0 0
    %101 = vmatprep.subr.bf16.mxu0 0
    %102 = vmatpush1.bf16.msra.mxu0 0
    %103 = vmatprep.subr.bf16.mxu0 0
    %104 = vmatpush1.bf16.msra.mxu0 0
    %105 = vmatprep.subr.bf16.mxu0 0
    %106 = vmatpush1.bf16.msra.mxu0 0
    %107 = vmatprep.subr.bf16.mxu0 0
    %108 = vmatpush1.bf16.msra.mxu0 0
    %109 = vmatprep.subr.bf16.mxu0 0
    %110 = vmatpush1.bf16.msra.mxu0 0
    %111 = vmatprep.subr.bf16.mxu0 0
    %112 = vmatpush1.bf16.msra.mxu0 0
    %113 = vmatprep.subr.bf16.mxu0 0
    %114 = vmatpush1.bf16.msra.mxu0 0
    %115 = vmatprep.subr.bf16.mxu0 0
    %116 = vmatpush1.bf16.msra.mxu0 0
    %117 = vmatprep.subr.bf16.mxu0 0
    %118 = vmatpush1.bf16.msra.mxu0 0
    %119 = vmatprep.subr.bf16.mxu0 0
    %120 = vmatpush1.bf16.msra.mxu0 0
    %121 = vmatprep.subr.bf16.mxu0 0
    %122 = vmatpush1.bf16.msra.mxu0 0
    %123 = vmatprep.subr.bf16.mxu0 0
    %124 = vmatpush1.bf16.msra.mxu0 0
    %125 = vmatprep.subr.bf16.mxu0 0
    %126 = vmatpush1.bf16.msra.mxu0 0
    %127 = vmatprep.mubr.bf16.mxu0 0
    %128 = vmatmul.mubr.bf16.gmra.mrb[0].mxu0 %v93
    %v129 = vpop.f32.mrb[0].mxu0
    %v130 = vadd.f32 %v64, %v129
    %v131 = vpop.f32.mrb[0].mxu0
    %v132 = vadd.f32 %v68, %v131
    %v133 = vpop.f32.mrb[0].mxu0
    %v134 = vpop.f32.mrb[0].mxu0
    %135 = vdwg.mxu0
    %vm136 = vcmask 1043456
    %v137 = vsel %vm136, %v130, 0.0
    %v138 = vrot.slane %v137, 4
    %v139 = vadd.f32 %v137, %v138
    %v140 = vrot.slane %v139, 2
    %v141 = vadd.f32 %v139, %v140
    %v142 = vrot.slane %v141, 1
    %v143 = vadd.f32 %v141, %v142
    %v144 = vsel %vm136, %v132, 0.0
    %v145 = vrot.slane %v144, 4
    %v146 = vadd.f32 %v144, %v145
    %v147 = vrot.slane %v146, 2
    %v148 = vadd.f32 %v146, %v147
    %v149 = vrot.slane %v148, 1
    %v150 = vadd.f32 %v148, %v149
    %v151 = vrcp.pop 4.0
    %v152 = vmul.f32 %v143, %v151
    %v153 = vmul.f32 %v150, %v151
    %v154 = vsub.f32 %v130, %v152
    %v155 = vsub.f32 %v132, %v153
    %v156 = vmul.f32 %v154, %v154
    %v157 = vmul.f32 %v155, %v155
    %v158 = vsel %vm136, %v156, 0.0
    %v159 = vrot.slane %v158, 4
    %v160 = vadd.f32 %v158, %v159
    %v161 = vrot.slane %v160, 2
    %v162 = vadd.f32 %v160, %v161
    %v163 = vrot.slane %v162, 1
    %v164 = vadd.f32 %v162, %v163
    %v165 = vsel %vm136, %v157, 0.0
    %v166 = vrot.slane %v165, 4
    %v167 = vadd.f32 %v165, %v166
    %v168 = vrot.slane %v167, 2
    %v169 = vadd.f32 %v167, %v168
    %v170 = vrot.slane %v169, 1
    %v171 = vadd.f32 %v169, %v170
    %v172 = vmul.f32 %v164, %v151
    %v173 = vmul.f32 %v171, %v151
    %v174 = vadd.f32 %v172, 1e-05
    %v175 = vadd.f32 %v173, 1e-05
    %v176 = vrsqrt.pop %v174
    %v177 = vrsqrt.pop %v175
    %v178 = vmul.f32 %v154, %v176
    %v179 = vmul.f32 %v155, %v177
    %v180 = vld [vmem:[%s4] sm:$0x3]
    %v182 = vlaneseq
    %v183 = vshrl.u32 %v182, 7
    %v184 = vsub.s32 0, %v183
    %v185 = vrot.slane %v180, %v184
    %v186 = vlaneseq
    %v187 = vshrl.u32 %v186, 7
    %v188 = vsub.s32 1, %v187
    %v189 = vrot.slane %v180, %v188
    %v192 = vmul.f32 %v178, %v185
    %v193 = vmul.f32 %v179, %v189
    %v194 = vld [vmem:[%s5] sm:$0x3]
    %v196 = vlaneseq
    %v197 = vshrl.u32 %v196, 7
    %v198 = vsub.s32 0, %v197
    %v199 = vrot.slane %v194, %v198
    %v200 = vlaneseq
    %v201 = vshrl.u32 %v200, 7
    %v202 = vsub.s32 1, %v201
    %v203 = vrot.slane %v194, %v202
    %v206 = vadd.f32 %v192, %v199
    %v207 = vadd.f32 %v193, %v203
    %v208 = vmax.f32 %v206, 0.0
    %v209 = vmax.f32 %v207, 0.0
    %v210 = vld [vmem:[%s1] sm:$0xff]
    %v211 = vld [vmem:[%s1 + $0x8] sm:$0xff]
    %v212 = vld [vmem:[%s1 + $0x10] sm:$0xff]
    %v213 = vld [vmem:[%s1 + $0x18] sm:$0xff]
    %v214 = vpack.c.bf16 %v211, %v210
    %v215 = vpack.c.bf16 %v213, %v212
    %v216 = vld [vmem:[%s6] sm:$0xff]
    %v217 = vld [vmem:[%s6 + $0x8] sm:$0xff]
    %v218 = vld [vmem:[%s6 + $0x10] sm:$0xff]
    %v219 = vld [vmem:[%s6 + $0x18] sm:$0xff]
    %v220 = vld [vmem:[%s6 + $0x20] sm:$0xff]
    %v221 = vld [vmem:[%s6 + $0x28] sm:$0xff]
    %v222 = vld [vmem:[%s6 + $0x30] sm:$0xff]
    %v223 = vld [vmem:[%s6 + $0x38] sm:$0xff]
    %v224 = vld [vmem:[%s8] sm:$0xf]
    %v226 = vlaneseq
    %v227 = vshrl.u32 %v226, 7
    %v228 = vsub.s32 0, %v227
    %v229 = vrot.slane %v224, %v228
    %v230 = vlaneseq
    %v231 = vshrl.u32 %v230, 7
    %v232 = vsub.s32 1, %v231
    %v233 = vrot.slane %v224, %v232
    %v234 = vlaneseq
    %v235 = vshrl.u32 %v234, 7
    %v236 = vsub.s32 2, %v235
    %v237 = vrot.slane %v224, %v236
    %v238 = vlaneseq
    %v239 = vshrl.u32 %v238, 7
    %v240 = vsub.s32 3, %v239
    %v241 = vrot.slane %v224, %v240
    %v254 = vunpack.c.l.b16 %v216
    %v255 = vunpack.c.h.b16 %v216
    %v256 = vunpack.c.l.b16 %v217
    %v257 = vunpack.c.h.b16 %v217
    %v258 = vunpack.c.l.b16 %v218
    %v259 = vunpack.c.h.b16 %v218
    %v260 = vunpack.c.l.b16 %v219
    %v261 = vunpack.c.h.b16 %v219
    %v262 = vunpack.c.l.b16 %v220
    %v263 = vunpack.c.h.b16 %v220
    %v264 = vunpack.c.l.b16 %v221
    %v265 = vunpack.c.h.b16 %v221
    %v266 = vunpack.c.l.b16 %v222
    %v267 = vunpack.c.h.b16 %v222
    %v268 = vunpack.c.l.b16 %v223
    %v269 = vunpack.c.h.b16 %v223
    %v270 = vpack.c.b16 %v258, %v254
    %v271 = vpack.c.b16 %v259, %v255
    %v272 = vpack.c.b16 %v260, %v256
    %v273 = vpack.c.b16 %v261, %v257
    %v274 = vpack.c.b16 %v266, %v262
    %v275 = vpack.c.b16 %v267, %v263
    %v276 = vpack.c.b16 %v268, %v264
    %v277 = vpack.c.b16 %v269, %v265
    %v287 = vsel %vm91, %v214, 0
    %v290 = vsel %vm91, %v215, 0
    %292 = vmatprep.subr.bf16.mxu0 %v271
    %293 = vmatpush1.bf16.msra.mxu0 %v270
    %294 = vmatprep.subr.bf16.mxu0 %v275
    %295 = vmatpush1.bf16.msra.mxu0 %v274
    %296 = vmatprep.subr.bf16.mxu0 0
    %297 = vmatpush1.bf16.msra.mxu0 0
    %298 = vmatprep.subr.bf16.mxu0 0
    %299 = vmatpush1.bf16.msra.mxu0 0
    %300 = vmatprep.subr.bf16.mxu0 0
    %301 = vmatpush1.bf16.msra.mxu0 0
    %302 = vmatprep.subr.bf16.mxu0 0
    %303 = vmatpush1.bf16.msra.mxu0 0
    %304 = vmatprep.subr.bf16.mxu0 0
    %305 = vmatpush1.bf16.msra.mxu0 0
    %306 = vmatprep.subr.bf16.mxu0 0
    %307 = vmatpush1.bf16.msra.mxu0 0
    %308 = vmatprep.subr.bf16.mxu0 0
    %309 = vmatpush1.bf16.msra.mxu0 0
    %310 = vmatprep.subr.bf16.mxu0 0
    %311 = vmatpush1.bf16.msra.mxu0 0
    %312 = vmatprep.subr.bf16.mxu0 0
    %313 = vmatpush1.bf16.msra.mxu0 0
    %314 = vmatprep.subr.bf16.mxu0 0
    %315 = vmatpush1.bf16.msra.mxu0 0
    %316 = vmatprep.subr.bf16.mxu0 0
    %317 = vmatpush1.bf16.msra.mxu0 0
    %318 = vmatprep.subr.bf16.mxu0 0
    %319 = vmatpush1.bf16.msra.mxu0 0
    %320 = vmatprep.subr.bf16.mxu0 0
    %321 = vmatpush1.bf16.msra.mxu0 0
    %322 = vmatprep.subr.bf16.mxu0 0
    %323 = vmatpush1.bf16.msra.mxu0 0
    %324 = vmatprep.mubr.bf16.mxu0 0
    %325 = vmatmul.mubr.bf16.gmra.mrb[0].mxu0 %v287
    %v326 = vpop.f32.mrb[0].mxu0
    %v327 = vadd.f32 %v229, %v326
    %v328 = vpop.f32.mrb[0].mxu0
    %v329 = vadd.f32 %v233, %v328
    %v330 = vpop.f32.mrb[0].mxu0
    %v331 = vadd.f32 %v229, %v330
    %v332 = vpop.f32.mrb[0].mxu0
    %v333 = vadd.f32 %v233, %v332
    %334 = vmatprep.mubr.bf16.mxu0 0
    %335 = vmatmul.mubr.bf16.gmra.mrb[0].mxu0 %v290
    %v336 = vpop.f32.mrb[0].mxu0
    %v337 = vadd.f32 %v229, %v336
    %v338 = vpop.f32.mrb[0].mxu0
    %v339 = vadd.f32 %v233, %v338
    %v340 = vpop.f32.mrb[0].mxu0
    %v341 = vadd.f32 %v229, %v340
    %v342 = vpop.f32.mrb[0].mxu0
    %v343 = vadd.f32 %v233, %v342
    %344 = vdwg.mxu0
    %345 = vmatprep.subr.bf16.mxu0 %v273
    %346 = vmatpush1.bf16.msra.mxu0 %v272
    %347 = vmatprep.subr.bf16.mxu0 %v277
    %348 = vmatpush1.bf16.msra.mxu0 %v276
    %349 = vmatprep.subr.bf16.mxu0 0
    %350 = vmatpush1.bf16.msra.mxu0 0
    %351 = vmatprep.subr.bf16.mxu0 0
    %352 = vmatpush1.bf16.msra.mxu0 0
    %353 = vmatprep.subr.bf16.mxu0 0
    %354 = vmatpush1.bf16.msra.mxu0 0
    %355 = vmatprep.subr.bf16.mxu0 0
    %356 = vmatpush1.bf16.msra.mxu0 0
    %357 = vmatprep.subr.bf16.mxu0 0
    %358 = vmatpush1.bf16.msra.mxu0 0
    %359 = vmatprep.subr.bf16.mxu0 0
    %360 = vmatpush1.bf16.msra.mxu0 0
    %361 = vmatprep.subr.bf16.mxu0 0
    %362 = vmatpush1.bf16.msra.mxu0 0
    %363 = vmatprep.subr.bf16.mxu0 0
    %364 = vmatpush1.bf16.msra.mxu0 0
    %365 = vmatprep.subr.bf16.mxu0 0
    %366 = vmatpush1.bf16.msra.mxu0 0
    %367 = vmatprep.subr.bf16.mxu0 0
    %368 = vmatpush1.bf16.msra.mxu0 0
    %369 = vmatprep.subr.bf16.mxu0 0
    %370 = vmatpush1.bf16.msra.mxu0 0
    %371 = vmatprep.subr.bf16.mxu0 0
    %372 = vmatpush1.bf16.msra.mxu0 0
    %373 = vmatprep.subr.bf16.mxu0 0
    %374 = vmatpush1.bf16.msra.mxu0 0
    %375 = vmatprep.subr.bf16.mxu0 0
    %376 = vmatpush1.bf16.msra.mxu0 0
    %377 = vmatprep.mubr.bf16.mxu0 0
    %378 = vmatmul.mubr.bf16.gmra.mrb[0].mxu0 %v287
    %v379 = vpop.f32.mrb[0].mxu0
    %v380 = vadd.f32 %v237, %v379
    %v381 = vpop.f32.mrb[0].mxu0
    %v382 = vadd.f32 %v241, %v381
    %v383 = vpop.f32.mrb[0].mxu0
    %v384 = vadd.f32 %v237, %v383
    %v385 = vpop.f32.mrb[0].mxu0
    %v386 = vadd.f32 %v241, %v385
    %387 = vmatprep.mubr.bf16.mxu0 0
    %388 = vmatmul.mubr.bf16.gmra.mrb[0].mxu0 %v290
    %v389 = vpop.f32.mrb[0].mxu0
    %v390 = vadd.f32 %v237, %v389
    %v391 = vpop.f32.mrb[0].mxu0
    %v392 = vadd.f32 %v241, %v391
    %v393 = vpop.f32.mrb[0].mxu0
    %v394 = vadd.f32 %v237, %v393
    %v395 = vpop.f32.mrb[0].mxu0
    %v396 = vadd.f32 %v241, %v395
    %397 = vdwg.mxu0
    %398 = vst [vmem:[#allocation2] sm:$0xff] %v327
    %399 = vst [vmem:[#allocation2 + $0x8] sm:$0xff] %v329
    %400 = vst [vmem:[#allocation2 + $0x10] sm:$0xff] %v380
    %401 = vst [vmem:[#allocation2 + $0x18] sm:$0xff] %v382
    %402 = vst [vmem:[#allocation2 + $0x20] sm:$0xff] %v331
    %403 = vst [vmem:[#allocation2 + $0x28] sm:$0xff] %v333
    %404 = vst [vmem:[#allocation2 + $0x30] sm:$0xff] %v384
    %405 = vst [vmem:[#allocation2 + $0x38] sm:$0xff] %v386
    %406 = vst [vmem:[#allocation2 + $0x40] sm:$0xff] %v337
    %407 = vst [vmem:[#allocation2 + $0x48] sm:$0xff] %v339
    %408 = vst [vmem:[#allocation2 + $0x50] sm:$0xff] %v390
    %409 = vst [vmem:[#allocation2 + $0x58] sm:$0xff] %v392
    %410 = vst [vmem:[#allocation2 + $0x60] sm:$0xff] %v341
    %411 = vst [vmem:[#allocation2 + $0x68] sm:$0xff] %v343
    %412 = vst [vmem:[#allocation2 + $0x70] sm:$0xff] %v394
    %413 = vst [vmem:[#allocation2 + $0x78] sm:$0xff] %v396
    %v414 = vld [vmem:[#allocation2] sm:$0xf]
    %v415 = vld [vmem:[#allocation2 + $0x8] sm:$0xf]
    %v416 = vld [vmem:[#allocation2 + $0x10] sm:$0xf]
    %v417 = vld [vmem:[#allocation2 + $0x18] sm:$0xf]
    %v418 = vpack.c.bf16 %v208, %v208
    %v419 = vld [vmem:[#allocation4] sm:$0xff]
    %v420 = vld [vmem:[#allocation4 + $0x8] sm:$0xff]
    %v421 = vld [vmem:[#allocation4 + $0x10] sm:$0xff]
    %v422 = vld [vmem:[#allocation4 + $0x18] sm:$0xff]
    %v423 = vld [vmem:[#allocation4 + $0x20] sm:$0xff]
    %v424 = vld [vmem:[#allocation4 + $0x28] sm:$0xff]
    %v425 = vld [vmem:[#allocation4 + $0x30] sm:$0xff]
    %v426 = vld [vmem:[#allocation4 + $0x38] sm:$0xff]
    %v427 = vld [vmem:[#allocation4 + $0x40] sm:$0xff]
    %v428 = vld [vmem:[#allocation4 + $0x48] sm:$0xff]
    %v429 = vld [vmem:[#allocation4 + $0x50] sm:$0xff]
    %v430 = vld [vmem:[#allocation4 + $0x58] sm:$0xff]
    %v431 = vld [vmem:[#allocation4 + $0x60] sm:$0xff]
    %v432 = vld [vmem:[#allocation4 + $0x68] sm:$0xff]
    %v433 = vld [vmem:[#allocation4 + $0x70] sm:$0xff]
    %v434 = vld [vmem:[#allocation4 + $0x78] sm:$0xff]
    %v435 = vld [vmem:[#allocation4 + $0x80] sm:$0xff]
    %v436 = vld [vmem:[#allocation4 + $0x88] sm:$0xff]
    %v437 = vld [vmem:[#allocation4 + $0x90] sm:$0xff]
    %v438 = vld [vmem:[#allocation4 + $0x98] sm:$0xff]
    %v439 = vld [vmem:[#allocation4 + $0xa0] sm:$0xff]
    %v440 = vld [vmem:[#allocation4 + $0xa8] sm:$0xff]
    %v441 = vld [vmem:[#allocation4 + $0xb0] sm:$0xff]
    %v442 = vld [vmem:[#allocation4 + $0xb8] sm:$0xff]
    %v443 = vld [vmem:[#allocation4 + $0xc0] sm:$0xff]
    %v444 = vld [vmem:[#allocation4 + $0xc8] sm:$0xff]
    %v445 = vld [vmem:[#allocation4 + $0xd0] sm:$0xff]
    %v446 = vld [vmem:[#allocation4 + $0xd8] sm:$0xff]
    %v447 = vld [vmem:[#allocation4 + $0xe0] sm:$0xff]
    %v448 = vld [vmem:[#allocation4 + $0xe8] sm:$0xff]
    %v449 = vld [vmem:[#allocation4 + $0xf0] sm:$0xff]
    %v450 = vld [vmem:[#allocation4 + $0xf8] sm:$0xff]
    %v483 = vunpack.c.l.b16 %v419
    %v484 = vunpack.c.h.b16 %v419
    %v485 = vunpack.c.l.b16 %v420
    %v486 = vunpack.c.h.b16 %v420
    %v487 = vunpack.c.l.b16 %v421
    %v488 = vunpack.c.h.b16 %v421
    %v489 = vunpack.c.l.b16 %v422
    %v490 = vunpack.c.h.b16 %v422
    %v491 = vunpack.c.l.b16 %v423
    %v492 = vunpack.c.h.b16 %v423
    %v493 = vunpack.c.l.b16 %v424
    %v494 = vunpack.c.h.b16 %v424
    %v495 = vunpack.c.l.b16 %v425
    %v496 = vunpack.c.h.b16 %v425
    %v497 = vunpack.c.l.b16 %v426
    %v498 = vunpack.c.h.b16 %v426
    %v499 = vunpack.c.l.b16 %v427
    %v500 = vunpack.c.h.b16 %v427
    %v501 = vunpack.c.l.b16 %v428
    %v502 = vunpack.c.h.b16 %v428
    %v503 = vunpack.c.l.b16 %v429
    %v504 = vunpack.c.h.b16 %v429
    %v505 = vunpack.c.l.b16 %v430
    %v506 = vunpack.c.h.b16 %v430
    %v507 = vunpack.c.l.b16 %v431
    %v508 = vunpack.c.h.b16 %v431
    %v509 = vunpack.c.l.b16 %v432
    %v510 = vunpack.c.h.b16 %v432
    %v511 = vunpack.c.l.b16 %v433
    %v512 = vunpack.c.h.b16 %v433
    %v513 = vunpack.c.l.b16 %v434
    %v514 = vunpack.c.h.b16 %v434
    %v515 = vunpack.c.l.b16 %v435
    %v516 = vunpack.c.h.b16 %v435
    %v517 = vunpack.c.l.b16 %v436
    %v518 = vunpack.c.h.b16 %v436
    %v519 = vunpack.c.l.b16 %v437
    %v520 = vunpack.c.h.b16 %v437
    %v521 = vunpack.c.l.b16 %v438
    %v522 = vunpack.c.h.b16 %v438
    %v523 = vunpack.c.l.b16 %v439
    %v524 = vunpack.c.h.b16 %v439
    %v525 = vunpack.c.l.b16 %v440
    %v526 = vunpack.c.h.b16 %v440
    %v527 = vunpack.c.l.b16 %v441
    %v528 = vunpack.c.h.b16 %v441
    %v529 = vunpack.c.l.b16 %v442
    %v530 = vunpack.c.h.b16 %v442
    %v531 = vunpack.c.l.b16 %v443
    %v532 = vunpack.c.h.b16 %v443
    %v533 = vunpack.c.l.b16 %v444
    %v534 = vunpack.c.h.b16 %v444
    %v535 = vunpack.c.l.b16 %v445
    %v536 = vunpack.c.h.b16 %v445
    %v537 = vunpack.c.l.b16 %v446
    %v538 = vunpack.c.h.b16 %v446
    %v539 = vunpack.c.l.b16 %v447
    %v540 = vunpack.c.h.b16 %v447
    %v541 = vunpack.c.l.b16 %v448
    %v542 = vunpack.c.h.b16 %v448
    %v543 = vunpack.c.l.b16 %v449
    %v544 = vunpack.c.h.b16 %v449
    %v545 = vunpack.c.l.b16 %v450
    %v546 = vunpack.c.h.b16 %v450
    %v547 = vpack.c.b16 %v487, %v483
    %v548 = vpack.c.b16 %v488, %v484
    %v549 = vpack.c.b16 %v489, %v485
    %v550 = vpack.c.b16 %v490, %v486
    %v551 = vpack.c.b16 %v495, %v491
    %v552 = vpack.c.b16 %v496, %v492
    %v553 = vpack.c.b16 %v497, %v493
    %v554 = vpack.c.b16 %v498, %v494
    %v555 = vpack.c.b16 %v503, %v499
    %v556 = vpack.c.b16 %v504, %v500
    %v557 = vpack.c.b16 %v505, %v501
    %v558 = vpack.c.b16 %v506, %v502
    %v559 = vpack.c.b16 %v511, %v507
    %v560 = vpack.c.b16 %v512, %v508
    %v561 = vpack.c.b16 %v513, %v509
    %v562 = vpack.c.b16 %v514, %v510
    %v563 = vpack.c.b16 %v519, %v515
    %v564 = vpack.c.b16 %v520, %v516
    %v565 = vpack.c.b16 %v521, %v517
    %v566 = vpack.c.b16 %v522, %v518
    %v567 = vpack.c.b16 %v527, %v523
    %v568 = vpack.c.b16 %v528, %v524
    %v569 = vpack.c.b16 %v529, %v525
    %v570 = vpack.c.b16 %v530, %v526
    %v571 = vpack.c.b16 %v535, %v531
    %v572 = vpack.c.b16 %v536, %v532
    %v573 = vpack.c.b16 %v537, %v533
    %v574 = vpack.c.b16 %v538, %v534
    %v575 = vpack.c.b16 %v543, %v539
    %v576 = vpack.c.b16 %v544, %v540
    %v577 = vpack.c.b16 %v545, %v541
    %v578 = vpack.c.b16 %v546, %v542
    %611 = vmatprep.subr.bf16.mxu0 %v548
    %612 = vmatpush1.bf16.msra.mxu0 %v547
    %613 = vmatprep.subr.bf16.mxu0 %v552
    %614 = vmatpush1.bf16.msra.mxu0 %v551
    %615 = vmatprep.subr.bf16.mxu0 %v556
    %616 = vmatpush1.bf16.msra.mxu0 %v555
    %617 = vmatprep.subr.bf16.mxu0 %v560
    %618 = vmatpush1.bf16.msra.mxu0 %v559
    %619 = vmatprep.subr.bf16.mxu0 %v564
    %620 = vmatpush1.bf16.msra.mxu0 %v563
    %621 = vmatprep.subr.bf16.mxu0 %v568
    %622 = vmatpush1.bf16.msra.mxu0 %v567
    %623 = vmatprep.subr.bf16.mxu0 %v572
    %624 = vmatpush1.bf16.msra.mxu0 %v571
    %625 = vmatprep.subr.bf16.mxu0 %v576
    %626 = vmatpush1.bf16.msra.mxu0 %v575
    %627 = vmatprep.subr.bf16.mxu0 0
    %628 = vmatpush1.bf16.msra.mxu0 0
    %629 = vmatprep.subr.bf16.mxu0 0
    %630 = vmatpush1.bf16.msra.mxu0 0
    %631 = vmatprep.subr.bf16.mxu0 0
    %632 = vmatpush1.bf16.msra.mxu0 0
    %633 = vmatprep.subr.bf16.mxu0 0
    %634 = vmatpush1.bf16.msra.mxu0 0
    %635 = vmatprep.subr.bf16.mxu0 0
    %636 = vmatpush1.bf16.msra.mxu0 0
    %637 = vmatprep.subr.bf16.mxu0 0
    %638 = vmatpush1.bf16.msra.mxu0 0
    %639 = vmatprep.subr.bf16.mxu0 0
    %640 = vmatpush1.bf16.msra.mxu0 0
    %641 = vmatprep.subr.bf16.mxu0 0
    %642 = vmatpush1.bf16.msra.mxu0 0
    %643 = vmatprep.mubr.bf16.mxu0 0
    %644 = vmatmul.mubr.bf16.gmra.mrb[0].mxu0 %v418
    %v645 = vpop.f32.mrb[0].mxu0
    %v646 = vadd.f32 0.0, %v645
    %v647 = vpop.f32.mrb[0].mxu0
    %v648 = vadd.f32 0.0, %v647
    %v649 = vpop.f32.mrb[0].mxu0
    %v650 = vpop.f32.mrb[0].mxu0
    %651 = vdwg.mxu0
    %652 = vmatprep.subr.bf16.mxu0 %v550
    %653 = vmatpush1.bf16.msra.mxu0 %v549
    %654 = vmatprep.subr.bf16.mxu0 %v554
    %655 = vmatpush1.bf16.msra.mxu0 %v553
    %656 = vmatprep.subr.bf16.mxu0 %v558
    %657 = vmatpush1.bf16.msra.mxu0 %v557
    %658 = vmatprep.subr.bf16.mxu0 %v562
    %659 = vmatpush1.bf16.msra.mxu0 %v561
    %660 = vmatprep.subr.bf16.mxu0 %v566
    %661 = vmatpush1.bf16.msra.mxu0 %v565
    %662 = vmatprep.subr.bf16.mxu0 %v570
    %663 = vmatpush1.bf16.msra.mxu0 %v569
    %664 = vmatprep.subr.bf16.mxu0 %v574
    %665 = vmatpush1.bf16.msra.mxu0 %v573
    %666 = vmatprep.subr.bf16.mxu0 %v578
    %667 = vmatpush1.bf16.msra.mxu0 %v577
    %668 = vmatprep.subr.bf16.mxu0 0
    %669 = vmatpush1.bf16.msra.mxu0 0
    %670 = vmatprep.subr.bf16.mxu0 0
    %671 = vmatpush1.bf16.msra.mxu0 0
    %672 = vmatprep.subr.bf16.mxu0 0
    %673 = vmatpush1.bf16.msra.mxu0 0
    %674 = vmatprep.subr.bf16.mxu0 0
    %675 = vmatpush1.bf16.msra.mxu0 0
    %676 = vmatprep.subr.bf16.mxu0 0
    %677 = vmatpush1.bf16.msra.mxu0 0
    %678 = vmatprep.subr.bf16.mxu0 0
    %679 = vmatpush1.bf16.msra.mxu0 0
    %680 = vmatprep.subr.bf16.mxu0 0
    %681 = vmatpush1.bf16.msra.mxu0 0
    %682 = vmatprep.subr.bf16.mxu0 0
    %683 = vmatpush1.bf16.msra.mxu0 0
    %684 = vmatprep.mubr.bf16.mxu0 0
    %685 = vmatmul.mubr.bf16.gmra.mrb[0].mxu0 %v418
    %v686 = vpop.f32.mrb[0].mxu0
    %v687 = vadd.f32 0.0, %v686
    %v688 = vpop.f32.mrb[0].mxu0
    %v689 = vadd.f32 0.0, %v688
    %v690 = vpop.f32.mrb[0].mxu0
    %v691 = vpop.f32.mrb[0].mxu0
    %692 = vdwg.mxu0
    %v693 = vadd.f32 %v414, %v646
    %v694 = vadd.f32 %v415, %v648
    %v695 = vadd.f32 %v416, %v687
    %v696 = vadd.f32 %v417, %v689
    %v697 = vxor.u32 %v693, 2147483648
    %v698 = vxor.u32 %v694, 2147483648
    %v699 = vmul.f32 %v697, 1.442695
    %v700 = vpow.pop %v699
    %v701 = vmul.f32 %v698, 1.442695
    %v702 = vpow.pop %v701
    %v703 = vadd.f32 %v700, 1.0
    %v704 = vadd.f32 %v702, 1.0
    %v705 = vrcp.pop %v703
    %v706 = vmul.f32 1.0, %v705
    %v707 = vrcp.pop %v704
    %v708 = vmul.f32 1.0, %v707
    %v709 = vtanh.pop %v695
    %v710 = vxor.u32 %v696, 2147483648
    %v711 = vmul.f32 %v710, 1.442695
    %v712 = vpow.pop %v711
    %v713 = vadd.f32 %v712, 1.0
    %v714 = vrcp.pop %v713
    %v715 = vmul.f32 1.0, %v714
    %v716 = vmul.f32 %v708, %v209
    %v717 = vmul.f32 %v706, %v709
    %v718 = vadd.f32 %v716, %v717
    %v719 = vtanh.pop %v718
    %v720 = vmul.f32 %v715, %v719
    %721 = vst [vmem:[#allocation3] sm:$0xf] %v720
    %v722 = vld [vmem:[#allocation2] sm:$0xf0]
    %v723 = vld [vmem:[#allocation2 + $0x8] sm:$0xf0]
    %v724 = vld [vmem:[#allocation2 + $0x10] sm:$0xf0]
    %v725 = vld [vmem:[#allocation2 + $0x18] sm:$0xf0]
    %v726 = vpack.c.bf16 %v720, %v720
    %v727 = vld [vmem:[#allocation4] sm:$0xff]
    %v728 = vld [vmem:[#allocation4 + $0x8] sm:$0xff]
    %v729 = vld [vmem:[#allocation4 + $0x10] sm:$0xff]
    %v730 = vld [vmem:[#allocation4 + $0x18] sm:$0xff]
    %v731 = vld [vmem:[#allocation4 + $0x20] sm:$0xff]
    %v732 = vld [vmem:[#allocation4 + $0x28] sm:$0xff]
    %v733 = vld [vmem:[#allocation4 + $0x30] sm:$0xff]
    %v734 = vld [vmem:[#allocation4 + $0x38] sm:$0xff]
    %v735 = vld [vmem:[#allocation4 + $0x40] sm:$0xff]
    %v736 = vld [vmem:[#allocation4 + $0x48] sm:$0xff]
    %v737 = vld [vmem:[#allocation4 + $0x50] sm:$0xff]
    %v738 = vld [vmem:[#allocation4 + $0x58] sm:$0xff]
    %v739 = vld [vmem:[#allocation4 + $0x60] sm:$0xff]
    %v740 = vld [vmem:[#allocation4 + $0x68] sm:$0xff]
    %v741 = vld [vmem:[#allocation4 + $0x70] sm:$0xff]
    %v742 = vld [vmem:[#allocation4 + $0x78] sm:$0xff]
    %v743 = vld [vmem:[#allocation4 + $0x80] sm:$0xff]
    %v744 = vld [vmem:[#allocation4 + $0x88] sm:$0xff]
    %v745 = vld [vmem:[#allocation4 + $0x90] sm:$0xff]
    %v746 = vld [vmem:[#allocation4 + $0x98] sm:$0xff]
    %v747 = vld [vmem:[#allocation4 + $0xa0] sm:$0xff]
    %v748 = vld [vmem:[#allocation4 + $0xa8] sm:$0xff]
    %v749 = vld [vmem:[#allocation4 + $0xb0] sm:$0xff]
    %v750 = vld [vmem:[#allocation4 + $0xb8] sm:$0xff]
    %v751 = vld [vmem:[#allocation4 + $0xc0] sm:$0xff]
    %v752 = vld [vmem:[#allocation4 + $0xc8] sm:$0xff]
    %v753 = vld [vmem:[#allocation4 + $0xd0] sm:$0xff]
    %v754 = vld [vmem:[#allocation4 + $0xd8] sm:$0xff]
    %v755 = vld [vmem:[#allocation4 + $0xe0] sm:$0xff]
    %v756 = vld [vmem:[#allocation4 + $0xe8] sm:$0xff]
    %v757 = vld [vmem:[#allocation4 + $0xf0] sm:$0xff]
    %v758 = vld [vmem:[#allocation4 + $0xf8] sm:$0xff]
    %v791 = vunpack.c.l.b16 %v727
    %v792 = vunpack.c.h.b16 %v727
    %v793 = vunpack.c.l.b16 %v728
    %v794 = vunpack.c.h.b16 %v728
    %v795 = vunpack.c.l.b16 %v729
    %v796 = vunpack.c.h.b16 %v729
    %v797 = vunpack.c.l.b16 %v730
    %v798 = vunpack.c.h.b16 %v730
    %v799 = vunpack.c.l.b16 %v731
    %v800 = vunpack.c.h.b16 %v731
    %v801 = vunpack.c.l.b16 %v732
    %v802 = vunpack.c.h.b16 %v732
    %v803 = vunpack.c.l.b16 %v733
    %v804 = vunpack.c.h.b16 %v733
    %v805 = vunpack.c.l.b16 %v734
    %v806 = vunpack.c.h.b16 %v734
    %v807 = vunpack.c.l.b16 %v735
    %v808 = vunpack.c.h.b16 %v735
    %v809 = vunpack.c.l.b16 %v736
    %v810 = vunpack.c.h.b16 %v736
    %v811 = vunpack.c.l.b16 %v737
    %v812 = vunpack.c.h.b16 %v737
    %v813 = vunpack.c.l.b16 %v738
    %v814 = vunpack.c.h.b16 %v738
    %v815 = vunpack.c.l.b16 %v739
    %v816 = vunpack.c.h.b16 %v739
    %v817 = vunpack.c.l.b16 %v740
    %v818 = vunpack.c.h.b16 %v740
    %v819 = vunpack.c.l.b16 %v741
    %v820 = vunpack.c.h.b16 %v741
    %v821 = vunpack.c.l.b16 %v742
    %v822 = vunpack.c.h.b16 %v742
    %v823 = vunpack.c.l.b16 %v743
    %v824 = vunpack.c.h.b16 %v743
    %v825 = vunpack.c.l.b16 %v744
    %v826 = vunpack.c.h.b16 %v744
    %v827 = vunpack.c.l.b16 %v745
    %v828 = vunpack.c.h.b16 %v745
    %v829 = vunpack.c.l.b16 %v746
    %v830 = vunpack.c.h.b16 %v746
    %v831 = vunpack.c.l.b16 %v747
    %v832 = vunpack.c.h.b16 %v747
    %v833 = vunpack.c.l.b16 %v748
    %v834 = vunpack.c.h.b16 %v748
    %v835 = vunpack.c.l.b16 %v749
    %v836 = vunpack.c.h.b16 %v749
    %v837 = vunpack.c.l.b16 %v750
    %v838 = vunpack.c.h.b16 %v750
    %v839 = vunpack.c.l.b16 %v751
    %v840 = vunpack.c.h.b16 %v751
    %v841 = vunpack.c.l.b16 %v752
    %v842 = vunpack.c.h.b16 %v752
    %v843 = vunpack.c.l.b16 %v753
    %v844 = vunpack.c.h.b16 %v753
    %v845 = vunpack.c.l.b16 %v754
    %v846 = vunpack.c.h.b16 %v754
    %v847 = vunpack.c.l.b16 %v755
    %v848 = vunpack.c.h.b16 %v755
    %v849 = vunpack.c.l.b16 %v756
    %v850 = vunpack.c.h.b16 %v756
    %v851 = vunpack.c.l.b16 %v757
    %v852 = vunpack.c.h.b16 %v757
    %v853 = vunpack.c.l.b16 %v758
    %v854 = vunpack.c.h.b16 %v758
    %v855 = vpack.c.b16 %v795, %v791
    %v856 = vpack.c.b16 %v796, %v792
    %v857 = vpack.c.b16 %v797, %v793
    %v858 = vpack.c.b16 %v798, %v794
    %v859 = vpack.c.b16 %v803, %v799
    %v860 = vpack.c.b16 %v804, %v800
    %v861 = vpack.c.b16 %v805, %v801
    %v862 = vpack.c.b16 %v806, %v802
    %v863 = vpack.c.b16 %v811, %v807
    %v864 = vpack.c.b16 %v812, %v808
    %v865 = vpack.c.b16 %v813, %v809
    %v866 = vpack.c.b16 %v814, %v810
    %v867 = vpack.c.b16 %v819, %v815
    %v868 = vpack.c.b16 %v820, %v816
    %v869 = vpack.c.b16 %v821, %v817
    %v870 = vpack.c.b16 %v822, %v818
    %v871 = vpack.c.b16 %v827, %v823
    %v872 = vpack.c.b16 %v828, %v824
    %v873 = vpack.c.b16 %v829, %v825
    %v874 = vpack.c.b16 %v830, %v826
    %v875 = vpack.c.b16 %v835, %v831
    %v876 = vpack.c.b16 %v836, %v832
    %v877 = vpack.c.b16 %v837, %v833
    %v878 = vpack.c.b16 %v838, %v834
    %v879 = vpack.c.b16 %v843, %v839
    %v880 = vpack.c.b16 %v844, %v840
    %v881 = vpack.c.b16 %v845, %v841
    %v882 = vpack.c.b16 %v846, %v842
    %v883 = vpack.c.b16 %v851, %v847
    %v884 = vpack.c.b16 %v852, %v848
    %v885 = vpack.c.b16 %v853, %v849
    %v886 = vpack.c.b16 %v854, %v850
    %919 = vmatprep.subr.bf16.mxu0 %v856
    %920 = vmatpush1.bf16.msra.mxu0 %v855
    %921 = vmatprep.subr.bf16.mxu0 %v860
    %922 = vmatpush1.bf16.msra.mxu0 %v859
    %923 = vmatprep.subr.bf16.mxu0 %v864
    %924 = vmatpush1.bf16.msra.mxu0 %v863
    %925 = vmatprep.subr.bf16.mxu0 %v868
    %926 = vmatpush1.bf16.msra.mxu0 %v867
    %927 = vmatprep.subr.bf16.mxu0 %v872
    %928 = vmatpush1.bf16.msra.mxu0 %v871
    %929 = vmatprep.subr.bf16.mxu0 %v876
    %930 = vmatpush1.bf16.msra.mxu0 %v875
    %931 = vmatprep.subr.bf16.mxu0 %v880
    %932 = vmatpush1.bf16.msra.mxu0 %v879
    %933 = vmatprep.subr.bf16.mxu0 %v884
    %934 = vmatpush1.bf16.msra.mxu0 %v883
    %935 = vmatprep.subr.bf16.mxu0 0
    %936 = vmatpush1.bf16.msra.mxu0 0
    %937 = vmatprep.subr.bf16.mxu0 0
    %938 = vmatpush1.bf16.msra.mxu0 0
    %939 = vmatprep.subr.bf16.mxu0 0
    %940 = vmatpush1.bf16.msra.mxu0 0
    %941 = vmatprep.subr.bf16.mxu0 0
    %942 = vmatpush1.bf16.msra.mxu0 0
    %943 = vmatprep.subr.bf16.mxu0 0
    %944 = vmatpush1.bf16.msra.mxu0 0
    %945 = vmatprep.subr.bf16.mxu0 0
    %946 = vmatpush1.bf16.msra.mxu0 0
    %947 = vmatprep.subr.bf16.mxu0 0
    %948 = vmatpush1.bf16.msra.mxu0 0
    %949 = vmatprep.subr.bf16.mxu0 0
    %950 = vmatpush1.bf16.msra.mxu0 0
    %951 = vmatprep.mubr.bf16.mxu0 0
    %952 = vmatmul.mubr.bf16.gmra.mrb[0].mxu0 %v726
    %v953 = vpop.f32.mrb[0].mxu0
    %v954 = vadd.f32 0.0, %v953
    %v955 = vpop.f32.mrb[0].mxu0
    %v956 = vadd.f32 0.0, %v955
    %v957 = vpop.f32.mrb[0].mxu0
    %v958 = vpop.f32.mrb[0].mxu0
    %959 = vdwg.mxu0
    %960 = vmatprep.subr.bf16.mxu0 %v858
    %961 = vmatpush1.bf16.msra.mxu0 %v857
    %962 = vmatprep.subr.bf16.mxu0 %v862
    %963 = vmatpush1.bf16.msra.mxu0 %v861
    %964 = vmatprep.subr.bf16.mxu0 %v866
    %965 = vmatpush1.bf16.msra.mxu0 %v865
    %966 = vmatprep.subr.bf16.mxu0 %v870
    %967 = vmatpush1.bf16.msra.mxu0 %v869
    %968 = vmatprep.subr.bf16.mxu0 %v874
    %969 = vmatpush1.bf16.msra.mxu0 %v873
    %970 = vmatprep.subr.bf16.mxu0 %v878
    %971 = vmatpush1.bf16.msra.mxu0 %v877
    %972 = vmatprep.subr.bf16.mxu0 %v882
    %973 = vmatpush1.bf16.msra.mxu0 %v881
    %974 = vmatprep.subr.bf16.mxu0 %v886
    %975 = vmatpush1.bf16.msra.mxu0 %v885
    %976 = vmatprep.subr.bf16.mxu0 0
    %977 = vmatpush1.bf16.msra.mxu0 0
    %978 = vmatprep.subr.bf16.mxu0 0
    %979 = vmatpush1.bf16.msra.mxu0 0
    %980 = vmatprep.subr.bf16.mxu0 0
    %981 = vmatpush1.bf16.msra.mxu0 0
    %982 = vmatprep.subr.bf16.mxu0 0
    %983 = vmatpush1.bf16.msra.mxu0 0
    %984 = vmatprep.subr.bf16.mxu0 0
    %985 = vmatpush1.bf16.msra.mxu0 0
    %986 = vmatprep.subr.bf16.mxu0 0
    %987 = vmatpush1.bf16.msra.mxu0 0
    %988 = vmatprep.subr.bf16.mxu0 0
    %989 = vmatpush1.bf16.msra.mxu0 0
    %990 = vmatprep.subr.bf16.mxu0 0
    %991 = vmatpush1.bf16.msra.mxu0 0
    %992 = vmatprep.mubr.bf16.mxu0 0
    %993 = vmatmul.mubr.bf16.gmra.mrb[0].mxu0 %v726
    %v994 = vpop.f32.mrb[0].mxu0
    %v995 = vadd.f32 0.0, %v994
    %v996 = vpop.f32.mrb[0].mxu0
    %v997 = vadd.f32 0.0, %v996
    %v998 = vpop.f32.mrb[0].mxu0
    %v999 = vpop.f32.mrb[0].mxu0
    %1000 = vdwg.mxu0
    %v1005 = vrot.slane %v954, 4
    %v1006 = vrot.slane %v956, 4
    %v1007 = vrot.slane %v995, 4
    %v1008 = vrot.slane %v997, 4
    %v1013 = vadd.f32 %v722, %v1005
    %v1014 = vadd.f32 %v723, %v1006
    %v1015 = vadd.f32 %v724, %v1007
    %v1016 = vadd.f32 %v725, %v1008
    %v1017 = vxor.u32 %v1013, 2147483648
    %v1018 = vxor.u32 %v1014, 2147483648
    %v1019 = vmul.f32 %v1017, 1.442695
    %v1020 = vpow.pop %v1019
    %v1021 = vmul.f32 %v1018, 1.442695
    %v1022 = vpow.pop %v1021
    %v1023 = vadd.f32 %v1020, 1.0
    %v1024 = vadd.f32 %v1022, 1.0
    %v1025 = vrcp.pop %v1023
    %v1026 = vmul.f32 1.0, %v1025
    %v1027 = vrcp.pop %v1024
    %v1028 = vmul.f32 1.0, %v1027
    %v1029 = vtanh.pop %v1015
    %v1030 = vxor.u32 %v1016, 2147483648
    %v1031 = vmul.f32 %v1030, 1.442695
    %v1032 = vpow.pop %v1031
    %v1033 = vadd.f32 %v1032, 1.0
    %v1034 = vrcp.pop %v1033
    %v1035 = vmul.f32 1.0, %v1034
    %v1037 = vrot.slane %v718, 4
    %v1039 = vmul.f32 %v1028, %v1037
    %v1040 = vmul.f32 %v1026, %v1029
    %v1041 = vadd.f32 %v1039, %v1040
    %v1042 = vtanh.pop %v1041
    %v1043 = vmul.f32 %v1035, %v1042
    %1044 = vst [vmem:[#allocation3] sm:$0xf0] %v1043
    %v1045 = vld [vmem:[#allocation2 + $0x20] sm:$0xf]
    %v1046 = vld [vmem:[#allocation2 + $0x28] sm:$0xf]
    %v1047 = vld [vmem:[#allocation2 + $0x30] sm:$0xf]
    %v1048 = vld [vmem:[#allocation2 + $0x38] sm:$0xf]
    %v1049 = vpack.c.bf16 %v1043, %v1043
    %v1050 = vld [vmem:[#allocation4] sm:$0xff]
    %v1051 = vld [vmem:[#allocation4 + $0x8] sm:$0xff]
    %v1052 = vld [vmem:[#allocation4 + $0x10] sm:$0xff]
    %v1053 = vld [vmem:[#allocation4 + $0x18] sm:$0xff]
    %v1054 = vld [vmem:[#allocation4 + $0x20] sm:$0xff]
    %v1055 = vld [vmem:[#allocation4 + $0x28] sm:$0xff]
    %v1056 = vld [vmem:[#allocation4 + $0x30] sm:$0xff]
    %v1057 = vld [vmem:[#allocation4 + $0x38] sm:$0xff]
    %v1058 = vld [vmem:[#allocation4 + $0x40] sm:$0xff]
    %v1059 = vld [vmem:[#allocation4 + $0x48] sm:$0xff]
    %v1060 = vld [vmem:[#allocation4 + $0x50] sm:$0xff]
    %v1061 = vld [vmem:[#allocation4 + $0x58] sm:$0xff]
    %v1062 = vld [vmem:[#allocation4 + $0x60] sm:$0xff]
    %v1063 = vld [vmem:[#allocation4 + $0x68] sm:$0xff]
    %v1064 = vld [vmem:[#allocation4 + $0x70] sm:$0xff]
    %v1065 = vld [vmem:[#allocation4 + $0x78] sm:$0xff]
    %v1066 = vld [vmem:[#allocation4 + $0x80] sm:$0xff]
    %v1067 = vld [vmem:[#allocation4 + $0x88] sm:$0xff]
    %v1068 = vld [vmem:[#allocation4 + $0x90] sm:$0xff]
    %v1069 = vld [vmem:[#allocation4 + $0x98] sm:$0xff]
    %v1070 = vld [vmem:[#allocation4 + $0xa0] sm:$0xff]
    %v1071 = vld [vmem:[#allocation4 + $0xa8] sm:$0xff]
    %v1072 = vld [vmem:[#allocation4 + $0xb0] sm:$0xff]
    %v1073 = vld [vmem:[#allocation4 + $0xb8] sm:$0xff]
    %v1074 = vld [vmem:[#allocation4 + $0xc0] sm:$0xff]
    %v1075 = vld [vmem:[#allocation4 + $0xc8] sm:$0xff]
    %v1076 = vld [vmem:[#allocation4 + $0xd0] sm:$0xff]
    %v1077 = vld [vmem:[#allocation4 + $0xd8] sm:$0xff]
    %v1078 = vld [vmem:[#allocation4 + $0xe0] sm:$0xff]
    %v1079 = vld [vmem:[#allocation4 + $0xe8] sm:$0xff]
    %v1080 = vld [vmem:[#allocation4 + $0xf0] sm:$0xff]
    %v1081 = vld [vmem:[#allocation4 + $0xf8] sm:$0xff]
    %v1083 = vrot.slane %v1049, 2
    %v1117 = vunpack.c.l.b16 %v1050
    %v1118 = vunpack.c.h.b16 %v1050
    %v1119 = vunpack.c.l.b16 %v1051
    %v1120 = vunpack.c.h.b16 %v1051
    %v1121 = vunpack.c.l.b16 %v1052
    %v1122 = vunpack.c.h.b16 %v1052
    %v1123 = vunpack.c.l.b16 %v1053
    %v1124 = vunpack.c.h.b16 %v1053
    %v1125 = vunpack.c.l.b16 %v1054
    %v1126 = vunpack.c.h.b16 %v1054
    %v1127 = vunpack.c.l.b16 %v1055
    %v1128 = vunpack.c.h.b16 %v1055
    %v1129 = vunpack.c.l.b16 %v1056
    %v1130 = vunpack.c.h.b16 %v1056
    %v1131 = vunpack.c.l.b16 %v1057
    %v1132 = vunpack.c.h.b16 %v1057
    %v1133 = vunpack.c.l.b16 %v1058
    %v1134 = vunpack.c.h.b16 %v1058
    %v1135 = vunpack.c.l.b16 %v1059
    %v1136 = vunpack.c.h.b16 %v1059
    %v1137 = vunpack.c.l.b16 %v1060
    %v1138 = vunpack.c.h.b16 %v1060
    %v1139 = vunpack.c.l.b16 %v1061
    %v1140 = vunpack.c.h.b16 %v1061
    %v1141 = vunpack.c.l.b16 %v1062
    %v1142 = vunpack.c.h.b16 %v1062
    %v1143 = vunpack.c.l.b16 %v1063
    %v1144 = vunpack.c.h.b16 %v1063
    %v1145 = vunpack.c.l.b16 %v1064
    %v1146 = vunpack.c.h.b16 %v1064
    %v1147 = vunpack.c.l.b16 %v1065
    %v1148 = vunpack.c.h.b16 %v1065
    %v1149 = vunpack.c.l.b16 %v1066
    %v1150 = vunpack.c.h.b16 %v1066
    %v1151 = vunpack.c.l.b16 %v1067
    %v1152 = vunpack.c.h.b16 %v1067
    %v1153 = vunpack.c.l.b16 %v1068
    %v1154 = vunpack.c.h.b16 %v1068
    %v1155 = vunpack.c.l.b16 %v1069
    %v1156 = vunpack.c.h.b16 %v1069
    %v1157 = vunpack.c.l.b16 %v1070
    %v1158 = vunpack.c.h.b16 %v1070
    %v1159 = vunpack.c.l.b16 %v1071
    %v1160 = vunpack.c.h.b16 %v1071
    %v1161 = vunpack.c.l.b16 %v1072
    %v1162 = vunpack.c.h.b16 %v1072
    %v1163 = vunpack.c.l.b16 %v1073
    %v1164 = vunpack.c.h.b16 %v1073
    %v1165 = vunpack.c.l.b16 %v1074
    %v1166 = vunpack.c.h.b16 %v1074
    %v1167 = vunpack.c.l.b16 %v1075
    %v1168 = vunpack.c.h.b16 %v1075
    %v1169 = vunpack.c.l.b16 %v1076
    %v1170 = vunpack.c.h.b16 %v1076
    %v1171 = vunpack.c.l.b16 %v1077
    %v1172 = vunpack.c.h.b16 %v1077
    %v1173 = vunpack.c.l.b16 %v1078
    %v1174 = vunpack.c.h.b16 %v1078
    %v1175 = vunpack.c.l.b16 %v1079
    %v1176 = vunpack.c.h.b16 %v1079
    %v1177 = vunpack.c.l.b16 %v1080
    %v1178 = vunpack.c.h.b16 %v1080
    %v1179 = vunpack.c.l.b16 %v1081
    %v1180 = vunpack.c.h.b16 %v1081
    %v1181 = vpack.c.b16 %v1121, %v1117
    %v1182 = vpack.c.b16 %v1122, %v1118
    %v1183 = vpack.c.b16 %v1123, %v1119
    %v1184 = vpack.c.b16 %v1124, %v1120
    %v1185 = vpack.c.b16 %v1129, %v1125
    %v1186 = vpack.c.b16 %v1130, %v1126
    %v1187 = vpack.c.b16 %v1131, %v1127
    %v1188 = vpack.c.b16 %v1132, %v1128
    %v1189 = vpack.c.b16 %v1137, %v1133
    %v1190 = vpack.c.b16 %v1138, %v1134
    %v1191 = vpack.c.b16 %v1139, %v1135
    %v1192 = vpack.c.b16 %v1140, %v1136
    %v1193 = vpack.c.b16 %v1145, %v1141
    %v1194 = vpack.c.b16 %v1146, %v1142
    %v1195 = vpack.c.b16 %v1147, %v1143
    %v1196 = vpack.c.b16 %v1148, %v1144
    %v1197 = vpack.c.b16 %v1153, %v1149
    %v1198 = vpack.c.b16 %v1154, %v1150
    %v1199 = vpack.c.b16 %v1155, %v1151
    %v1200 = vpack.c.b16 %v1156, %v1152
    %v1201 = vpack.c.b16 %v1161, %v1157
    %v1202 = vpack.c.b16 %v1162, %v1158
    %v1203 = vpack.c.b16 %v1163, %v1159
    %v1204 = vpack.c.b16 %v1164, %v1160
    %v1205 = vpack.c.b16 %v1169, %v1165
    %v1206 = vpack.c.b16 %v1170, %v1166
    %v1207 = vpack.c.b16 %v1171, %v1167
    %v1208 = vpack.c.b16 %v1172, %v1168
    %v1209 = vpack.c.b16 %v1177, %v1173
    %v1210 = vpack.c.b16 %v1178, %v1174
    %v1211 = vpack.c.b16 %v1179, %v1175
    %v1212 = vpack.c.b16 %v1180, %v1176
    %1245 = vmatprep.subr.bf16.mxu0 %v1182
    %1246 = vmatpush1.bf16.msra.mxu0 %v1181
    %1247 = vmatprep.subr.bf16.mxu0 %v1186
    %1248 = vmatpush1.bf16.msra.mxu0 %v1185
    %1249 = vmatprep.subr.bf16.mxu0 %v1190
    %1250 = vmatpush1.bf16.msra.mxu0 %v1189
    %1251 = vmatprep.subr.bf16.mxu0 %v1194
    %1252 = vmatpush1.bf16.msra.mxu0 %v1193
    %1253 = vmatprep.subr.bf16.mxu0 %v1198
    %1254 = vmatpush1.bf16.msra.mxu0 %v1197
    %1255 = vmatprep.subr.bf16.mxu0 %v1202
    %1256 = vmatpush1.bf16.msra.mxu0 %v1201
    %1257 = vmatprep.subr.bf16.mxu0 %v1206
    %1258 = vmatpush1.bf16.msra.mxu0 %v1205
    %1259 = vmatprep.subr.bf16.mxu0 %v1210
    %1260 = vmatpush1.bf16.msra.mxu0 %v1209
    %1261 = vmatprep.subr.bf16.mxu0 0
    %1262 = vmatpush1.bf16.msra.mxu0 0
    %1263 = vmatprep.subr.bf16.mxu0 0
    %1264 = vmatpush1.bf16.msra.mxu0 0
    %1265 = vmatprep.subr.bf16.mxu0 0
    %1266 = vmatpush1.bf16.msra.mxu0 0
    %1267 = vmatprep.subr.bf16.mxu0 0
    %1268 = vmatpush1.bf16.msra.mxu0 0
    %1269 = vmatprep.subr.bf16.mxu0 0
    %1270 = vmatpush1.bf16.msra.mxu0 0
    %1271 = vmatprep.subr.bf16.mxu0 0
    %1272 = vmatpush1.bf16.msra.mxu0 0
    %1273 = vmatprep.subr.bf16.mxu0 0
    %1274 = vmatpush1.bf16.msra.mxu0 0
    %1275 = vmatprep.subr.bf16.mxu0 0
    %1276 = vmatpush1.bf16.msra.mxu0 0
    %1277 = vmatprep.mubr.bf16.mxu0 0
    %1278 = vmatmul.mubr.bf16.gmra.mrb[0].mxu0 %v1083
    %v1279 = vpop.f32.mrb[0].mxu0
    %v1280 = vadd.f32 0.0, %v1279
    %v1281 = vpop.f32.mrb[0].mxu0
    %v1282 = vadd.f32 0.0, %v1281
    %v1283 = vpop.f32.mrb[0].mxu0
    %v1284 = vpop.f32.mrb[0].mxu0
    %1285 = vdwg.mxu0
    %1286 = vmatprep.subr.bf16.mxu0 %v1184
    %1287 = vmatpush1.bf16.msra.mxu0 %v1183
    %1288 = vmatprep.subr.bf16.mxu0 %v1188
    %1289 = vmatpush1.bf16.msra.mxu0 %v1187
    %1290 = vmatprep.subr.bf16.mxu0 %v1192
    %1291 = vmatpush1.bf16.msra.mxu0 %v1191
    %1292 = vmatprep.subr.bf16.mxu0 %v1196
    %1293 = vmatpush1.bf16.msra.mxu0 %v1195
    %1294 = vmatprep.subr.bf16.mxu0 %v1200
    %1295 = vmatpush1.bf16.msra.mxu0 %v1199
    %1296 = vmatprep.subr.bf16.mxu0 %v1204
    %1297 = vmatpush1.bf16.msra.mxu0 %v1203
    %1298 = vmatprep.subr.bf16.mxu0 %v1208
    %1299 = vmatpush1.bf16.msra.mxu0 %v1207
    %1300 = vmatprep.subr.bf16.mxu0 %v1212
    %1301 = vmatpush1.bf16.msra.mxu0 %v1211
    %1302 = vmatprep.subr.bf16.mxu0 0
    %1303 = vmatpush1.bf16.msra.mxu0 0
    %1304 = vmatprep.subr.bf16.mxu0 0
    %1305 = vmatpush1.bf16.msra.mxu0 0
    %1306 = vmatprep.subr.bf16.mxu0 0
    %1307 = vmatpush1.bf16.msra.mxu0 0
    %1308 = vmatprep.subr.bf16.mxu0 0
    %1309 = vmatpush1.bf16.msra.mxu0 0
    %1310 = vmatprep.subr.bf16.mxu0 0
    %1311 = vmatpush1.bf16.msra.mxu0 0
    %1312 = vmatprep.subr.bf16.mxu0 0
    %1313 = vmatpush1.bf16.msra.mxu0 0
    %1314 = vmatprep.subr.bf16.mxu0 0
    %1315 = vmatpush1.bf16.msra.mxu0 0
    %1316 = vmatprep.subr.bf16.mxu0 0
    %1317 = vmatpush1.bf16.msra.mxu0 0
    %1318 = vmatprep.mubr.bf16.mxu0 0
    %1319 = vmatmul.mubr.bf16.gmra.mrb[0].mxu0 %v1083
    %v1320 = vpop.f32.mrb[0].mxu0
    %v1321 = vadd.f32 0.0, %v1320
    %v1322 = vpop.f32.mrb[0].mxu0
    %v1323 = vadd.f32 0.0, %v1322
    %v1324 = vpop.f32.mrb[0].mxu0
    %v1325 = vpop.f32.mrb[0].mxu0
    %1326 = vdwg.mxu0
    %v1327 = vadd.f32 %v1045, %v1280
    %v1328 = vadd.f32 %v1046, %v1282
    %v1329 = vadd.f32 %v1047, %v1321
    %v1330 = vadd.f32 %v1048, %v1323
    %v1331 = vxor.u32 %v1327, 2147483648
    %v1332 = vxor.u32 %v1328, 2147483648
    %v1333 = vmul.f32 %v1331, 1.442695
    %v1334 = vpow.pop %v1333
    %v1335 = vmul.f32 %v1332, 1.442695
    %v1336 = vpow.pop %v1335
    %v1337 = vadd.f32 %v1334, 1.0
    %v1338 = vadd.f32 %v1336, 1.0
    %v1339 = vrcp.pop %v1337
    %v1340 = vmul.f32 1.0, %v1339
    %v1341 = vrcp.pop %v1338
    %v1342 = vmul.f32 1.0, %v1341
    %v1343 = vtanh.pop %v1329
    %v1344 = vxor.u32 %v1330, 2147483648
    %v1345 = vmul.f32 %v1344, 1.442695
    %v1346 = vpow.pop %v1345
    %v1347 = vadd.f32 %v1346, 1.0
    %v1348 = vrcp.pop %v1347
    %v1349 = vmul.f32 1.0, %v1348
    %v1351 = vrot.slane %v1041, 4
    %v1353 = vmul.f32 %v1342, %v1351
    %v1354 = vmul.f32 %v1340, %v1343
    %v1355 = vadd.f32 %v1353, %v1354
    %v1356 = vtanh.pop %v1355
    %v1357 = vmul.f32 %v1349, %v1356
    %1358 = vst [vmem:[#allocation3 + $0x8] sm:$0xf] %v1357
    %v1359 = vld [vmem:[#allocation2 + $0x20] sm:$0xf0]
    %v1360 = vld [vmem:[#allocation2 + $0x28] sm:$0xf0]
    %v1361 = vld [vmem:[#allocation2 + $0x30] sm:$0xf0]
    %v1362 = vld [vmem:[#allocation2 + $0x38] sm:$0xf0]
    %v1363 = vpack.c.bf16 %v1357, %v1357
    %v1364 = vld [vmem:[#allocation4] sm:$0xff]
    %v1365 = vld [vmem:[#allocation4 + $0x8] sm:$0xff]
    %v1366 = vld [vmem:[#allocation4 + $0x10] sm:$0xff]
    %v1367 = vld [vmem:[#allocation4 + $0x18] sm:$0xff]
    %v1368 = vld [vmem:[#allocation4 + $0x20] sm:$0xff]
    %v1369 = vld [vmem:[#allocation4 + $0x28] sm:$0xff]
    %v1370 = vld [vmem:[#allocation4 + $0x30] sm:$0xff]
    %v1371 = vld [vmem:[#allocation4 + $0x38] sm:$0xff]
    %v1372 = vld [vmem:[#allocation4 + $0x40] sm:$0xff]
    %v1373 = vld [vmem:[#allocation4 + $0x48] sm:$0xff]
    %v1374 = vld [vmem:[#allocation4 + $0x50] sm:$0xff]
    %v1375 = vld [vmem:[#allocation4 + $0x58] sm:$0xff]
    %v1376 = vld [vmem:[#allocation4 + $0x60] sm:$0xff]
    %v1377 = vld [vmem:[#allocation4 + $0x68] sm:$0xff]
    %v1378 = vld [vmem:[#allocation4 + $0x70] sm:$0xff]
    %v1379 = vld [vmem:[#allocation4 + $0x78] sm:$0xff]
    %v1380 = vld [vmem:[#allocation4 + $0x80] sm:$0xff]
    %v1381 = vld [vmem:[#allocation4 + $0x88] sm:$0xff]
    %v1382 = vld [vmem:[#allocation4 + $0x90] sm:$0xff]
    %v1383 = vld [vmem:[#allocation4 + $0x98] sm:$0xff]
    %v1384 = vld [vmem:[#allocation4 + $0xa0] sm:$0xff]
    %v1385 = vld [vmem:[#allocation4 + $0xa8] sm:$0xff]
    %v1386 = vld [vmem:[#allocation4 + $0xb0] sm:$0xff]
    %v1387 = vld [vmem:[#allocation4 + $0xb8] sm:$0xff]
    %v1388 = vld [vmem:[#allocation4 + $0xc0] sm:$0xff]
    %v1389 = vld [vmem:[#allocation4 + $0xc8] sm:$0xff]
    %v1390 = vld [vmem:[#allocation4 + $0xd0] sm:$0xff]
    %v1391 = vld [vmem:[#allocation4 + $0xd8] sm:$0xff]
    %v1392 = vld [vmem:[#allocation4 + $0xe0] sm:$0xff]
    %v1393 = vld [vmem:[#allocation4 + $0xe8] sm:$0xff]
    %v1394 = vld [vmem:[#allocation4 + $0xf0] sm:$0xff]
    %v1395 = vld [vmem:[#allocation4 + $0xf8] sm:$0xff]
    %v1428 = vunpack.c.l.b16 %v1364
    %v1429 = vunpack.c.h.b16 %v1364
    %v1430 = vunpack.c.l.b16 %v1365
    %v1431 = vunpack.c.h.b16 %v1365
    %v1432 = vunpack.c.l.b16 %v1366
    %v1433 = vunpack.c.h.b16 %v1366
    %v1434 = vunpack.c.l.b16 %v1367
    %v1435 = vunpack.c.h.b16 %v1367
    %v1436 = vunpack.c.l.b16 %v1368
    %v1437 = vunpack.c.h.b16 %v1368
    %v1438 = vunpack.c.l.b16 %v1369
    %v1439 = vunpack.c.h.b16 %v1369
    %v1440 = vunpack.c.l.b16 %v1370
    %v1441 = vunpack.c.h.b16 %v1370
    %v1442 = vunpack.c.l.b16 %v1371
    %v1443 = vunpack.c.h.b16 %v1371
    %v1444 = vunpack.c.l.b16 %v1372
    %v1445 = vunpack.c.h.b16 %v1372
    %v1446 = vunpack.c.l.b16 %v1373
    %v1447 = vunpack.c.h.b16 %v1373
    %v1448 = vunpack.c.l.b16 %v1374
    %v1449 = vunpack.c.h.b16 %v1374
    %v1450 = vunpack.c.l.b16 %v1375
    %v1451 = vunpack.c.h.b16 %v1375
    %v1452 = vunpack.c.l.b16 %v1376
    %v1453 = vunpack.c.h.b16 %v1376
    %v1454 = vunpack.c.l.b16 %v1377
    %v1455 = vunpack.c.h.b16 %v1377
    %v1456 = vunpack.c.l.b16 %v1378
    %v1457 = vunpack.c.h.b16 %v1378
    %v1458 = vunpack.c.l.b16 %v1379
    %v1459 = vunpack.c.h.b16 %v1379
    %v1460 = vunpack.c.l.b16 %v1380
    %v1461 = vunpack.c.h.b16 %v1380
    %v1462 = vunpack.c.l.b16 %v1381
    %v1463 = vunpack.c.h.b16 %v1381
    %v1464 = vunpack.c.l.b16 %v1382
    %v1465 = vunpack.c.h.b16 %v1382
    %v1466 = vunpack.c.l.b16 %v1383
    %v1467 = vunpack.c.h.b16 %v1383
    %v1468 = vunpack.c.l.b16 %v1384
    %v1469 = vunpack.c.h.b16 %v1384
    %v1470 = vunpack.c.l.b16 %v1385
    %v1471 = vunpack.c.h.b16 %v1385
    %v1472 = vunpack.c.l.b16 %v1386
    %v1473 = vunpack.c.h.b16 %v1386
    %v1474 = vunpack.c.l.b16 %v1387
    %v1475 = vunpack.c.h.b16 %v1387
    %v1476 = vunpack.c.l.b16 %v1388
    %v1477 = vunpack.c.h.b16 %v1388
    %v1478 = vunpack.c.l.b16 %v1389
    %v1479 = vunpack.c.h.b16 %v1389
    %v1480 = vunpack.c.l.b16 %v1390
    %v1481 = vunpack.c.h.b16 %v1390
    %v1482 = vunpack.c.l.b16 %v1391
    %v1483 = vunpack.c.h.b16 %v1391
    %v1484 = vunpack.c.l.b16 %v1392
    %v1485 = vunpack.c.h.b16 %v1392
    %v1486 = vunpack.c.l.b16 %v1393
    %v1487 = vunpack.c.h.b16 %v1393
    %v1488 = vunpack.c.l.b16 %v1394
    %v1489 = vunpack.c.h.b16 %v1394
    %v1490 = vunpack.c.l.b16 %v1395
    %v1491 = vunpack.c.h.b16 %v1395
    %v1492 = vpack.c.b16 %v1432, %v1428
    %v1493 = vpack.c.b16 %v1433, %v1429
    %v1494 = vpack.c.b16 %v1434, %v1430
    %v1495 = vpack.c.b16 %v1435, %v1431
    %v1496 = vpack.c.b16 %v1440, %v1436
    %v1497 = vpack.c.b16 %v1441, %v1437
    %v1498 = vpack.c.b16 %v1442, %v1438
    %v1499 = vpack.c.b16 %v1443, %v1439
    %v1500 = vpack.c.b16 %v1448, %v1444
    %v1501 = vpack.c.b16 %v1449, %v1445
    %v1502 = vpack.c.b16 %v1450, %v1446
    %v1503 = vpack.c.b16 %v1451, %v1447
    %v1504 = vpack.c.b16 %v1456, %v1452
    %v1505 = vpack.c.b16 %v1457, %v1453
    %v1506 = vpack.c.b16 %v1458, %v1454
    %v1507 = vpack.c.b16 %v1459, %v1455
    %v1508 = vpack.c.b16 %v1464, %v1460
    %v1509 = vpack.c.b16 %v1465, %v1461
    %v1510 = vpack.c.b16 %v1466, %v1462
    %v1511 = vpack.c.b16 %v1467, %v1463
    %v1512 = vpack.c.b16 %v1472, %v1468
    %v1513 = vpack.c.b16 %v1473, %v1469
    %v1514 = vpack.c.b16 %v1474, %v1470
    %v1515 = vpack.c.b16 %v1475, %v1471
    %v1516 = vpack.c.b16 %v1480, %v1476
    %v1517 = vpack.c.b16 %v1481, %v1477
    %v1518 = vpack.c.b16 %v1482, %v1478
    %v1519 = vpack.c.b16 %v1483, %v1479
    %v1520 = vpack.c.b16 %v1488, %v1484
    %v1521 = vpack.c.b16 %v1489, %v1485
    %v1522 = vpack.c.b16 %v1490, %v1486
    %v1523 = vpack.c.b16 %v1491, %v1487
    %1556 = vmatprep.subr.bf16.mxu0 %v1493
    %1557 = vmatpush1.bf16.msra.mxu0 %v1492
    %1558 = vmatprep.subr.bf16.mxu0 %v1497
    %1559 = vmatpush1.bf16.msra.mxu0 %v1496
    %1560 = vmatprep.subr.bf16.mxu0 %v1501
    %1561 = vmatpush1.bf16.msra.mxu0 %v1500
    %1562 = vmatprep.subr.bf16.mxu0 %v1505
    %1563 = vmatpush1.bf16.msra.mxu0 %v1504
    %1564 = vmatprep.subr.bf16.mxu0 %v1509
    %1565 = vmatpush1.bf16.msra.mxu0 %v1508
    %1566 = vmatprep.subr.bf16.mxu0 %v1513
    %1567 = vmatpush1.bf16.msra.mxu0 %v1512
    %1568 = vmatprep.subr.bf16.mxu0 %v1517
    %1569 = vmatpush1.bf16.msra.mxu0 %v1516
    %1570 = vmatprep.subr.bf16.mxu0 %v1521
    %1571 = vmatpush1.bf16.msra.mxu0 %v1520
    %1572 = vmatprep.subr.bf16.mxu0 0
    %1573 = vmatpush1.bf16.msra.mxu0 0
    %1574 = vmatprep.subr.bf16.mxu0 0
    %1575 = vmatpush1.bf16.msra.mxu0 0
    %1576 = vmatprep.subr.bf16.mxu0 0
    %1577 = vmatpush1.bf16.msra.mxu0 0
    %1578 = vmatprep.subr.bf16.mxu0 0
    %1579 = vmatpush1.bf16.msra.mxu0 0
    %1580 = vmatprep.subr.bf16.mxu0 0
    %1581 = vmatpush1.bf16.msra.mxu0 0
    %1582 = vmatprep.subr.bf16.mxu0 0
    %1583 = vmatpush1.bf16.msra.mxu0 0
    %1584 = vmatprep.subr.bf16.mxu0 0
    %1585 = vmatpush1.bf16.msra.mxu0 0
    %1586 = vmatprep.subr.bf16.mxu0 0
    %1587 = vmatpush1.bf16.msra.mxu0 0
    %1588 = vmatprep.mubr.bf16.mxu0 0
    %1589 = vmatmul.mubr.bf16.gmra.mrb[0].mxu0 %v1363
    %v1590 = vpop.f32.mrb[0].mxu0
    %v1591 = vadd.f32 0.0, %v1590
    %v1592 = vpop.f32.mrb[0].mxu0
    %v1593 = vadd.f32 0.0, %v1592
    %v1594 = vpop.f32.mrb[0].mxu0
    %v1595 = vpop.f32.mrb[0].mxu0
    %1596 = vdwg.mxu0
    %1597 = vmatprep.subr.bf16.mxu0 %v1495
    %1598 = vmatpush1.bf16.msra.mxu0 %v1494
    %1599 = vmatprep.subr.bf16.mxu0 %v1499
    %1600 = vmatpush1.bf16.msra.mxu0 %v1498
    %1601 = vmatprep.subr.bf16.mxu0 %v1503
    %1602 = vmatpush1.bf16.msra.mxu0 %v1502
    %1603 = vmatprep.subr.bf16.mxu0 %v1507
    %1604 = vmatpush1.bf16.msra.mxu0 %v1506
    %1605 = vmatprep.subr.bf16.mxu0 %v1511
    %1606 = vmatpush1.bf16.msra.mxu0 %v1510
    %1607 = vmatprep.subr.bf16.mxu0 %v1515
    %1608 = vmatpush1.bf16.msra.mxu0 %v1514
    %1609 = vmatprep.subr.bf16.mxu0 %v1519
    %1610 = vmatpush1.bf16.msra.mxu0 %v1518
    %1611 = vmatprep.subr.bf16.mxu0 %v1523
    %1612 = vmatpush1.bf16.msra.mxu0 %v1522
    %1613 = vmatprep.subr.bf16.mxu0 0
    %1614 = vmatpush1.bf16.msra.mxu0 0
    %1615 = vmatprep.subr.bf16.mxu0 0
    %1616 = vmatpush1.bf16.msra.mxu0 0
    %1617 = vmatprep.subr.bf16.mxu0 0
    %1618 = vmatpush1.bf16.msra.mxu0 0
    %1619 = vmatprep.subr.bf16.mxu0 0
    %1620 = vmatpush1.bf16.msra.mxu0 0
    %1621 = vmatprep.subr.bf16.mxu0 0
    %1622 = vmatpush1.bf16.msra.mxu0 0
    %1623 = vmatprep.subr.bf16.mxu0 0
    %1624 = vmatpush1.bf16.msra.mxu0 0
    %1625 = vmatprep.subr.bf16.mxu0 0
    %1626 = vmatpush1.bf16.msra.mxu0 0
    %1627 = vmatprep.subr.bf16.mxu0 0
    %1628 = vmatpush1.bf16.msra.mxu0 0
    %1629 = vmatprep.mubr.bf16.mxu0 0
    %1630 = vmatmul.mubr.bf16.gmra.mrb[0].mxu0 %v1363
    %v1631 = vpop.f32.mrb[0].mxu0
    %v1632 = vadd.f32 0.0, %v1631
    %v1633 = vpop.f32.mrb[0].mxu0
    %v1634 = vadd.f32 0.0, %v1633
    %v1635 = vpop.f32.mrb[0].mxu0
    %v1636 = vpop.f32.mrb[0].mxu0
    %1637 = vdwg.mxu0
    %v1642 = vrot.slane %v1591, 4
    %v1643 = vrot.slane %v1593, 4
    %v1644 = vrot.slane %v1632, 4
    %v1645 = vrot.slane %v1634, 4
    %v1650 = vadd.f32 %v1359, %v1642
    %v1651 = vadd.f32 %v1360, %v1643
    %v1652 = vadd.f32 %v1361, %v1644
    %v1653 = vadd.f32 %v1362, %v1645
    %v1654 = vxor.u32 %v1650, 2147483648
    %v1655 = vxor.u32 %v1651, 2147483648
    %v1656 = vmul.f32 %v1654, 1.442695
    %v1657 = vpow.pop %v1656
    %v1658 = vmul.f32 %v1655, 1.442695
    %v1659 = vpow.pop %v1658
    %v1660 = vadd.f32 %v1657, 1.0
    %v1661 = vadd.f32 %v1659, 1.0
    %v1662 = vrcp.pop %v1660
    %v1663 = vmul.f32 1.0, %v1662
    %v1664 = vrcp.pop %v1661
    %v1665 = vmul.f32 1.0, %v1664
    %v1666 = vtanh.pop %v1652
    %v1667 = vxor.u32 %v1653, 2147483648
    %v1668 = vmul.f32 %v1667, 1.442695
    %v1669 = vpow.pop %v1668
    %v1670 = vadd.f32 %v1669, 1.0
    %v1671 = vrcp.pop %v1670
    %v1672 = vmul.f32 1.0, %v1671
    %v1674 = vrot.slane %v1355, 4
    %v1676 = vmul.f32 %v1665, %v1674
    %v1677 = vmul.f32 %v1663, %v1666
    %v1678 = vadd.f32 %v1676, %v1677
    %v1679 = vtanh.pop %v1678
    %v1680 = vmul.f32 %v1672, %v1679
    %1681 = vst [vmem:[#allocation3 + $0x8] sm:$0xf0] %v1680
    %v1682 = vld [vmem:[#allocation2 + $0x40] sm:$0xf]
    %v1683 = vld [vmem:[#allocation2 + $0x48] sm:$0xf]
    %v1684 = vld [vmem:[#allocation2 + $0x50] sm:$0xf]
    %v1685 = vld [vmem:[#allocation2 + $0x58] sm:$0xf]
    %v1686 = vpack.c.bf16 %v1680, %v1680
    %v1687 = vld [vmem:[#allocation4] sm:$0xff]
    %v1688 = vld [vmem:[#allocation4 + $0x8] sm:$0xff]
    %v1689 = vld [vmem:[#allocation4 + $0x10] sm:$0xff]
    %v1690 = vld [vmem:[#allocation4 + $0x18] sm:$0xff]
    %v1691 = vld [vmem:[#allocation4 + $0x20] sm:$0xff]
    %v1692 = vld [vmem:[#allocation4 + $0x28] sm:$0xff]
    %v1693 = vld [vmem:[#allocation4 + $0x30] sm:$0xff]
    %v1694 = vld [vmem:[#allocation4 + $0x38] sm:$0xff]
    %v1695 = vld [vmem:[#allocation4 + $0x40] sm:$0xff]
    %v1696 = vld [vmem:[#allocation4 + $0x48] sm:$0xff]
    %v1697 = vld [vmem:[#allocation4 + $0x50] sm:$0xff]
    %v1698 = vld [vmem:[#allocation4 + $0x58] sm:$0xff]
    %v1699 = vld [vmem:[#allocation4 + $0x60] sm:$0xff]
    %v1700 = vld [vmem:[#allocation4 + $0x68] sm:$0xff]
    %v1701 = vld [vmem:[#allocation4 + $0x70] sm:$0xff]
    %v1702 = vld [vmem:[#allocation4 + $0x78] sm:$0xff]
    %v1703 = vld [vmem:[#allocation4 + $0x80] sm:$0xff]
    %v1704 = vld [vmem:[#allocation4 + $0x88] sm:$0xff]
    %v1705 = vld [vmem:[#allocation4 + $0x90] sm:$0xff]
    %v1706 = vld [vmem:[#allocation4 + $0x98] sm:$0xff]
    %v1707 = vld [vmem:[#allocation4 + $0xa0] sm:$0xff]
    %v1708 = vld [vmem:[#allocation4 + $0xa8] sm:$0xff]
    %v1709 = vld [vmem:[#allocation4 + $0xb0] sm:$0xff]
    %v1710 = vld [vmem:[#allocation4 + $0xb8] sm:$0xff]
    %v1711 = vld [vmem:[#allocation4 + $0xc0] sm:$0xff]
    %v1712 = vld [vmem:[#allocation4 + $0xc8] sm:$0xff]
    %v1713 = vld [vmem:[#allocation4 + $0xd0] sm:$0xff]
    %v1714 = vld [vmem:[#allocation4 + $0xd8] sm:$0xff]
    %v1715 = vld [vmem:[#allocation4 + $0xe0] sm:$0xff]
    %v1716 = vld [vmem:[#allocation4 + $0xe8] sm:$0xff]
    %v1717 = vld [vmem:[#allocation4 + $0xf0] sm:$0xff]
    %v1718 = vld [vmem:[#allocation4 + $0xf8] sm:$0xff]
    %v1720 = vrot.slane %v1686, 2
    %v1754 = vunpack.c.l.b16 %v1687
    %v1755 = vunpack.c.h.b16 %v1687
    %v1756 = vunpack.c.l.b16 %v1688
    %v1757 = vunpack.c.h.b16 %v1688
    %v1758 = vunpack.c.l.b16 %v1689
    %v1759 = vunpack.c.h.b16 %v1689
    %v1760 = vunpack.c.l.b16 %v1690
    %v1761 = vunpack.c.h.b16 %v1690
    %v1762 = vunpack.c.l.b16 %v1691
    %v1763 = vunpack.c.h.b16 %v1691
    %v1764 = vunpack.c.l.b16 %v1692
    %v1765 = vunpack.c.h.b16 %v1692
    %v1766 = vunpack.c.l.b16 %v1693
    %v1767 = vunpack.c.h.b16 %v1693
    %v1768 = vunpack.c.l.b16 %v1694
    %v1769 = vunpack.c.h.b16 %v1694
    %v1770 = vunpack.c.l.b16 %v1695
    %v1771 = vunpack.c.h.b16 %v1695
    %v1772 = vunpack.c.l.b16 %v1696
    %v1773 = vunpack.c.h.b16 %v1696
    %v1774 = vunpack.c.l.b16 %v1697
    %v1775 = vunpack.c.h.b16 %v1697
    %v1776 = vunpack.c.l.b16 %v1698
    %v1777 = vunpack.c.h.b16 %v1698
    %v1778 = vunpack.c.l.b16 %v1699
    %v1779 = vunpack.c.h.b16 %v1699
    %v1780 = vunpack.c.l.b16 %v1700
    %v1781 = vunpack.c.h.b16 %v1700
    %v1782 = vunpack.c.l.b16 %v1701
    %v1783 = vunpack.c.h.b16 %v1701
    %v1784 = vunpack.c.l.b16 %v1702
    %v1785 = vunpack.c.h.b16 %v1702
    %v1786 = vunpack.c.l.b16 %v1703
    %v1787 = vunpack.c.h.b16 %v1703
    %v1788 = vunpack.c.l.b16 %v1704
    %v1789 = vunpack.c.h.b16 %v1704
    %v1790 = vunpack.c.l.b16 %v1705
    %v1791 = vunpack.c.h.b16 %v1705
    %v1792 = vunpack.c.l.b16 %v1706
    %v1793 = vunpack.c.h.b16 %v1706
    %v1794 = vunpack.c.l.b16 %v1707
    %v1795 = vunpack.c.h.b16 %v1707
    %v1796 = vunpack.c.l.b16 %v1708
    %v1797 = vunpack.c.h.b16 %v1708
    %v1798 = vunpack.c.l.b16 %v1709
    %v1799 = vunpack.c.h.b16 %v1709
    %v1800 = vunpack.c.l.b16 %v1710
    %v1801 = vunpack.c.h.b16 %v1710
    %v1802 = vunpack.c.l.b16 %v1711
    %v1803 = vunpack.c.h.b16 %v1711
    %v1804 = vunpack.c.l.b16 %v1712
    %v1805 = vunpack.c.h.b16 %v1712
    %v1806 = vunpack.c.l.b16 %v1713
    %v1807 = vunpack.c.h.b16 %v1713
    %v1808 = vunpack.c.l.b16 %v1714
    %v1809 = vunpack.c.h.b16 %v1714
    %v1810 = vunpack.c.l.b16 %v1715
    %v1811 = vunpack.c.h.b16 %v1715
    %v1812 = vunpack.c.l.b16 %v1716
    %v1813 = vunpack.c.h.b16 %v1716
    %v1814 = vunpack.c.l.b16 %v1717
    %v1815 = vunpack.c.h.b16 %v1717
    %v1816 = vunpack.c.l.b16 %v1718
    %v1817 = vunpack.c.h.b16 %v1718
    %v1818 = vpack.c.b16 %v1758, %v1754
    %v1819 = vpack.c.b16 %v1759, %v1755
    %v1820 = vpack.c.b16 %v1760, %v1756
    %v1821 = vpack.c.b16 %v1761, %v1757
    %v1822 = vpack.c.b16 %v1766, %v1762
    %v1823 = vpack.c.b16 %v1767, %v1763
    %v1824 = vpack.c.b16 %v1768, %v1764
    %v1825 = vpack.c.b16 %v1769, %v1765
    %v1826 = vpack.c.b16 %v1774, %v1770
    %v1827 = vpack.c.b16 %v1775, %v1771
    %v1828 = vpack.c.b16 %v1776, %v1772
    %v1829 = vpack.c.b16 %v1777, %v1773
    %v1830 = vpack.c.b16 %v1782, %v1778
    %v1831 = vpack.c.b16 %v1783, %v1779
    %v1832 = vpack.c.b16 %v1784, %v1780
    %v1833 = vpack.c.b16 %v1785, %v1781
    %v1834 = vpack.c.b16 %v1790, %v1786
    %v1835 = vpack.c.b16 %v1791, %v1787
    %v1836 = vpack.c.b16 %v1792, %v1788
    %v1837 = vpack.c.b16 %v1793, %v1789
    %v1838 = vpack.c.b16 %v1798, %v1794
    %v1839 = vpack.c.b16 %v1799, %v1795
    %v1840 = vpack.c.b16 %v1800, %v1796
    %v1841 = vpack.c.b16 %v1801, %v1797
    %v1842 = vpack.c.b16 %v1806, %v1802
    %v1843 = vpack.c.b16 %v1807, %v1803
    %v1844 = vpack.c.b16 %v1808, %v1804
    %v1845 = vpack.c.b16 %v1809, %v1805
    %v1846 = vpack.c.b16 %v1814, %v1810
    %v1847 = vpack.c.b16 %v1815, %v1811
    %v1848 = vpack.c.b16 %v1816, %v1812
    %v1849 = vpack.c.b16 %v1817, %v1813
    %1882 = vmatprep.subr.bf16.mxu0 %v1819
    %1883 = vmatpush1.bf16.msra.mxu0 %v1818
    %1884 = vmatprep.subr.bf16.mxu0 %v1823
    %1885 = vmatpush1.bf16.msra.mxu0 %v1822
    %1886 = vmatprep.subr.bf16.mxu0 %v1827
    %1887 = vmatpush1.bf16.msra.mxu0 %v1826
    %1888 = vmatprep.subr.bf16.mxu0 %v1831
    %1889 = vmatpush1.bf16.msra.mxu0 %v1830
    %1890 = vmatprep.subr.bf16.mxu0 %v1835
    %1891 = vmatpush1.bf16.msra.mxu0 %v1834
    %1892 = vmatprep.subr.bf16.mxu0 %v1839
    %1893 = vmatpush1.bf16.msra.mxu0 %v1838
    %1894 = vmatprep.subr.bf16.mxu0 %v1843
    %1895 = vmatpush1.bf16.msra.mxu0 %v1842
    %1896 = vmatprep.subr.bf16.mxu0 %v1847
    %1897 = vmatpush1.bf16.msra.mxu0 %v1846
    %1898 = vmatprep.subr.bf16.mxu0 0
    %1899 = vmatpush1.bf16.msra.mxu0 0
    %1900 = vmatprep.subr.bf16.mxu0 0
    %1901 = vmatpush1.bf16.msra.mxu0 0
    %1902 = vmatprep.subr.bf16.mxu0 0
    %1903 = vmatpush1.bf16.msra.mxu0 0
    %1904 = vmatprep.subr.bf16.mxu0 0
    %1905 = vmatpush1.bf16.msra.mxu0 0
    %1906 = vmatprep.subr.bf16.mxu0 0
    %1907 = vmatpush1.bf16.msra.mxu0 0
    %1908 = vmatprep.subr.bf16.mxu0 0
    %1909 = vmatpush1.bf16.msra.mxu0 0
    %1910 = vmatprep.subr.bf16.mxu0 0
    %1911 = vmatpush1.bf16.msra.mxu0 0
    %1912 = vmatprep.subr.bf16.mxu0 0
    %1913 = vmatpush1.bf16.msra.mxu0 0
    %1914 = vmatprep.mubr.bf16.mxu0 0
    %1915 = vmatmul.mubr.bf16.gmra.mrb[0].mxu0 %v1720
    %v1916 = vpop.f32.mrb[0].mxu0
    %v1917 = vadd.f32 0.0, %v1916
    %v1918 = vpop.f32.mrb[0].mxu0
    %v1919 = vadd.f32 0.0, %v1918
    %v1920 = vpop.f32.mrb[0].mxu0
    %v1921 = vpop.f32.mrb[0].mxu0
    %1922 = vdwg.mxu0
    %1923 = vmatprep.subr.bf16.mxu0 %v1821
    %1924 = vmatpush1.bf16.msra.mxu0 %v1820
    %1925 = vmatprep.subr.bf16.mxu0 %v1825
    %1926 = vmatpush1.bf16.msra.mxu0 %v1824
    %1927 = vmatprep.subr.bf16.mxu0 %v1829
    %1928 = vmatpush1.bf16.msra.mxu0 %v1828
    %1929 = vmatprep.subr.bf16.mxu0 %v1833
    %1930 = vmatpush1.bf16.msra.mxu0 %v1832
    %1931 = vmatprep.subr.bf16.mxu0 %v1837
    %1932 = vmatpush1.bf16.msra.mxu0 %v1836
    %1933 = vmatprep.subr.bf16.mxu0 %v1841
    %1934 = vmatpush1.bf16.msra.mxu0 %v1840
    %1935 = vmatprep.subr.bf16.mxu0 %v1845
    %1936 = vmatpush1.bf16.msra.mxu0 %v1844
    %1937 = vmatprep.subr.bf16.mxu0 %v1849
    %1938 = vmatpush1.bf16.msra.mxu0 %v1848
    %1939 = vmatprep.subr.bf16.mxu0 0
    %1940 = vmatpush1.bf16.msra.mxu0 0
    %1941 = vmatprep.subr.bf16.mxu0 0
    %1942 = vmatpush1.bf16.msra.mxu0 0
    %1943 = vmatprep.subr.bf16.mxu0 0
    %1944 = vmatpush1.bf16.msra.mxu0 0
    %1945 = vmatprep.subr.bf16.mxu0 0
    %1946 = vmatpush1.bf16.msra.mxu0 0
    %1947 = vmatprep.subr.bf16.mxu0 0
    %1948 = vmatpush1.bf16.msra.mxu0 0
    %1949 = vmatprep.subr.bf16.mxu0 0
    %1950 = vmatpush1.bf16.msra.mxu0 0
    %1951 = vmatprep.subr.bf16.mxu0 0
    %1952 = vmatpush1.bf16.msra.mxu0 0
    %1953 = vmatprep.subr.bf16.mxu0 0
    %1954 = vmatpush1.bf16.msra.mxu0 0
    %1955 = vmatprep.mubr.bf16.mxu0 0
    %1956 = vmatmul.mubr.bf16.gmra.mrb[0].mxu0 %v1720
    %v1957 = vpop.f32.mrb[0].mxu0
    %v1958 = vadd.f32 0.0, %v1957
    %v1959 = vpop.f32.mrb[0].mxu0
    %v1960 = vadd.f32 0.0, %v1959
    %v1961 = vpop.f32.mrb[0].mxu0
    %v1962 = vpop.f32.mrb[0].mxu0
    %1963 = vdwg.mxu0
    %v1964 = vadd.f32 %v1682, %v1917
    %v1965 = vadd.f32 %v1683, %v1919
    %v1966 = vadd.f32 %v1684, %v1958
    %v1967 = vadd.f32 %v1685, %v1960
    %v1968 = vxor.u32 %v1964, 2147483648
    %v1969 = vxor.u32 %v1965, 2147483648
    %v1970 = vmul.f32 %v1968, 1.442695
    %v1971 = vpow.pop %v1970
    %v1972 = vmul.f32 %v1969, 1.442695
    %v1973 = vpow.pop %v1972
    %v1974 = vadd.f32 %v1971, 1.0
    %v1975 = vadd.f32 %v1973, 1.0
    %v1976 = vrcp.pop %v1974
    %v1977 = vmul.f32 1.0, %v1976
    %v1978 = vrcp.pop %v1975
    %v1979 = vmul.f32 1.0, %v1978
    %v1980 = vtanh.pop %v1966
    %v1981 = vxor.u32 %v1967, 2147483648
    %v1982 = vmul.f32 %v1981, 1.442695
    %v1983 = vpow.pop %v1982
    %v1984 = vadd.f32 %v1983, 1.0
    %v1985 = vrcp.pop %v1984
    %v1986 = vmul.f32 1.0, %v1985
    %v1988 = vrot.slane %v1678, 4
    %v1990 = vmul.f32 %v1979, %v1988
    %v1991 = vmul.f32 %v1977, %v1980
    %v1992 = vadd.f32 %v1990, %v1991
    %v1993 = vtanh.pop %v1992
    %v1994 = vmul.f32 %v1986, %v1993
    %1995 = vst [vmem:[#allocation3 + $0x10] sm:$0xf] %v1994
    %v1996 = vld [vmem:[#allocation2 + $0x40] sm:$0xf0]
    %v1997 = vld [vmem:[#allocation2 + $0x48] sm:$0xf0]
    %v1998 = vld [vmem:[#allocation2 + $0x50] sm:$0xf0]
    %v1999 = vld [vmem:[#allocation2 + $0x58] sm:$0xf0]
    %v2000 = vpack.c.bf16 %v1994, %v1994
    %v2001 = vld [vmem:[#allocation4] sm:$0xff]
    %v2002 = vld [vmem:[#allocation4 + $0x8] sm:$0xff]
    %v2003 = vld [vmem:[#allocation4 + $0x10] sm:$0xff]
    %v2004 = vld [vmem:[#allocation4 + $0x18] sm:$0xff]
    %v2005 = vld [vmem:[#allocation4 + $0x20] sm:$0xff]
    %v2006 = vld [vmem:[#allocation4 + $0x28] sm:$0xff]
    %v2007 = vld [vmem:[#allocation4 + $0x30] sm:$0xff]
    %v2008 = vld [vmem:[#allocation4 + $0x38] sm:$0xff]
    %v2009 = vld [vmem:[#allocation4 + $0x40] sm:$0xff]
    %v2010 = vld [vmem:[#allocation4 + $0x48] sm:$0xff]
    %v2011 = vld [vmem:[#allocation4 + $0x50] sm:$0xff]
    %v2012 = vld [vmem:[#allocation4 + $0x58] sm:$0xff]
    %v2013 = vld [vmem:[#allocation4 + $0x60] sm:$0xff]
    %v2014 = vld [vmem:[#allocation4 + $0x68] sm:$0xff]
    %v2015 = vld [vmem:[#allocation4 + $0x70] sm:$0xff]
    %v2016 = vld [vmem:[#allocation4 + $0x78] sm:$0xff]
    %v2017 = vld [vmem:[#allocation4 + $0x80] sm:$0xff]
    %v2018 = vld [vmem:[#allocation4 + $0x88] sm:$0xff]
    %v2019 = vld [vmem:[#allocation4 + $0x90] sm:$0xff]
    %v2020 = vld [vmem:[#allocation4 + $0x98] sm:$0xff]
    %v2021 = vld [vmem:[#allocation4 + $0xa0] sm:$0xff]
    %v2022 = vld [vmem:[#allocation4 + $0xa8] sm:$0xff]
    %v2023 = vld [vmem:[#allocation4 + $0xb0] sm:$0xff]
    %v2024 = vld [vmem:[#allocation4 + $0xb8] sm:$0xff]
    %v2025 = vld [vmem:[#allocation4 + $0xc0] sm:$0xff]
    %v2026 = vld [vmem:[#allocation4 + $0xc8] sm:$0xff]
    %v2027 = vld [vmem:[#allocation4 + $0xd0] sm:$0xff]
    %v2028 = vld [vmem:[#allocation4 + $0xd8] sm:$0xff]
    %v2029 = vld [vmem:[#allocation4 + $0xe0] sm:$0xff]
    %v2030 = vld [vmem:[#allocation4 + $0xe8] sm:$0xff]
    %v2031 = vld [vmem:[#allocation4 + $0xf0] sm:$0xff]
    %v2032 = vld [vmem:[#allocation4 + $0xf8] sm:$0xff]
    %v2065 = vunpack.c.l.b16 %v2001
    %v2066 = vunpack.c.h.b16 %v2001
    %v2067 = vunpack.c.l.b16 %v2002
    %v2068 = vunpack.c.h.b16 %v2002
    %v2069 = vunpack.c.l.b16 %v2003
    %v2070 = vunpack.c.h.b16 %v2003
    %v2071 = vunpack.c.l.b16 %v2004
    %v2072 = vunpack.c.h.b16 %v2004
    %v2073 = vunpack.c.l.b16 %v2005
    %v2074 = vunpack.c.h.b16 %v2005
    %v2075 = vunpack.c.l.b16 %v2006
    %v2076 = vunpack.c.h.b16 %v2006
    %v2077 = vunpack.c.l.b16 %v2007
    %v2078 = vunpack.c.h.b16 %v2007
    %v2079 = vunpack.c.l.b16 %v2008
    %v2080 = vunpack.c.h.b16 %v2008
    %v2081 = vunpack.c.l.b16 %v2009
    %v2082 = vunpack.c.h.b16 %v2009
    %v2083 = vunpack.c.l.b16 %v2010
    %v2084 = vunpack.c.h.b16 %v2010
    %v2085 = vunpack.c.l.b16 %v2011
    %v2086 = vunpack.c.h.b16 %v2011
    %v2087 = vunpack.c.l.b16 %v2012
    %v2088 = vunpack.c.h.b16 %v2012
    %v2089 = vunpack.c.l.b16 %v2013
    %v2090 = vunpack.c.h.b16 %v2013
    %v2091 = vunpack.c.l.b16 %v2014
    %v2092 = vunpack.c.h.b16 %v2014
    %v2093 = vunpack.c.l.b16 %v2015
    %v2094 = vunpack.c.h.b16 %v2015
    %v2095 = vunpack.c.l.b16 %v2016
    %v2096 = vunpack.c.h.b16 %v2016
    %v2097 = vunpack.c.l.b16 %v2017
    %v2098 = vunpack.c.h.b16 %v2017
    %v2099 = vunpack.c.l.b16 %v2018
    %v2100 = vunpack.c.h.b16 %v2018
    %v2101 = vunpack.c.l.b16 %v2019
    %v2102 = vunpack.c.h.b16 %v2019
    %v2103 = vunpack.c.l.b16 %v2020
    %v2104 = vunpack.c.h.b16 %v2020
    %v2105 = vunpack.c.l.b16 %v2021
    %v2106 = vunpack.c.h.b16 %v2021
    %v2107 = vunpack.c.l.b16 %v2022
    %v2108 = vunpack.c.h.b16 %v2022
    %v2109 = vunpack.c.l.b16 %v2023
    %v2110 = vunpack.c.h.b16 %v2023
    %v2111 = vunpack.c.l.b16 %v2024
    %v2112 = vunpack.c.h.b16 %v2024
    %v2113 = vunpack.c.l.b16 %v2025
    %v2114 = vunpack.c.h.b16 %v2025
    %v2115 = vunpack.c.l.b16 %v2026
    %v2116 = vunpack.c.h.b16 %v2026
    %v2117 = vunpack.c.l.b16 %v2027
    %v2118 = vunpack.c.h.b16 %v2027
    %v2119 = vunpack.c.l.b16 %v2028
    %v2120 = vunpack.c.h.b16 %v2028
    %v2121 = vunpack.c.l.b16 %v2029
    %v2122 = vunpack.c.h.b16 %v2029
    %v2123 = vunpack.c.l.b16 %v2030
    %v2124 = vunpack.c.h.b16 %v2030
    %v2125 = vunpack.c.l.b16 %v2031
    %v2126 = vunpack.c.h.b16 %v2031
    %v2127 = vunpack.c.l.b16 %v2032
    %v2128 = vunpack.c.h.b16 %v2032
    %v2129 = vpack.c.b16 %v2069, %v2065
    %v2130 = vpack.c.b16 %v2070, %v2066
    %v2131 = vpack.c.b16 %v2071, %v2067
    %v2132 = vpack.c.b16 %v2072, %v2068
    %v2133 = vpack.c.b16 %v2077, %v2073
    %v2134 = vpack.c.b16 %v2078, %v2074
    %v2135 = vpack.c.b16 %v2079, %v2075
    %v2136 = vpack.c.b16 %v2080, %v2076
    %v2137 = vpack.c.b16 %v2085, %v2081
    %v2138 = vpack.c.b16 %v2086, %v2082
    %v2139 = vpack.c.b16 %v2087, %v2083
    %v2140 = vpack.c.b16 %v2088, %v2084
    %v2141 = vpack.c.b16 %v2093, %v2089
    %v2142 = vpack.c.b16 %v2094, %v2090
    %v2143 = vpack.c.b16 %v2095, %v2091
    %v2144 = vpack.c.b16 %v2096, %v2092
    %v2145 = vpack.c.b16 %v2101, %v2097
    %v2146 = vpack.c.b16 %v2102, %v2098
    %v2147 = vpack.c.b16 %v2103, %v2099
    %v2148 = vpack.c.b16 %v2104, %v2100
    %v2149 = vpack.c.b16 %v2109, %v2105
    %v2150 = vpack.c.b16 %v2110, %v2106
    %v2151 = vpack.c.b16 %v2111, %v2107
    %v2152 = vpack.c.b16 %v2112, %v2108
    %v2153 = vpack.c.b16 %v2117, %v2113
    %v2154 = vpack.c.b16 %v2118, %v2114
    %v2155 = vpack.c.b16 %v2119, %v2115
    %v2156 = vpack.c.b16 %v2120, %v2116
    %v2157 = vpack.c.b16 %v2125, %v2121
    %v2158 = vpack.c.b16 %v2126, %v2122
    %v2159 = vpack.c.b16 %v2127, %v2123
    %v2160 = vpack.c.b16 %v2128, %v2124
    %2193 = vmatprep.subr.bf16.mxu0 %v2130
    %2194 = vmatpush1.bf16.msra.mxu0 %v2129
    %2195 = vmatprep.subr.bf16.mxu0 %v2134
    %2196 = vmatpush1.bf16.msra.mxu0 %v2133
    %2197 = vmatprep.subr.bf16.mxu0 %v2138
    %2198 = vmatpush1.bf16.msra.mxu0 %v2137
    %2199 = vmatprep.subr.bf16.mxu0 %v2142
    %2200 = vmatpush1.bf16.msra.mxu0 %v2141
    %2201 = vmatprep.subr.bf16.mxu0 %v2146
    %2202 = vmatpush1.bf16.msra.mxu0 %v2145
    %2203 = vmatprep.subr.bf16.mxu0 %v2150
    %2204 = vmatpush1.bf16.msra.mxu0 %v2149
    %2205 = vmatprep.subr.bf16.mxu0 %v2154
    %2206 = vmatpush1.bf16.msra.mxu0 %v2153
    %2207 = vmatprep.subr.bf16.mxu0 %v2158
    %2208 = vmatpush1.bf16.msra.mxu0 %v2157
    %2209 = vmatprep.subr.bf16.mxu0 0
    %2210 = vmatpush1.bf16.msra.mxu0 0
    %2211 = vmatprep.subr.bf16.mxu0 0
    %2212 = vmatpush1.bf16.msra.mxu0 0
    %2213 = vmatprep.subr.bf16.mxu0 0
    %2214 = vmatpush1.bf16.msra.mxu0 0
    %2215 = vmatprep.subr.bf16.mxu0 0
    %2216 = vmatpush1.bf16.msra.mxu0 0
    %2217 = vmatprep.subr.bf16.mxu0 0
    %2218 = vmatpush1.bf16.msra.mxu0 0
    %2219 = vmatprep.subr.bf16.mxu0 0
    %2220 = vmatpush1.bf16.msra.mxu0 0
    %2221 = vmatprep.subr.bf16.mxu0 0
    %2222 = vmatpush1.bf16.msra.mxu0 0
    %2223 = vmatprep.subr.bf16.mxu0 0
    %2224 = vmatpush1.bf16.msra.mxu0 0
    %2225 = vmatprep.mubr.bf16.mxu0 0
    %2226 = vmatmul.mubr.bf16.gmra.mrb[0].mxu0 %v2000
    %v2227 = vpop.f32.mrb[0].mxu0
    %v2228 = vadd.f32 0.0, %v2227
    %v2229 = vpop.f32.mrb[0].mxu0
    %v2230 = vadd.f32 0.0, %v2229
    %v2231 = vpop.f32.mrb[0].mxu0
    %v2232 = vpop.f32.mrb[0].mxu0
    %2233 = vdwg.mxu0
    %2234 = vmatprep.subr.bf16.mxu0 %v2132
    %2235 = vmatpush1.bf16.msra.mxu0 %v2131
    %2236 = vmatprep.subr.bf16.mxu0 %v2136
    %2237 = vmatpush1.bf16.msra.mxu0 %v2135
    %2238 = vmatprep.subr.bf16.mxu0 %v2140
    %2239 = vmatpush1.bf16.msra.mxu0 %v2139
    %2240 = vmatprep.subr.bf16.mxu0 %v2144
    %2241 = vmatpush1.bf16.msra.mxu0 %v2143
    %2242 = vmatprep.subr.bf16.mxu0 %v2148
    %2243 = vmatpush1.bf16.msra.mxu0 %v2147
    %2244 = vmatprep.subr.bf16.mxu0 %v2152
    %2245 = vmatpush1.bf16.msra.mxu0 %v2151
    %2246 = vmatprep.subr.bf16.mxu0 %v2156
    %2247 = vmatpush1.bf16.msra.mxu0 %v2155
    %2248 = vmatprep.subr.bf16.mxu0 %v2160
    %2249 = vmatpush1.bf16.msra.mxu0 %v2159
    %2250 = vmatprep.subr.bf16.mxu0 0
    %2251 = vmatpush1.bf16.msra.mxu0 0
    %2252 = vmatprep.subr.bf16.mxu0 0
    %2253 = vmatpush1.bf16.msra.mxu0 0
    %2254 = vmatprep.subr.bf16.mxu0 0
    %2255 = vmatpush1.bf16.msra.mxu0 0
    %2256 = vmatprep.subr.bf16.mxu0 0
    %2257 = vmatpush1.bf16.msra.mxu0 0
    %2258 = vmatprep.subr.bf16.mxu0 0
    %2259 = vmatpush1.bf16.msra.mxu0 0
    %2260 = vmatprep.subr.bf16.mxu0 0
    %2261 = vmatpush1.bf16.msra.mxu0 0
    %2262 = vmatprep.subr.bf16.mxu0 0
    %2263 = vmatpush1.bf16.msra.mxu0 0
    %2264 = vmatprep.subr.bf16.mxu0 0
    %2265 = vmatpush1.bf16.msra.mxu0 0
    %2266 = vmatprep.mubr.bf16.mxu0 0
    %2267 = vmatmul.mubr.bf16.gmra.mrb[0].mxu0 %v2000
    %v2268 = vpop.f32.mrb[0].mxu0
    %v2269 = vadd.f32 0.0, %v2268
    %v2270 = vpop.f32.mrb[0].mxu0
    %v2271 = vadd.f32 0.0, %v2270
    %v2272 = vpop.f32.mrb[0].mxu0
    %v2273 = vpop.f32.mrb[0].mxu0
    %2274 = vdwg.mxu0
    %v2279 = vrot.slane %v2228, 4
    %v2280 = vrot.slane %v2230, 4
    %v2281 = vrot.slane %v2269, 4
    %v2282 = vrot.slane %v2271, 4
    %v2287 = vadd.f32 %v1996, %v2279
    %v2288 = vadd.f32 %v1997, %v2280
    %v2289 = vadd.f32 %v1998, %v2281
    %v2290 = vadd.f32 %v1999, %v2282
    %v2291 = vxor.u32 %v2287, 2147483648
    %v2292 = vxor.u32 %v2288, 2147483648
    %v2293 = vmul.f32 %v2291, 1.442695
    %v2294 = vpow.pop %v2293
    %v2295 = vmul.f32 %v2292, 1.442695
    %v2296 = vpow.pop %v2295
    %v2297 = vadd.f32 %v2294, 1.0
    %v2298 = vadd.f32 %v2296, 1.0
    %v2299 = vrcp.pop %v2297
    %v2300 = vmul.f32 1.0, %v2299
    %v2301 = vrcp.pop %v2298
    %v2302 = vmul.f32 1.0, %v2301
    %v2303 = vtanh.pop %v2289
    %v2304 = vxor.u32 %v2290, 2147483648
    %v2305 = vmul.f32 %v2304, 1.442695
    %v2306 = vpow.pop %v2305
    %v2307 = vadd.f32 %v2306, 1.0
    %v2308 = vrcp.pop %v2307
    %v2309 = vmul.f32 1.0, %v2308
    %v2311 = vrot.slane %v1992, 4
    %v2313 = vmul.f32 %v2302, %v2311
    %v2314 = vmul.f32 %v2300, %v2303
    %v2315 = vadd.f32 %v2313, %v2314
    %v2316 = vtanh.pop %v2315
    %v2317 = vmul.f32 %v2309, %v2316
    %2318 = vst [vmem:[#allocation3 + $0x10] sm:$0xf0] %v2317
    %v2319 = vld [vmem:[#allocation2 + $0x60] sm:$0xf]
    %v2320 = vld [vmem:[#allocation2 + $0x68] sm:$0xf]
    %v2321 = vld [vmem:[#allocation2 + $0x70] sm:$0xf]
    %v2322 = vld [vmem:[#allocation2 + $0x78] sm:$0xf]
    %v2323 = vpack.c.bf16 %v2317, %v2317
    %v2324 = vld [vmem:[#allocation4] sm:$0xff]
    %v2325 = vld [vmem:[#allocation4 + $0x8] sm:$0xff]
    %v2326 = vld [vmem:[#allocation4 + $0x10] sm:$0xff]
    %v2327 = vld [vmem:[#allocation4 + $0x18] sm:$0xff]
    %v2328 = vld [vmem:[#allocation4 + $0x20] sm:$0xff]
    %v2329 = vld [vmem:[#allocation4 + $0x28] sm:$0xff]
    %v2330 = vld [vmem:[#allocation4 + $0x30] sm:$0xff]
    %v2331 = vld [vmem:[#allocation4 + $0x38] sm:$0xff]
    %v2332 = vld [vmem:[#allocation4 + $0x40] sm:$0xff]
    %v2333 = vld [vmem:[#allocation4 + $0x48] sm:$0xff]
    %v2334 = vld [vmem:[#allocation4 + $0x50] sm:$0xff]
    %v2335 = vld [vmem:[#allocation4 + $0x58] sm:$0xff]
    %v2336 = vld [vmem:[#allocation4 + $0x60] sm:$0xff]
    %v2337 = vld [vmem:[#allocation4 + $0x68] sm:$0xff]
    %v2338 = vld [vmem:[#allocation4 + $0x70] sm:$0xff]
    %v2339 = vld [vmem:[#allocation4 + $0x78] sm:$0xff]
    %v2340 = vld [vmem:[#allocation4 + $0x80] sm:$0xff]
    %v2341 = vld [vmem:[#allocation4 + $0x88] sm:$0xff]
    %v2342 = vld [vmem:[#allocation4 + $0x90] sm:$0xff]
    %v2343 = vld [vmem:[#allocation4 + $0x98] sm:$0xff]
    %v2344 = vld [vmem:[#allocation4 + $0xa0] sm:$0xff]
    %v2345 = vld [vmem:[#allocation4 + $0xa8] sm:$0xff]
    %v2346 = vld [vmem:[#allocation4 + $0xb0] sm:$0xff]
    %v2347 = vld [vmem:[#allocation4 + $0xb8] sm:$0xff]
    %v2348 = vld [vmem:[#allocation4 + $0xc0] sm:$0xff]
    %v2349 = vld [vmem:[#allocation4 + $0xc8] sm:$0xff]
    %v2350 = vld [vmem:[#allocation4 + $0xd0] sm:$0xff]
    %v2351 = vld [vmem:[#allocation4 + $0xd8] sm:$0xff]
    %v2352 = vld [vmem:[#allocation4 + $0xe0] sm:$0xff]
    %v2353 = vld [vmem:[#allocation4 + $0xe8] sm:$0xff]
    %v2354 = vld [vmem:[#allocation4 + $0xf0] sm:$0xff]
    %v2355 = vld [vmem:[#allocation4 + $0xf8] sm:$0xff]
    %v2357 = vrot.slane %v2323, 2
    %v2391 = vunpack.c.l.b16 %v2324
    %v2392 = vunpack.c.h.b16 %v2324
    %v2393 = vunpack.c.l.b16 %v2325
    %v2394 = vunpack.c.h.b16 %v2325
    %v2395 = vunpack.c.l.b16 %v2326
    %v2396 = vunpack.c.h.b16 %v2326
    %v2397 = vunpack.c.l.b16 %v2327
    %v2398 = vunpack.c.h.b16 %v2327
    %v2399 = vunpack.c.l.b16 %v2328
    %v2400 = vunpack.c.h.b16 %v2328
    %v2401 = vunpack.c.l.b16 %v2329
    %v2402 = vunpack.c.h.b16 %v2329
    %v2403 = vunpack.c.l.b16 %v2330
    %v2404 = vunpack.c.h.b16 %v2330
    %v2405 = vunpack.c.l.b16 %v2331
    %v2406 = vunpack.c.h.b16 %v2331
    %v2407 = vunpack.c.l.b16 %v2332
    %v2408 = vunpack.c.h.b16 %v2332
    %v2409 = vunpack.c.l.b16 %v2333
    %v2410 = vunpack.c.h.b16 %v2333
    %v2411 = vunpack.c.l.b16 %v2334
    %v2412 = vunpack.c.h.b16 %v2334
    %v2413 = vunpack.c.l.b16 %v2335
    %v2414 = vunpack.c.h.b16 %v2335
    %v2415 = vunpack.c.l.b16 %v2336
    %v2416 = vunpack.c.h.b16 %v2336
    %v2417 = vunpack.c.l.b16 %v2337
    %v2418 = vunpack.c.h.b16 %v2337
    %v2419 = vunpack.c.l.b16 %v2338
    %v2420 = vunpack.c.h.b16 %v2338
    %v2421 = vunpack.c.l.b16 %v2339
    %v2422 = vunpack.c.h.b16 %v2339
    %v2423 = vunpack.c.l.b16 %v2340
    %v2424 = vunpack.c.h.b16 %v2340
    %v2425 = vunpack.c.l.b16 %v2341
    %v2426 = vunpack.c.h.b16 %v2341
    %v2427 = vunpack.c.l.b16 %v2342
    %v2428 = vunpack.c.h.b16 %v2342
    %v2429 = vunpack.c.l.b16 %v2343
    %v2430 = vunpack.c.h.b16 %v2343
    %v2431 = vunpack.c.l.b16 %v2344
    %v2432 = vunpack.c.h.b16 %v2344
    %v2433 = vunpack.c.l.b16 %v2345
    %v2434 = vunpack.c.h.b16 %v2345
    %v2435 = vunpack.c.l.b16 %v2346
    %v2436 = vunpack.c.h.b16 %v2346
    %v2437 = vunpack.c.l.b16 %v2347
    %v2438 = vunpack.c.h.b16 %v2347
    %v2439 = vunpack.c.l.b16 %v2348
    %v2440 = vunpack.c.h.b16 %v2348
    %v2441 = vunpack.c.l.b16 %v2349
    %v2442 = vunpack.c.h.b16 %v2349
    %v2443 = vunpack.c.l.b16 %v2350
    %v2444 = vunpack.c.h.b16 %v2350
    %v2445 = vunpack.c.l.b16 %v2351
    %v2446 = vunpack.c.h.b16 %v2351
    %v2447 = vunpack.c.l.b16 %v2352
    %v2448 = vunpack.c.h.b16 %v2352
    %v2449 = vunpack.c.l.b16 %v2353
    %v2450 = vunpack.c.h.b16 %v2353
    %v2451 = vunpack.c.l.b16 %v2354
    %v2452 = vunpack.c.h.b16 %v2354
    %v2453 = vunpack.c.l.b16 %v2355
    %v2454 = vunpack.c.h.b16 %v2355
    %v2455 = vpack.c.b16 %v2395, %v2391
    %v2456 = vpack.c.b16 %v2396, %v2392
    %v2457 = vpack.c.b16 %v2397, %v2393
    %v2458 = vpack.c.b16 %v2398, %v2394
    %v2459 = vpack.c.b16 %v2403, %v2399
    %v2460 = vpack.c.b16 %v2404, %v2400
    %v2461 = vpack.c.b16 %v2405, %v2401
    %v2462 = vpack.c.b16 %v2406, %v2402
    %v2463 = vpack.c.b16 %v2411, %v2407
    %v2464 = vpack.c.b16 %v2412, %v2408
    %v2465 = vpack.c.b16 %v2413, %v2409
    %v2466 = vpack.c.b16 %v2414, %v2410
    %v2467 = vpack.c.b16 %v2419, %v2415
    %v2468 = vpack.c.b16 %v2420, %v2416
    %v2469 = vpack.c.b16 %v2421, %v2417
    %v2470 = vpack.c.b16 %v2422, %v2418
    %v2471 = vpack.c.b16 %v2427, %v2423
    %v2472 = vpack.c.b16 %v2428, %v2424
    %v2473 = vpack.c.b16 %v2429, %v2425
    %v2474 = vpack.c.b16 %v2430, %v2426
    %v2475 = vpack.c.b16 %v2435, %v2431
    %v2476 = vpack.c.b16 %v2436, %v2432
    %v2477 = vpack.c.b16 %v2437, %v2433
    %v2478 = vpack.c.b16 %v2438, %v2434
    %v2479 = vpack.c.b16 %v2443, %v2439
    %v2480 = vpack.c.b16 %v2444, %v2440
    %v2481 = vpack.c.b16 %v2445, %v2441
    %v2482 = vpack.c.b16 %v2446, %v2442
    %v2483 = vpack.c.b16 %v2451, %v2447
    %v2484 = vpack.c.b16 %v2452, %v2448
    %v2485 = vpack.c.b16 %v2453, %v2449
    %v2486 = vpack.c.b16 %v2454, %v2450
    %2519 = vmatprep.subr.bf16.mxu0 %v2456
    %2520 = vmatpush1.bf16.msra.mxu0 %v2455
    %2521 = vmatprep.subr.bf16.mxu0 %v2460
    %2522 = vmatpush1.bf16.msra.mxu0 %v2459
    %2523 = vmatprep.subr.bf16.mxu0 %v2464
    %2524 = vmatpush1.bf16.msra.mxu0 %v2463
    %2525 = vmatprep.subr.bf16.mxu0 %v2468
    %2526 = vmatpush1.bf16.msra.mxu0 %v2467
    %2527 = vmatprep.subr.bf16.mxu0 %v2472
    %2528 = vmatpush1.bf16.msra.mxu0 %v2471
    %2529 = vmatprep.subr.bf16.mxu0 %v2476
    %2530 = vmatpush1.bf16.msra.mxu0 %v2475
    %2531 = vmatprep.subr.bf16.mxu0 %v2480
    %2532 = vmatpush1.bf16.msra.mxu0 %v2479
    %2533 = vmatprep.subr.bf16.mxu0 %v2484
    %2534 = vmatpush1.bf16.msra.mxu0 %v2483
    %2535 = vmatprep.subr.bf16.mxu0 0
    %2536 = vmatpush1.bf16.msra.mxu0 0
    %2537 = vmatprep.subr.bf16.mxu0 0
    %2538 = vmatpush1.bf16.msra.mxu0 0
    %2539 = vmatprep.subr.bf16.mxu0 0
    %2540 = vmatpush1.bf16.msra.mxu0 0
    %2541 = vmatprep.subr.bf16.mxu0 0
    %2542 = vmatpush1.bf16.msra.mxu0 0
    %2543 = vmatprep.subr.bf16.mxu0 0
    %2544 = vmatpush1.bf16.msra.mxu0 0
    %2545 = vmatprep.subr.bf16.mxu0 0
    %2546 = vmatpush1.bf16.msra.mxu0 0
    %2547 = vmatprep.subr.bf16.mxu0 0
    %2548 = vmatpush1.bf16.msra.mxu0 0
    %2549 = vmatprep.subr.bf16.mxu0 0
    %2550 = vmatpush1.bf16.msra.mxu0 0
    %2551 = vmatprep.mubr.bf16.mxu0 0
    %2552 = vmatmul.mubr.bf16.gmra.mrb[0].mxu0 %v2357
    %v2553 = vpop.f32.mrb[0].mxu0
    %v2554 = vadd.f32 0.0, %v2553
    %v2555 = vpop.f32.mrb[0].mxu0
    %v2556 = vadd.f32 0.0, %v2555
    %v2557 = vpop.f32.mrb[0].mxu0
    %v2558 = vpop.f32.mrb[0].mxu0
    %2559 = vdwg.mxu0
    %2560 = vmatprep.subr.bf16.mxu0 %v2458
    %2561 = vmatpush1.bf16.msra.mxu0 %v2457
    %2562 = vmatprep.subr.bf16.mxu0 %v2462
    %2563 = vmatpush1.bf16.msra.mxu0 %v2461
    %2564 = vmatprep.subr.bf16.mxu0 %v2466
    %2565 = vmatpush1.bf16.msra.mxu0 %v2465
    %2566 = vmatprep.subr.bf16.mxu0 %v2470
    %2567 = vmatpush1.bf16.msra.mxu0 %v2469
    %2568 = vmatprep.subr.bf16.mxu0 %v2474
    %2569 = vmatpush1.bf16.msra.mxu0 %v2473
    %2570 = vmatprep.subr.bf16.mxu0 %v2478
    %2571 = vmatpush1.bf16.msra.mxu0 %v2477
    %2572 = vmatprep.subr.bf16.mxu0 %v2482
    %2573 = vmatpush1.bf16.msra.mxu0 %v2481
    %2574 = vmatprep.subr.bf16.mxu0 %v2486
    %2575 = vmatpush1.bf16.msra.mxu0 %v2485
    %2576 = vmatprep.subr.bf16.mxu0 0
    %2577 = vmatpush1.bf16.msra.mxu0 0
    %2578 = vmatprep.subr.bf16.mxu0 0
    %2579 = vmatpush1.bf16.msra.mxu0 0
    %2580 = vmatprep.subr.bf16.mxu0 0
    %2581 = vmatpush1.bf16.msra.mxu0 0
    %2582 = vmatprep.subr.bf16.mxu0 0
    %2583 = vmatpush1.bf16.msra.mxu0 0
    %2584 = vmatprep.subr.bf16.mxu0 0
    %2585 = vmatpush1.bf16.msra.mxu0 0
    %2586 = vmatprep.subr.bf16.mxu0 0
    %2587 = vmatpush1.bf16.msra.mxu0 0
    %2588 = vmatprep.subr.bf16.mxu0 0
    %2589 = vmatpush1.bf16.msra.mxu0 0
    %2590 = vmatprep.subr.bf16.mxu0 0
    %2591 = vmatpush1.bf16.msra.mxu0 0
    %2592 = vmatprep.mubr.bf16.mxu0 0
    %2593 = vmatmul.mubr.bf16.gmra.mrb[0].mxu0 %v2357
    %v2594 = vpop.f32.mrb[0].mxu0
    %v2595 = vadd.f32 0.0, %v2594
    %v2596 = vpop.f32.mrb[0].mxu0
    %v2597 = vadd.f32 0.0, %v2596
    %v2598 = vpop.f32.mrb[0].mxu0
    %v2599 = vpop.f32.mrb[0].mxu0
    %2600 = vdwg.mxu0
    %v2601 = vadd.f32 %v2319, %v2554
    %v2602 = vadd.f32 %v2320, %v2556
    %v2603 = vadd.f32 %v2321, %v2595
    %v2604 = vadd.f32 %v2322, %v2597
    %v2605 = vxor.u32 %v2601, 2147483648
    %v2606 = vxor.u32 %v2602, 2147483648
    %v2607 = vmul.f32 %v2605, 1.442695
    %v2608 = vpow.pop %v2607
    %v2609 = vmul.f32 %v2606, 1.442695
    %v2610 = vpow.pop %v2609
    %v2611 = vadd.f32 %v2608, 1.0
    %v2612 = vadd.f32 %v2610, 1.0
    %v2613 = vrcp.pop %v2611
    %v2614 = vmul.f32 1.0, %v2613
    %v2615 = vrcp.pop %v2612
    %v2616 = vmul.f32 1.0, %v2615
    %v2617 = vtanh.pop %v2603
    %v2618 = vxor.u32 %v2604, 2147483648
    %v2619 = vmul.f32 %v2618, 1.442695
    %v2620 = vpow.pop %v2619
    %v2621 = vadd.f32 %v2620, 1.0
    %v2622 = vrcp.pop %v2621
    %v2623 = vmul.f32 1.0, %v2622
    %v2625 = vrot.slane %v2315, 4
    %v2627 = vmul.f32 %v2616, %v2625
    %v2628 = vmul.f32 %v2614, %v2617
    %v2629 = vadd.f32 %v2627, %v2628
    %v2630 = vtanh.pop %v2629
    %v2631 = vmul.f32 %v2623, %v2630
    %2632 = vst [vmem:[#allocation3 + $0x18] sm:$0xf] %v2631
    %v2633 = vld [vmem:[#allocation2 + $0x60] sm:$0xf0]
    %v2634 = vld [vmem:[#allocation2 + $0x68] sm:$0xf0]
    %v2635 = vld [vmem:[#allocation2 + $0x70] sm:$0xf0]
    %v2636 = vld [vmem:[#allocation2 + $0x78] sm:$0xf0]
    %v2637 = vpack.c.bf16 %v2631, %v2631
    %v2638 = vld [vmem:[#allocation4] sm:$0xff]
    %v2639 = vld [vmem:[#allocation4 + $0x8] sm:$0xff]
    %v2640 = vld [vmem:[#allocation4 + $0x10] sm:$0xff]
    %v2641 = vld [vmem:[#allocation4 + $0x18] sm:$0xff]
    %v2642 = vld [vmem:[#allocation4 + $0x20] sm:$0xff]
    %v2643 = vld [vmem:[#allocation4 + $0x28] sm:$0xff]
    %v2644 = vld [vmem:[#allocation4 + $0x30] sm:$0xff]
    %v2645 = vld [vmem:[#allocation4 + $0x38] sm:$0xff]
    %v2646 = vld [vmem:[#allocation4 + $0x40] sm:$0xff]
    %v2647 = vld [vmem:[#allocation4 + $0x48] sm:$0xff]
    %v2648 = vld [vmem:[#allocation4 + $0x50] sm:$0xff]
    %v2649 = vld [vmem:[#allocation4 + $0x58] sm:$0xff]
    %v2650 = vld [vmem:[#allocation4 + $0x60] sm:$0xff]
    %v2651 = vld [vmem:[#allocation4 + $0x68] sm:$0xff]
    %v2652 = vld [vmem:[#allocation4 + $0x70] sm:$0xff]
    %v2653 = vld [vmem:[#allocation4 + $0x78] sm:$0xff]
    %v2654 = vld [vmem:[#allocation4 + $0x80] sm:$0xff]
    %v2655 = vld [vmem:[#allocation4 + $0x88] sm:$0xff]
    %v2656 = vld [vmem:[#allocation4 + $0x90] sm:$0xff]
    %v2657 = vld [vmem:[#allocation4 + $0x98] sm:$0xff]
    %v2658 = vld [vmem:[#allocation4 + $0xa0] sm:$0xff]
    %v2659 = vld [vmem:[#allocation4 + $0xa8] sm:$0xff]
    %v2660 = vld [vmem:[#allocation4 + $0xb0] sm:$0xff]
    %v2661 = vld [vmem:[#allocation4 + $0xb8] sm:$0xff]
    %v2662 = vld [vmem:[#allocation4 + $0xc0] sm:$0xff]
    %v2663 = vld [vmem:[#allocation4 + $0xc8] sm:$0xff]
    %v2664 = vld [vmem:[#allocation4 + $0xd0] sm:$0xff]
    %v2665 = vld [vmem:[#allocation4 + $0xd8] sm:$0xff]
    %v2666 = vld [vmem:[#allocation4 + $0xe0] sm:$0xff]
    %v2667 = vld [vmem:[#allocation4 + $0xe8] sm:$0xff]
    %v2668 = vld [vmem:[#allocation4 + $0xf0] sm:$0xff]
    %v2669 = vld [vmem:[#allocation4 + $0xf8] sm:$0xff]
    %v2702 = vunpack.c.l.b16 %v2638
    %v2703 = vunpack.c.h.b16 %v2638
    %v2704 = vunpack.c.l.b16 %v2639
    %v2705 = vunpack.c.h.b16 %v2639
    %v2706 = vunpack.c.l.b16 %v2640
    %v2707 = vunpack.c.h.b16 %v2640
    %v2708 = vunpack.c.l.b16 %v2641
    %v2709 = vunpack.c.h.b16 %v2641
    %v2710 = vunpack.c.l.b16 %v2642
    %v2711 = vunpack.c.h.b16 %v2642
    %v2712 = vunpack.c.l.b16 %v2643
    %v2713 = vunpack.c.h.b16 %v2643
    %v2714 = vunpack.c.l.b16 %v2644
    %v2715 = vunpack.c.h.b16 %v2644
    %v2716 = vunpack.c.l.b16 %v2645
    %v2717 = vunpack.c.h.b16 %v2645
    %v2718 = vunpack.c.l.b16 %v2646
    %v2719 = vunpack.c.h.b16 %v2646
    %v2720 = vunpack.c.l.b16 %v2647
    %v2721 = vunpack.c.h.b16 %v2647
    %v2722 = vunpack.c.l.b16 %v2648
    %v2723 = vunpack.c.h.b16 %v2648
    %v2724 = vunpack.c.l.b16 %v2649
    %v2725 = vunpack.c.h.b16 %v2649
    %v2726 = vunpack.c.l.b16 %v2650
    %v2727 = vunpack.c.h.b16 %v2650
    %v2728 = vunpack.c.l.b16 %v2651
    %v2729 = vunpack.c.h.b16 %v2651
    %v2730 = vunpack.c.l.b16 %v2652
    %v2731 = vunpack.c.h.b16 %v2652
    %v2732 = vunpack.c.l.b16 %v2653
    %v2733 = vunpack.c.h.b16 %v2653
    %v2734 = vunpack.c.l.b16 %v2654
    %v2735 = vunpack.c.h.b16 %v2654
    %v2736 = vunpack.c.l.b16 %v2655
    %v2737 = vunpack.c.h.b16 %v2655
    %v2738 = vunpack.c.l.b16 %v2656
    %v2739 = vunpack.c.h.b16 %v2656
    %v2740 = vunpack.c.l.b16 %v2657
    %v2741 = vunpack.c.h.b16 %v2657
    %v2742 = vunpack.c.l.b16 %v2658
    %v2743 = vunpack.c.h.b16 %v2658
    %v2744 = vunpack.c.l.b16 %v2659
    %v2745 = vunpack.c.h.b16 %v2659
    %v2746 = vunpack.c.l.b16 %v2660
    %v2747 = vunpack.c.h.b16 %v2660
    %v2748 = vunpack.c.l.b16 %v2661
    %v2749 = vunpack.c.h.b16 %v2661
    %v2750 = vunpack.c.l.b16 %v2662
    %v2751 = vunpack.c.h.b16 %v2662
    %v2752 = vunpack.c.l.b16 %v2663
    %v2753 = vunpack.c.h.b16 %v2663
    %v2754 = vunpack.c.l.b16 %v2664
    %v2755 = vunpack.c.h.b16 %v2664
    %v2756 = vunpack.c.l.b16 %v2665
    %v2757 = vunpack.c.h.b16 %v2665
    %v2758 = vunpack.c.l.b16 %v2666
    %v2759 = vunpack.c.h.b16 %v2666
    %v2760 = vunpack.c.l.b16 %v2667
    %v2761 = vunpack.c.h.b16 %v2667
    %v2762 = vunpack.c.l.b16 %v2668
    %v2763 = vunpack.c.h.b16 %v2668
    %v2764 = vunpack.c.l.b16 %v2669
    %v2765 = vunpack.c.h.b16 %v2669
    %v2766 = vpack.c.b16 %v2706, %v2702
    %v2767 = vpack.c.b16 %v2707, %v2703
    %v2768 = vpack.c.b16 %v2708, %v2704
    %v2769 = vpack.c.b16 %v2709, %v2705
    %v2770 = vpack.c.b16 %v2714, %v2710
    %v2771 = vpack.c.b16 %v2715, %v2711
    %v2772 = vpack.c.b16 %v2716, %v2712
    %v2773 = vpack.c.b16 %v2717, %v2713
    %v2774 = vpack.c.b16 %v2722, %v2718
    %v2775 = vpack.c.b16 %v2723, %v2719
    %v2776 = vpack.c.b16 %v2724, %v2720
    %v2777 = vpack.c.b16 %v2725, %v2721
    %v2778 = vpack.c.b16 %v2730, %v2726
    %v2779 = vpack.c.b16 %v2731, %v2727
    %v2780 = vpack.c.b16 %v2732, %v2728
    %v2781 = vpack.c.b16 %v2733, %v2729
    %v2782 = vpack.c.b16 %v2738, %v2734
    %v2783 = vpack.c.b16 %v2739, %v2735
    %v2784 = vpack.c.b16 %v2740, %v2736
    %v2785 = vpack.c.b16 %v2741, %v2737
    %v2786 = vpack.c.b16 %v2746, %v2742
    %v2787 = vpack.c.b16 %v2747, %v2743
    %v2788 = vpack.c.b16 %v2748, %v2744
    %v2789 = vpack.c.b16 %v2749, %v2745
    %v2790 = vpack.c.b16 %v2754, %v2750
    %v2791 = vpack.c.b16 %v2755, %v2751
    %v2792 = vpack.c.b16 %v2756, %v2752
    %v2793 = vpack.c.b16 %v2757, %v2753
    %v2794 = vpack.c.b16 %v2762, %v2758
    %v2795 = vpack.c.b16 %v2763, %v2759
    %v2796 = vpack.c.b16 %v2764, %v2760
    %v2797 = vpack.c.b16 %v2765, %v2761
    %2830 = vmatprep.subr.bf16.mxu0 %v2767
    %2831 = vmatpush1.bf16.msra.mxu0 %v2766
    %2832 = vmatprep.subr.bf16.mxu0 %v2771
    %2833 = vmatpush1.bf16.msra.mxu0 %v2770
    %2834 = vmatprep.subr.bf16.mxu0 %v2775
    %2835 = vmatpush1.bf16.msra.mxu0 %v2774
    %2836 = vmatprep.subr.bf16.mxu0 %v2779
    %2837 = vmatpush1.bf16.msra.mxu0 %v2778
    %2838 = vmatprep.subr.bf16.mxu0 %v2783
    %2839 = vmatpush1.bf16.msra.mxu0 %v2782
    %2840 = vmatprep.subr.bf16.mxu0 %v2787
    %2841 = vmatpush1.bf16.msra.mxu0 %v2786
    %2842 = vmatprep.subr.bf16.mxu0 %v2791
    %2843 = vmatpush1.bf16.msra.mxu0 %v2790
    %2844 = vmatprep.subr.bf16.mxu0 %v2795
    %2845 = vmatpush1.bf16.msra.mxu0 %v2794
    %2846 = vmatprep.subr.bf16.mxu0 0
    %2847 = vmatpush1.bf16.msra.mxu0 0
    %2848 = vmatprep.subr.bf16.mxu0 0
    %2849 = vmatpush1.bf16.msra.mxu0 0
    %2850 = vmatprep.subr.bf16.mxu0 0
    %2851 = vmatpush1.bf16.msra.mxu0 0
    %2852 = vmatprep.subr.bf16.mxu0 0
    %2853 = vmatpush1.bf16.msra.mxu0 0
    %2854 = vmatprep.subr.bf16.mxu0 0
    %2855 = vmatpush1.bf16.msra.mxu0 0
    %2856 = vmatprep.subr.bf16.mxu0 0
    %2857 = vmatpush1.bf16.msra.mxu0 0
    %2858 = vmatprep.subr.bf16.mxu0 0
    %2859 = vmatpush1.bf16.msra.mxu0 0
    %2860 = vmatprep.subr.bf16.mxu0 0
    %2861 = vmatpush1.bf16.msra.mxu0 0
    %2862 = vmatprep.mubr.bf16.mxu0 0
    %2863 = vmatmul.mubr.bf16.gmra.mrb[0].mxu0 %v2637
    %v2864 = vpop.f32.mrb[0].mxu0
    %v2865 = vadd.f32 0.0, %v2864
    %v2866 = vpop.f32.mrb[0].mxu0
    %v2867 = vadd.f32 0.0, %v2866
    %v2868 = vpop.f32.mrb[0].mxu0
    %v2869 = vpop.f32.mrb[0].mxu0
    %2870 = vdwg.mxu0
    %2871 = vmatprep.subr.bf16.mxu0 %v2769
    %2872 = vmatpush1.bf16.msra.mxu0 %v2768
    %2873 = vmatprep.subr.bf16.mxu0 %v2773
    %2874 = vmatpush1.bf16.msra.mxu0 %v2772
    %2875 = vmatprep.subr.bf16.mxu0 %v2777
    %2876 = vmatpush1.bf16.msra.mxu0 %v2776
    %2877 = vmatprep.subr.bf16.mxu0 %v2781
    %2878 = vmatpush1.bf16.msra.mxu0 %v2780
    %2879 = vmatprep.subr.bf16.mxu0 %v2785
    %2880 = vmatpush1.bf16.msra.mxu0 %v2784
    %2881 = vmatprep.subr.bf16.mxu0 %v2789
    %2882 = vmatpush1.bf16.msra.mxu0 %v2788
    %2883 = vmatprep.subr.bf16.mxu0 %v2793
    %2884 = vmatpush1.bf16.msra.mxu0 %v2792
    %2885 = vmatprep.subr.bf16.mxu0 %v2797
    %2886 = vmatpush1.bf16.msra.mxu0 %v2796
    %2887 = vmatprep.subr.bf16.mxu0 0
    %2888 = vmatpush1.bf16.msra.mxu0 0
    %2889 = vmatprep.subr.bf16.mxu0 0
    %2890 = vmatpush1.bf16.msra.mxu0 0
    %2891 = vmatprep.subr.bf16.mxu0 0
    %2892 = vmatpush1.bf16.msra.mxu0 0
    %2893 = vmatprep.subr.bf16.mxu0 0
    %2894 = vmatpush1.bf16.msra.mxu0 0
    %2895 = vmatprep.subr.bf16.mxu0 0
    %2896 = vmatpush1.bf16.msra.mxu0 0
    %2897 = vmatprep.subr.bf16.mxu0 0
    %2898 = vmatpush1.bf16.msra.mxu0 0
    %2899 = vmatprep.subr.bf16.mxu0 0
    %2900 = vmatpush1.bf16.msra.mxu0 0
    %2901 = vmatprep.subr.bf16.mxu0 0
    %2902 = vmatpush1.bf16.msra.mxu0 0
    %2903 = vmatprep.mubr.bf16.mxu0 0
    %2904 = vmatmul.mubr.bf16.gmra.mrb[0].mxu0 %v2637
    %v2905 = vpop.f32.mrb[0].mxu0
    %v2906 = vadd.f32 0.0, %v2905
    %v2907 = vpop.f32.mrb[0].mxu0
    %v2908 = vadd.f32 0.0, %v2907
    %v2909 = vpop.f32.mrb[0].mxu0
    %v2910 = vpop.f32.mrb[0].mxu0
    %2911 = vdwg.mxu0
    %v2916 = vrot.slane %v2865, 4
    %v2917 = vrot.slane %v2867, 4
    %v2918 = vrot.slane %v2906, 4
    %v2919 = vrot.slane %v2908, 4
    %v2924 = vadd.f32 %v2633, %v2916
    %v2925 = vadd.f32 %v2634, %v2917
    %v2926 = vadd.f32 %v2635, %v2918
    %v2927 = vadd.f32 %v2636, %v2919
    %v2928 = vxor.u32 %v2924, 2147483648
    %v2929 = vxor.u32 %v2925, 2147483648
    %v2930 = vmul.f32 %v2928, 1.442695
    %v2931 = vpow.pop %v2930
    %v2932 = vmul.f32 %v2929, 1.442695
    %v2933 = vpow.pop %v2932
    %v2934 = vadd.f32 %v2931, 1.0
    %v2935 = vadd.f32 %v2933, 1.0
    %v2936 = vrcp.pop %v2934
    %v2937 = vmul.f32 1.0, %v2936
    %v2938 = vrcp.pop %v2935
    %v2939 = vmul.f32 1.0, %v2938
    %v2940 = vtanh.pop %v2926
    %v2941 = vxor.u32 %v2927, 2147483648
    %v2942 = vmul.f32 %v2941, 1.442695
    %v2943 = vpow.pop %v2942
    %v2944 = vadd.f32 %v2943, 1.0
    %v2945 = vrcp.pop %v2944
    %v2946 = vmul.f32 1.0, %v2945
    %v2948 = vrot.slane %v2629, 4
    %v2950 = vmul.f32 %v2939, %v2948
    %v2951 = vmul.f32 %v2937, %v2940
    %v2952 = vadd.f32 %v2950, %v2951
    %v2953 = vtanh.pop %v2952
    %v2954 = vmul.f32 %v2946, %v2953
    %2955 = vst [vmem:[#allocation3 + $0x18] sm:$0xf0] %v2954
    %v2956 = vld [vmem:[#allocation3] sm:$0xff]
    %v2957 = vld [vmem:[#allocation3 + $0x8] sm:$0xff]
    %v2958 = vld [vmem:[#allocation3 + $0x10] sm:$0xff]
    %v2959 = vld [vmem:[#allocation3 + $0x18] sm:$0xff]
    %v2960 = vadd.f32 %v2956, %v2957
    %v2961 = vadd.f32 %v2960, %v2958
    %v2962 = vadd.f32 %v2961, %v2959
    %v2963 = vrot.slane %v2962, 4
    %v2964 = vadd.f32 %v2962, %v2963
    %v2965 = vrot.slane %v2964, 2
    %v2966 = vadd.f32 %v2964, %v2965
    %v2967 = vrot.slane %v2966, 1
    %v2968 = vadd.f32 %v2966, %v2967
    %v2969 = vrcp.pop 32.0
    %v2970 = vmul.f32 %v2968, %v2969
    %v2971 = vsub.f32 %v2956, %v2970
    %v2972 = vsub.f32 %v2957, %v2970
    %v2973 = vsub.f32 %v2958, %v2970
    %v2974 = vsub.f32 %v2959, %v2970
    %v2975 = vmul.f32 %v2971, %v2971
    %v2976 = vmul.f32 %v2972, %v2972
    %v2977 = vmul.f32 %v2973, %v2973
    %v2978 = vmul.f32 %v2974, %v2974
    %v2979 = vadd.f32 %v2975, %v2976
    %v2980 = vadd.f32 %v2979, %v2977
    %v2981 = vadd.f32 %v2980, %v2978
    %v2982 = vrot.slane %v2981, 4
    %v2983 = vadd.f32 %v2981, %v2982
    %v2984 = vrot.slane %v2983, 2
    %v2985 = vadd.f32 %v2983, %v2984
    %v2986 = vrot.slane %v2985, 1
    %v2987 = vadd.f32 %v2985, %v2986
    %v2988 = vmul.f32 %v2987, %v2969
    %v2989 = vadd.f32 %v2988, 1e-05
    %v2990 = vrsqrt.pop %v2989
    %v2991 = vmul.f32 %v2971, %v2990
    %v2992 = vmul.f32 %v2972, %v2990
    %v2993 = vmul.f32 %v2973, %v2990
    %v2994 = vmul.f32 %v2974, %v2990
    %v2995 = vpack.c.bf16 %v2992, %v2991
    %v2996 = vpack.c.bf16 %v2994, %v2993
    %v2997 = vld [vmem:[%s9] sm:$0xf]
    %v2998 = vld [vmem:[%s9 + $0x4] sm:$0xf]
    %v2999 = vld [vmem:[%s9 + $0x8] sm:$0xf]
    %v3000 = vld [vmem:[%s9 + $0xc] sm:$0xf]
    %v3001 = vld [vmem:[%s9 + $0x10] sm:$0xf]
    %v3002 = vld [vmem:[%s9 + $0x14] sm:$0xf]
    %v3003 = vld [vmem:[%s9 + $0x18] sm:$0xf]
    %v3004 = vld [vmem:[%s9 + $0x1c] sm:$0xf]
    %v3005 = vld [vmem:[%s9 + $0x20] sm:$0xf]
    %v3006 = vld [vmem:[%s9 + $0x24] sm:$0xf]
    %v3007 = vld [vmem:[%s9 + $0x28] sm:$0xf]
    %v3008 = vld [vmem:[%s9 + $0x2c] sm:$0xf]
    %v3009 = vld [vmem:[%s9 + $0x30] sm:$0xf]
    %v3010 = vld [vmem:[%s9 + $0x34] sm:$0xf]
    %v3011 = vld [vmem:[%s9 + $0x38] sm:$0xf]
    %v3012 = vld [vmem:[%s9 + $0x3c] sm:$0xf]
    %v3013 = vld [vmem:[%s10] sm:$0x1]
    %v3015 = vlaneseq
    %v3016 = vshrl.u32 %v3015, 7
    %v3017 = vsub.s32 0, %v3016
    %v3018 = vrot.slane %v3013, %v3017
    %v3036 = vunpack.c.l.b16 %v2997
    %v3037 = vunpack.c.l.b16 %v2998
    %v3038 = vunpack.c.l.b16 %v2999
    %v3039 = vunpack.c.l.b16 %v3000
    %v3040 = vunpack.c.l.b16 %v3001
    %v3041 = vunpack.c.l.b16 %v3002
    %v3042 = vunpack.c.l.b16 %v3003
    %v3043 = vunpack.c.l.b16 %v3004
    %v3044 = vunpack.c.l.b16 %v3005
    %v3045 = vunpack.c.l.b16 %v3006
    %v3046 = vunpack.c.l.b16 %v3007
    %v3047 = vunpack.c.l.b16 %v3008
    %v3048 = vunpack.c.l.b16 %v3009
    %v3049 = vunpack.c.l.b16 %v3010
    %v3050 = vunpack.c.l.b16 %v3011
    %v3051 = vunpack.c.l.b16 %v3012
    %v3052 = vpack.c.b16 %v3037, %v3036
    %v3053 = vpack.c.b16 %v3039, %v3038
    %v3054 = vpack.c.b16 %v3041, %v3040
    %v3055 = vpack.c.b16 %v3043, %v3042
    %v3056 = vpack.c.b16 %v3045, %v3044
    %v3057 = vpack.c.b16 %v3047, %v3046
    %v3058 = vpack.c.b16 %v3049, %v3048
    %v3059 = vpack.c.b16 %v3051, %v3050
    %3068 = vmatprep.subr.bf16.mxu0 0
    %3069 = vmatpush1.bf16.msra.mxu0 %v3052
    %3070 = vmatprep.subr.bf16.mxu0 0
    %3071 = vmatpush1.bf16.msra.mxu0 %v3053
    %3072 = vmatprep.subr.bf16.mxu0 0
    %3073 = vmatpush1.bf16.msra.mxu0 %v3054
    %3074 = vmatprep.subr.bf16.mxu0 0
    %3075 = vmatpush1.bf16.msra.mxu0 %v3055
    %3076 = vmatprep.subr.bf16.mxu0 0
    %3077 = vmatpush1.bf16.msra.mxu0 %v3056
    %3078 = vmatprep.subr.bf16.mxu0 0
    %3079 = vmatpush1.bf16.msra.mxu0 %v3057
    %3080 = vmatprep.subr.bf16.mxu0 0
    %3081 = vmatpush1.bf16.msra.mxu0 %v3058
    %3082 = vmatprep.subr.bf16.mxu0 0
    %3083 = vmatpush1.bf16.msra.mxu0 %v3059
    %3084 = vmatprep.subr.bf16.mxu0 0
    %3085 = vmatpush1.bf16.msra.mxu0 0
    %3086 = vmatprep.subr.bf16.mxu0 0
    %3087 = vmatpush1.bf16.msra.mxu0 0
    %3088 = vmatprep.subr.bf16.mxu0 0
    %3089 = vmatpush1.bf16.msra.mxu0 0
    %3090 = vmatprep.subr.bf16.mxu0 0
    %3091 = vmatpush1.bf16.msra.mxu0 0
    %3092 = vmatprep.subr.bf16.mxu0 0
    %3093 = vmatpush1.bf16.msra.mxu0 0
    %3094 = vmatprep.subr.bf16.mxu0 0
    %3095 = vmatpush1.bf16.msra.mxu0 0
    %3096 = vmatprep.subr.bf16.mxu0 0
    %3097 = vmatpush1.bf16.msra.mxu0 0
    %3098 = vmatprep.subr.bf16.mxu0 0
    %3099 = vmatpush1.bf16.msra.mxu0 0
    %3100 = vmatprep.mubr.bf16.mxu0 0
    %3101 = vmatmul.mubr.bf16.gmra.mrb[0].mxu0 %v2995
    %v3102 = vpop.f32.mrb[0].mxu0
    %v3103 = vadd.f32 %v3018, %v3102
    %v3104 = vpop.f32.mrb[0].mxu0
    %v3105 = vpop.f32.mrb[0].mxu0
    %v3106 = vadd.f32 %v3018, %v3105
    %v3107 = vpop.f32.mrb[0].mxu0
    %3108 = vmatprep.mubr.bf16.mxu0 0
    %3109 = vmatmul.mubr.bf16.gmra.mrb[0].mxu0 %v2996
    %v3110 = vpop.f32.mrb[0].mxu0
    %v3111 = vadd.f32 %v3018, %v3110
    %v3112 = vpop.f32.mrb[0].mxu0
    %v3113 = vpop.f32.mrb[0].mxu0
    %v3114 = vadd.f32 %v3018, %v3113
    %v3115 = vpop.f32.mrb[0].mxu0
    %3116 = vdwg.mxu0
    %v3117 = vsel %vm91, %v3103, -inf
    %3118 = vmax.xlane.f32.xlu0 %v3117
    %v3119 = vpop.xlane.xlu0 %3118
    %v3120 = vsel %vm91, %v3106, -inf
    %3121 = vmax.xlane.f32.xlu0 %v3120
    %v3122 = vpop.xlane.xlu0 %3121
    %v3123 = vsel %vm91, %v3111, -inf
    %3124 = vmax.xlane.f32.xlu0 %v3123
    %v3125 = vpop.xlane.xlu0 %3124
    %v3126 = vsel %vm91, %v3114, -inf
    %3127 = vmax.xlane.f32.xlu0 %v3126
    %v3128 = vpop.xlane.xlu0 %3127
    %v3129 = vsub.f32 %v3103, %v3119
    %v3130 = vsub.f32 %v3106, %v3122
    %v3131 = vsub.f32 %v3111, %v3125
    %v3132 = vsub.f32 %v3114, %v3128
    %v3133 = vmul.f32 %v3129, 1.442695
    %v3134 = vpow.pop %v3133
    %v3135 = vmul.f32 %v3130, 1.442695
    %v3136 = vpow.pop %v3135
    %v3137 = vmul.f32 %v3131, 1.442695
    %v3138 = vpow.pop %v3137
    %v3139 = vmul.f32 %v3132, 1.442695
    %v3140 = vpow.pop %v3139
    %v3141 = vsel %vm91, %v3134, 0.0
    %3142 = vadd.xlane.f32.xlu0 %v3141
    %v3143 = vpop.xlane.xlu0 %3142
    %v3144 = vsel %vm91, %v3136, 0.0
    %3145 = vadd.xlane.f32.xlu0 %v3144
    %v3146 = vpop.xlane.xlu0 %3145
    %v3147 = vsel %vm91, %v3138, 0.0
    %3148 = vadd.xlane.f32.xlu0 %v3147
    %v3149 = vpop.xlane.xlu0 %3148
    %v3150 = vsel %vm91, %v3140, 0.0
    %3151 = vadd.xlane.f32.xlu0 %v3150
    %v3152 = vpop.xlane.xlu0 %3151
    %v3153 = vlog2.pop %v3143
    %v3154 = vmul.f32 %v3153, 0.6931472
    %v3155 = vlog2.pop %v3146
    %v3156 = vmul.f32 %v3155, 0.6931472
    %v3157 = vlog2.pop %v3149
    %v3158 = vmul.f32 %v3157, 0.6931472
    %v3159 = vlog2.pop %v3152
    %v3160 = vmul.f32 %v3159, 0.6931472
    %v3161 = vsub.f32 %v3129, %v3154
    %v3162 = vsub.f32 %v3130, %v3156
    %v3163 = vsub.f32 %v3131, %v3158
    %v3164 = vsub.f32 %v3132, %v3160
    %3165 = vst.msk [vmem:[%s11] sm:$0xff] %vm91, %v3161
    %3166 = vst.msk [vmem:[%s11 + $0x8] sm:$0xff] %vm91, %v3162
    %3167 = vst.msk [vmem:[%s11 + $0x10] sm:$0xff] %vm91, %v3163
    %3168 = vst.msk [vmem:[%s11 + $0x18] sm:$0xff] %vm91, %v3164
    // Predicated region
    $region50: #{build_model_not_mols_forward.1} parent=1 // pred_check
      _
    $region51: #{build_model_not_mols_forward.1} parent=1 // pred_check_branch
      %3170 = sbr.rel (0) target = $region53
    $region52: #{build_model_not_mols_forward.1} parent=1 // pred_region
      _
    $region53: #{build_model_not_mols_forward.1} parent=1 // pred_fallthru
      _
    // Predicated region
    $region54: #{build_model_not_mols_forward.1} parent=1 // pred_check
      _
    $region55: #{build_model_not_mols_forward.1} parent=1 // pred_check_branch
      %3172 = sbr.rel (0) target = $region57
    $region56: #{build_model_not_mols_forward.1} parent=1 // pred_region
      _
    $region57: #{build_model_not_mols_forward.1} parent=1 // pred_fallthru
      _
    %3173 = vsyncpa [#allocation5], 1

</llo_original>
